<compile_context>
chip_gen: v5e
topology: v5e:2x2
jax: 0.10.0
libtpu: 0.0.40
codegen_flags: <defaults>
</compile_context>

<pallas_src>
import functools

import jax
import jax.numpy as jnp
from jax import lax
from jax.experimental import pallas as pl
from jax.experimental.pallas import tpu as pltpu


def bottleneck_kernel(x_ref, s1_ref, b1_ref, w1_ref, b2_ref, w2_ref, out_ref, pad_ref):
    """One grid step = one image (squeezed batch dim) x one block of `th` output rows.

    x_ref  : (H, W, Cp)       bf16  channel-padded input slab (channels >= Cin are zero)
    s1/b1  : (1, Cp)          f32   folded BN1 scale / bias (zero in padding lanes)
    w1_ref : (Cp, PP)         bf16  1x1 conv weight with BN2 scale folded in, zero-padded
    b2_ref : (1, PP)          f32   folded BN2 bias (zero in padding lanes)
    w2_ref : (9, PP, Cp)      bf16  3x3 conv weight, tap-major; output columns sit at
                                    [Cin, Cin+growth), everything else exactly zero
    out_ref: (th, W, Cp)      bf16  aliased output slab rows = x pass-through + new channels
    pad_ref: (th+2, W+2, PP)  bf16  zero-padded conv1 activations for the 3x3 taps (VMEM scratch)
    """
    H, W, Cp = x_ref.shape
    pp = w1_ref.shape[1]
    th = out_ref.shape[0]
    hb = pl.program_id(1)
    nhb = pl.num_programs(1)
    r0 = pl.multiple_of(hb * th, th)

    def bn1_relu_conv1(x2d):                       # (m, Cp) bf16 -> (m, PP) bf16
        a = jnp.maximum(x2d.astype(jnp.float32) * s1_ref[...] + b1_ref[...], 0.0)
        h = jnp.dot(a.astype(jnp.bfloat16), w1_ref[...],
                    preferred_element_type=jnp.float32)
        # BN2 scale already folded into w1; padded lanes stay exactly zero (0 + 0, relu).
        return jnp.maximum(h + b2_ref[...], 0.0).astype(jnp.bfloat16)

    # ---- interior rows of this block -> pad rows 1..th ----
    xm = x_ref[pl.ds(r0, th), :, :]                # (th, W, Cp) bf16
    hm = bn1_relu_conv1(xm.reshape(th * W, Cp))
    pad_ref[1:th + 1, 1:W + 1, :] = hm.reshape(th, W, pp)

    # ---- 1-px left/right borders (always zero; whole pad buffer is rewritten every step) ----
    zcol = jnp.zeros((th + 2, 1, pp), jnp.bfloat16)
    pad_ref[:, 0:1, :] = zcol
    pad_ref[:, W + 1:W + 2, :] = zcol

    # ---- 1-row halos, recomputed from x (or zero at the image border) ----
    @pl.when(hb == 0)
    def _():
        pad_ref[0:1, 1:W + 1, :] = jnp.zeros((1, W, pp), jnp.bfloat16)

    @pl.when(hb > 0)
    def _():
        xt = x_ref[pl.ds(r0 - 1, 1), :, :]
        pad_ref[0:1, 1:W + 1, :] = bn1_relu_conv1(xt.reshape(W, Cp)).reshape(1, W, pp)

    @pl.when(hb == nhb - 1)
    def _():
        pad_ref[th + 1:th + 2, 1:W + 1, :] = jnp.zeros((1, W, pp), jnp.bfloat16)

    @pl.when(hb < nhb - 1)
    def _():
        xb = x_ref[pl.ds(r0 + th, 1), :, :]
        pad_ref[th + 1:th + 2, 1:W + 1, :] = bn1_relu_conv1(xb.reshape(W, Cp)).reshape(1, W, pp)

    # ---- 3x3 conv, padding=1: 9 unrolled accumulating MXU dots (no im2col concat slab) ----
    y = None
    for k in range(9):
        ky, kx = divmod(k, 3)
        tap = pad_ref[ky:ky + th, kx:kx + W, :].reshape(th * W, pp)         # bf16
        d = jnp.dot(tap, w2_ref[k], preferred_element_type=jnp.float32)    # (th*W, Cp) f32
        y = d if y is None else y + d

    # ---- fused torch.cat((x, out), channel): new channels already sit at [Cin, Cin+growth),
    #      all other columns of y are exact zeros, so one dense lane-full store suffices ----
    out_ref[...] = (xm.astype(jnp.float32) + y.reshape(th, W, Cp)).astype(out_ref.dtype)


def bottleneck_forward_padded(x_pad, s1p, b1p, w1p, b2p, w2p, *, row_block=8):
    """Channel-padded NHWC entry point.

    x_pad: (N, H, W, Cp) bf16 slab; valid channels in [0, Cin), zeros elsewhere.
    Returns the updated slab (same shape/dtype, aliased onto x_pad): channels [0, Cin) are the
    pass-through x, [Cin, Cin+growth) the new features, the rest stays exactly zero.
    """
    N, H, W, Cp = x_pad.shape
    pp = w1p.shape[1]
    th = row_block if (H % row_block == 0) else H
    grid = (N, H // th)

    return pl.pallas_call(
        bottleneck_kernel,
        out_shape=jax.ShapeDtypeStruct((N, H, W, Cp), x_pad.dtype),
        grid_spec=pltpu.PrefetchScalarGridSpec(
            num_scalar_prefetch=0,
            grid=grid,
            in_specs=[
                # Full-H image block; block index constant over the inner row axis, so the
                # image is DMA'd into VMEM once per image (revisit skip), not per row-block.
                pl.BlockSpec((None, H, W, Cp), lambda b, hb: (b, 0, 0, 0)),
                pl.BlockSpec((1, Cp), lambda b, hb: (0, 0)),
                pl.BlockSpec((1, Cp), lambda b, hb: (0, 0)),
                pl.BlockSpec((Cp, pp), lambda b, hb: (0, 0)),
                pl.BlockSpec((1, pp), lambda b, hb: (0, 0)),
                pl.BlockSpec((9, pp, Cp), lambda b, hb: (0, 0, 0)),
            ],
            out_specs=pl.BlockSpec((None, th, W, Cp), lambda b, hb: (b, hb, 0, 0)),
            scratch_shapes=[pltpu.VMEM((th + 2, W + 2, pp), jnp.bfloat16)],
        ),
        input_output_aliases={0: 0},
        compiler_params=pltpu.CompilerParams(
            # batch axis "parallel" (v7x 2-TC split); row axis sequential per image so the
            # aliased in-place slab update never overlaps across cores within one image.
            dimension_semantics=("parallel", "arbitrary")),
    )(x_pad, s1p, b1p, w1p, b2p, w2p)


def _round_up(n, m):
    return ((n + m - 1) // m) * m


def prepare_params(g1, be1, mu1, var1, w1_oihw, g2, be2, mu2, var2, w2_oihw,
                   eps=1e-5, lane=128):
    """Fold BN into scale/bias, fold BN2 scale into w1, lay out conv weights lane-padded bf16."""
    planes, cin = w1_oihw.shape[0], w1_oihw.shape[1]
    growth = w2_oihw.shape[0]
    pp = _round_up(planes, lane)
    c_pad = _round_up(cin + growth, lane)

    scale1 = g1 / jnp.sqrt(var1 + eps)
    bias1 = be1 - mu1 * scale1
    scale2 = g2 / jnp.sqrt(var2 + eps)
    bias2 = be2 - mu2 * scale2

    s1p = jnp.zeros((1, c_pad), jnp.float32).at[0, :cin].set(scale1)
    b1p = jnp.zeros((1, c_pad), jnp.float32).at[0, :cin].set(bias1)

    # conv1 (planes, cin, 1, 1) -> (Cp, PP), with BN2 scale folded into the output columns.
    w1 = jnp.transpose(w1_oihw[:, :, 0, 0], (1, 0)) * scale2[None, :]          # (cin, planes)
    w1p = jnp.zeros((c_pad, pp), jnp.float32).at[:cin, :planes].set(w1)
    b2p = jnp.zeros((1, pp), jnp.float32).at[0, :planes].set(bias2)

    # conv2 (growth, planes, 3, 3) -> (9, PP, Cp), tap-major rows (ky*3+kx); output columns are
    # placed at channel offset cin so the matmul result is directly the slab's "new channels".
    w2 = jnp.transpose(w2_oihw, (2, 3, 1, 0))                                   # (3,3,planes,growth)
    w2p = jnp.zeros((3, 3, pp, c_pad), jnp.float32)
    w2p = w2p.at[:, :, :planes, cin:cin + growth].set(w2).reshape(9, pp, c_pad)

    params = (s1p, b1p, w1p.astype(jnp.bfloat16), b2p, w2p.astype(jnp.bfloat16))
    dims = (cin, growth, c_pad)
    return params, dims


@functools.partial(jax.jit, static_argnames=("dims", "row_block"))
def bottleneck_forward_nchw(x_nchw, params, dims, row_block=8):
    """PyTorch-compatible NCHW f32 interface.  In a full DenseNet you would keep the channel-padded
    bf16 NHWC slab between layers; the pad/slice/transpose here is boundary-only for the demo."""
    cin, growth, c_pad = dims
    n, c, h, w = x_nchw.shape
    x_nhwc = jnp.transpose(x_nchw, (0, 2, 3, 1)).astype(jnp.bfloat16)
    x_pad = jnp.zeros((n, h, w, c_pad), jnp.bfloat16).at[..., :c].set(x_nhwc)
    out_pad = bottleneck_forward_padded(x_pad, *params, row_block=row_block)
    out = out_pad[..., :cin + growth].astype(jnp.float32)
    return jnp.transpose(out, (0, 3, 1, 2))


def reference_forward(x, g1, be1, mu1, var1, w1_oihw, g2, be2, mu2, var2, w2_oihw, eps=1e-5):
    """Pure-JAX f32 NCHW reference (inference-mode BN)."""
    def bn(t, g, b, m, v):
        return ((t - m[None, :, None, None]) / jnp.sqrt(v + eps)[None, :, None, None]
                * g[None, :, None, None] + b[None, :, None, None])
    h = jnp.maximum(bn(x, g1, be1, mu1, var1), 0.0)
    h = lax.conv_general_dilated(h, w1_oihw, (1, 1), "VALID",
                                 dimension_numbers=("NCHW", "OIHW", "NCHW"))
    h = jnp.maximum(bn(h, g2, be2, mu2, var2), 0.0)
    h = lax.conv_general_dilated(h, w2_oihw, (1, 1), "SAME",
                                 dimension_numbers=("NCHW", "OIHW", "NCHW"))
    return jnp.concatenate([x, h], axis=1)


if __name__ == "__main__":
    # Module hyper-params (faithful to the defaults: planes = expansion * growthRate)
    N, Cin, H, W = 2, 16, 16, 16
    expansion, growthRate = 4, 12
    planes = expansion * growthRate  # 48
    eps = 1e-5

    key = jax.random.PRNGKey(0)
    ks = jax.random.split(key, 11)

    x = jax.random.normal(ks[0], (N, Cin, H, W), jnp.float32)

    # BN1 params
    g1 = 1.0 + 0.1 * jax.random.normal(ks[1], (Cin,), jnp.float32)
    be1 = 0.1 * jax.random.normal(ks[2], (Cin,), jnp.float32)
    mu1 = 0.1 * jax.random.normal(ks[3], (Cin,), jnp.float32)
    var1 = jnp.abs(jax.random.normal(ks[4], (Cin,), jnp.float32)) + 0.5

    # conv1 weight, PyTorch layout (planes, Cin, 1, 1)
    w1_oihw = 0.1 * jax.random.normal(ks[5], (planes, Cin, 1, 1), jnp.float32)

    # BN2 params
    g2 = 1.0 + 0.1 * jax.random.normal(ks[6], (planes,), jnp.float32)
    be2 = 0.1 * jax.random.normal(ks[7], (planes,), jnp.float32)
    mu2 = 0.1 * jax.random.normal(ks[8], (planes,), jnp.float32)
    var2 = jnp.abs(jax.random.normal(ks[9], (planes,), jnp.float32)) + 0.5

    # conv2 weight, PyTorch layout (growth, planes, 3, 3)
    w2_oihw = 0.1 * jax.random.normal(ks[10], (growthRate, planes, 3, 3), jnp.float32)

    # TODO(synk): dropout (dropRate > 0) not implemented; module default dropRate=0 makes it a no-op.

    params, dims = prepare_params(g1, be1, mu1, var1, w1_oihw,
                                  g2, be2, mu2, var2, w2_oihw, eps=eps)
    out = bottleneck_forward_nchw(x, params, dims, row_block=8)
    out = jax.block_until_ready(out)

    ref = reference_forward(x, g1, be1, mu1, var1, w1_oihw, g2, be2, mu2, var2, w2_oihw, eps=eps)
    assert out.shape == (N, Cin + growthRate, H, W), out.shape
    # bf16 activations / MXU operands with f32 accumulation -> relaxed tolerance vs f32 reference.
    assert jnp.allclose(out, ref, atol=3e-2, rtol=3e-2), float(jnp.max(jnp.abs(out - ref)))

    print("KERNEL_OK")
</pallas_src>

<mosaic_0001>
module attributes {stable_mosaic.version = 11 : i64} {
  func.func @bottleneck_kernel(%arg0: i32, %arg1: i32, %arg2: memref<1x16x16x128xbf16, #tpu.memory_space<vmem>>, %arg3: memref<1x128xf32, #tpu.memory_space<vmem>>, %arg4: memref<1x128xf32, #tpu.memory_space<vmem>>, %arg5: memref<128x128xbf16, #tpu.memory_space<vmem>>, %arg6: memref<1x128xf32, #tpu.memory_space<vmem>>, %arg7: memref<9x128x128xbf16, #tpu.memory_space<vmem>>, %arg8: memref<1x8x16x128xbf16, #tpu.memory_space<vmem>>, %arg9: memref<10x18x128xbf16, #tpu.memory_space<vmem>>) attributes {dimension_semantics = [#tpu.dimension_semantics<parallel>, #tpu.dimension_semantics<arbitrary>], iteration_bounds = array<i64: 2, 2>, scalar_prefetch = 0 : i64, scratch_operands = 1 : i64, tpu.core_type = #tpu.core_type<tc>, window_params = [{transform_indices = @transform_0, window_bounds = array<i64: 1, 16, 16, 128>}, {pipeline_mode = #tpu.pipeline_mode<synchronous>, transform_indices = @transform_1, window_bounds = array<i64: 1, 128>}, {pipeline_mode = #tpu.pipeline_mode<synchronous>, transform_indices = @transform_2, window_bounds = array<i64: 1, 128>}, {pipeline_mode = #tpu.pipeline_mode<synchronous>, transform_indices = @transform_3, window_bounds = array<i64: 128, 128>}, {pipeline_mode = #tpu.pipeline_mode<synchronous>, transform_indices = @transform_4, window_bounds = array<i64: 1, 128>}, {pipeline_mode = #tpu.pipeline_mode<synchronous>, transform_indices = @transform_5, window_bounds = array<i64: 9, 128, 128>}, {transform_indices = @transform_6, window_bounds = array<i64: 1, 8, 16, 128>}]} {
    %c8_i32 = arith.constant 8 : i32
    %0 = arith.muli %arg1, %c8_i32 : i32
    %1 = tpu.assume_multiple %0, 8 : i32
    %c0 = arith.constant 0 : index
    %2 = arith.index_cast %1 : i32 to index
    %c0_0 = arith.constant 0 : index
    %c0_1 = arith.constant 0 : index
    %3 = vector.load %arg2[%c0, %2, %c0_0, %c0_1] : memref<1x16x16x128xbf16, #tpu.memory_space<vmem>>, vector<1x8x16x128xbf16>
    %4 = vector.shape_cast %3 : vector<1x8x16x128xbf16> to vector<8x16x128xbf16>
    %5 = vector.shape_cast %4 : vector<8x16x128xbf16> to vector<128x128xbf16>
    %6 = arith.extf %5 : vector<128x128xbf16> to vector<128x128xf32>
    %c0_2 = arith.constant 0 : index
    %c0_3 = arith.constant 0 : index
    %7 = vector.load %arg3[%c0_2, %c0_3] : memref<1x128xf32, #tpu.memory_space<vmem>>, vector<1x128xf32>
    %8 = vector.broadcast %7 : vector<1x128xf32> to vector<128x128xf32>
    %9 = arith.mulf %6, %8 : vector<128x128xf32>
    %c0_4 = arith.constant 0 : index
    %c0_5 = arith.constant 0 : index
    %10 = vector.load %arg4[%c0_4, %c0_5] : memref<1x128xf32, #tpu.memory_space<vmem>>, vector<1x128xf32>
    %11 = vector.broadcast %10 : vector<1x128xf32> to vector<128x128xf32>
    %12 = arith.addf %9, %11 : vector<128x128xf32>
    %cst = arith.constant 0.000000e+00 : f32
    %13 = vector.broadcast %cst : f32 to vector<128x128xf32>
    %14 = arith.maximumf %12, %13 : vector<128x128xf32>
    %15 = arith.truncf %14 : vector<128x128xf32> to vector<128x128xbf16>
    %c0_6 = arith.constant 0 : index
    %c0_7 = arith.constant 0 : index
    %16 = vector.load %arg5[%c0_6, %c0_7] : memref<128x128xbf16, #tpu.memory_space<vmem>>, vector<128x128xbf16>
    %cst_8 = arith.constant dense<0.000000e+00> : vector<128x128xf32>
    %17 = tpu.matmul %15, %16, %cst_8 {dimension_numbers = #tpu.dot_dimension_numbers<[1], [0], [0], [1], [0, 0, 1, 1], [], []>} : vector<128x128xbf16>, vector<128x128xbf16>, vector<128x128xf32> -> vector<128x128xf32>
    %c0_9 = arith.constant 0 : index
    %c0_10 = arith.constant 0 : index
    %18 = vector.load %arg6[%c0_9, %c0_10] : memref<1x128xf32, #tpu.memory_space<vmem>>, vector<1x128xf32>
    %19 = vector.broadcast %18 : vector<1x128xf32> to vector<128x128xf32>
    %20 = arith.addf %17, %19 : vector<128x128xf32>
    %cst_11 = arith.constant 0.000000e+00 : f32
    %21 = vector.broadcast %cst_11 : f32 to vector<128x128xf32>
    %22 = arith.maximumf %20, %21 : vector<128x128xf32>
    %23 = arith.truncf %22 : vector<128x128xf32> to vector<128x128xbf16>
    %24 = vector.shape_cast %23 : vector<128x128xbf16> to vector<8x16x128xbf16>
    %c1 = arith.constant 1 : index
    %c1_12 = arith.constant 1 : index
    %c0_13 = arith.constant 0 : index
    %25 = vector.load %arg9[%c1, %c1_12, %c0_13] : memref<10x18x128xbf16, #tpu.memory_space<vmem>>, vector<8x16x128xbf16>
    tpu.vector_store %arg9[%c1, %c1_12, %c0_13], %24 {strides = array<i32>} : memref<10x18x128xbf16, #tpu.memory_space<vmem>>, vector<8x16x128xbf16>,
    %cst_14 = arith.constant 0.000000e+00 : bf16
    %26 = vector.broadcast %cst_14 : bf16 to vector<10x1x128xbf16>
    %c0_15 = arith.constant 0 : index
    %c0_16 = arith.constant 0 : index
    %c0_17 = arith.constant 0 : index
    %27 = vector.load %arg9[%c0_15, %c0_16, %c0_17] : memref<10x18x128xbf16, #tpu.memory_space<vmem>>, vector<10x1x128xbf16>
    tpu.vector_store %arg9[%c0_15, %c0_16, %c0_17], %26 {strides = array<i32>} : memref<10x18x128xbf16, #tpu.memory_space<vmem>>, vector<10x1x128xbf16>,
    %c0_18 = arith.constant 0 : index
    %c17 = arith.constant 17 : index
    %c0_19 = arith.constant 0 : index
    %28 = vector.load %arg9[%c0_18, %c17, %c0_19] : memref<10x18x128xbf16, #tpu.memory_space<vmem>>, vector<10x1x128xbf16>
    tpu.vector_store %arg9[%c0_18, %c17, %c0_19], %26 {strides = array<i32>} : memref<10x18x128xbf16, #tpu.memory_space<vmem>>, vector<10x1x128xbf16>,
    %c0_i32 = arith.constant 0 : i32
    %29 = arith.cmpi eq, %arg1, %c0_i32 : i32
    %30 = arith.extui %29 : i1 to i32
    %c0_i32_20 = arith.constant 0 : i32
    %31 = arith.cmpi ne, %30, %c0_i32_20 : i32
    scf.if %31 {
      %cst_86 = arith.constant 0.000000e+00 : bf16
      %101 = vector.broadcast %cst_86 : bf16 to vector<1x16x128xbf16>
      %c0_87 = arith.constant 0 : index
      %c1_88 = arith.constant 1 : index
      %c0_89 = arith.constant 0 : index
      %102 = vector.load %arg9[%c0_87, %c1_88, %c0_89] : memref<10x18x128xbf16, #tpu.memory_space<vmem>>, vector<1x16x128xbf16>
      tpu.vector_store %arg9[%c0_87, %c1_88, %c0_89], %101 {strides = array<i32>} : memref<10x18x128xbf16, #tpu.memory_space<vmem>>, vector<1x16x128xbf16>,
    } else {
    }
    %c0_i32_21 = arith.constant 0 : i32
    %32 = arith.cmpi sgt, %arg1, %c0_i32_21 : i32
    %33 = arith.extui %32 : i1 to i32
    %c0_i32_22 = arith.constant 0 : i32
    %34 = arith.cmpi ne, %33, %c0_i32_22 : i32
    scf.if %34 {
      %c1_i32_86 = arith.constant 1 : i32
      %101 = arith.subi %1, %c1_i32_86 : i32
      %c0_87 = arith.constant 0 : index
      %102 = arith.index_cast %101 : i32 to index
      %c0_88 = arith.constant 0 : index
      %c0_89 = arith.constant 0 : index
      %103 = vector.load %arg2[%c0_87, %102, %c0_88, %c0_89] : memref<1x16x16x128xbf16, #tpu.memory_space<vmem>>, vector<1x1x16x128xbf16>
      %104 = vector.shape_cast %103 : vector<1x1x16x128xbf16> to vector<1x16x128xbf16>
      %105 = vector.shape_cast %104 : vector<1x16x128xbf16> to vector<16x128xbf16>
      %106 = arith.extf %105 : vector<16x128xbf16> to vector<16x128xf32>
      %c0_90 = arith.constant 0 : index
      %c0_91 = arith.constant 0 : index
      %107 = vector.load %arg3[%c0_90, %c0_91] : memref<1x128xf32, #tpu.memory_space<vmem>>, vector<1x128xf32>
      %108 = vector.broadcast %107 : vector<1x128xf32> to vector<16x128xf32>
      %109 = arith.mulf %106, %108 : vector<16x128xf32>
      %c0_92 = arith.constant 0 : index
      %c0_93 = arith.constant 0 : index
      %110 = vector.load %arg4[%c0_92, %c0_93] : memref<1x128xf32, #tpu.memory_space<vmem>>, vector<1x128xf32>
      %111 = vector.broadcast %110 : vector<1x128xf32> to vector<16x128xf32>
      %112 = arith.addf %109, %111 : vector<16x128xf32>
      %cst_94 = arith.constant 0.000000e+00 : f32
      %113 = vector.broadcast %cst_94 : f32 to vector<16x128xf32>
      %114 = arith.maximumf %112, %113 : vector<16x128xf32>
      %115 = arith.truncf %114 : vector<16x128xf32> to vector<16x128xbf16>
      %c0_95 = arith.constant 0 : index
      %c0_96 = arith.constant 0 : index
      %116 = vector.load %arg5[%c0_95, %c0_96] : memref<128x128xbf16, #tpu.memory_space<vmem>>, vector<128x128xbf16>
      %cst_97 = arith.constant dense<0.000000e+00> : vector<16x128xf32>
      %117 = tpu.matmul %115, %116, %cst_97 {dimension_numbers = #tpu.dot_dimension_numbers<[1], [0], [0], [1], [0, 0, 1, 1], [], []>} : vector<16x128xbf16>, vector<128x128xbf16>, vector<16x128xf32> -> vector<16x128xf32>
      %c0_98 = arith.constant 0 : index
      %c0_99 = arith.constant 0 : index
      %118 = vector.load %arg6[%c0_98, %c0_99] : memref<1x128xf32, #tpu.memory_space<vmem>>, vector<1x128xf32>
      %119 = vector.broadcast %118 : vector<1x128xf32> to vector<16x128xf32>
      %120 = arith.addf %117, %119 : vector<16x128xf32>
      %cst_100 = arith.constant 0.000000e+00 : f32
      %121 = vector.broadcast %cst_100 : f32 to vector<16x128xf32>
      %122 = arith.maximumf %120, %121 : vector<16x128xf32>
      %123 = arith.truncf %122 : vector<16x128xf32> to vector<16x128xbf16>
      %124 = vector.shape_cast %123 : vector<16x128xbf16> to vector<1x16x128xbf16>
      %c0_101 = arith.constant 0 : index
      %c1_102 = arith.constant 1 : index
      %c0_103 = arith.constant 0 : index
      %125 = vector.load %arg9[%c0_101, %c1_102, %c0_103] : memref<10x18x128xbf16, #tpu.memory_space<vmem>>, vector<1x16x128xbf16>
      tpu.vector_store %arg9[%c0_101, %c1_102, %c0_103], %124 {strides = array<i32>} : memref<10x18x128xbf16, #tpu.memory_space<vmem>>, vector<1x16x128xbf16>,
    } else {
    }
    %c1_i32 = arith.constant 1 : i32
    %35 = arith.cmpi eq, %arg1, %c1_i32 : i32
    %36 = arith.extui %35 : i1 to i32
    %c0_i32_23 = arith.constant 0 : i32
    %37 = arith.cmpi ne, %36, %c0_i32_23 : i32
    scf.if %37 {
      %cst_86 = arith.constant 0.000000e+00 : bf16
      %101 = vector.broadcast %cst_86 : bf16 to vector<1x16x128xbf16>
      %c9 = arith.constant 9 : index
      %c1_87 = arith.constant 1 : index
      %c0_88 = arith.constant 0 : index
      %102 = vector.load %arg9[%c9, %c1_87, %c0_88] : memref<10x18x128xbf16, #tpu.memory_space<vmem>>, vector<1x16x128xbf16>
      tpu.vector_store %arg9[%c9, %c1_87, %c0_88], %101 {strides = array<i32>} : memref<10x18x128xbf16, #tpu.memory_space<vmem>>, vector<1x16x128xbf16>,
    } else {
    }
    %c1_i32_24 = arith.constant 1 : i32
    %38 = arith.cmpi slt, %arg1, %c1_i32_24 : i32
    %39 = arith.extui %38 : i1 to i32
    %c0_i32_25 = arith.constant 0 : i32
    %40 = arith.cmpi ne, %39, %c0_i32_25 : i32
    scf.if %40 {
      %c8_i32_86 = arith.constant 8 : i32
      %101 = arith.addi %1, %c8_i32_86 : i32
      %c0_87 = arith.constant 0 : index
      %102 = arith.index_cast %101 : i32 to index
      %c0_88 = arith.constant 0 : index
      %c0_89 = arith.constant 0 : index
      %103 = vector.load %arg2[%c0_87, %102, %c0_88, %c0_89] : memref<1x16x16x128xbf16, #tpu.memory_space<vmem>>, vector<1x1x16x128xbf16>
      %104 = vector.shape_cast %103 : vector<1x1x16x128xbf16> to vector<1x16x128xbf16>
      %105 = vector.shape_cast %104 : vector<1x16x128xbf16> to vector<16x128xbf16>
      %106 = arith.extf %105 : vector<16x128xbf16> to vector<16x128xf32>
      %c0_90 = arith.constant 0 : index
      %c0_91 = arith.constant 0 : index
      %107 = vector.load %arg3[%c0_90, %c0_91] : memref<1x128xf32, #tpu.memory_space<vmem>>, vector<1x128xf32>
      %108 = vector.broadcast %107 : vector<1x128xf32> to vector<16x128xf32>
      %109 = arith.mulf %106, %108 : vector<16x128xf32>
      %c0_92 = arith.constant 0 : index
      %c0_93 = arith.constant 0 : index
      %110 = vector.load %arg4[%c0_92, %c0_93] : memref<1x128xf32, #tpu.memory_space<vmem>>, vector<1x128xf32>
      %111 = vector.broadcast %110 : vector<1x128xf32> to vector<16x128xf32>
      %112 = arith.addf %109, %111 : vector<16x128xf32>
      %cst_94 = arith.constant 0.000000e+00 : f32
      %113 = vector.broadcast %cst_94 : f32 to vector<16x128xf32>
      %114 = arith.maximumf %112, %113 : vector<16x128xf32>
      %115 = arith.truncf %114 : vector<16x128xf32> to vector<16x128xbf16>
      %c0_95 = arith.constant 0 : index
      %c0_96 = arith.constant 0 : index
      %116 = vector.load %arg5[%c0_95, %c0_96] : memref<128x128xbf16, #tpu.memory_space<vmem>>, vector<128x128xbf16>
      %cst_97 = arith.constant dense<0.000000e+00> : vector<16x128xf32>
      %117 = tpu.matmul %115, %116, %cst_97 {dimension_numbers = #tpu.dot_dimension_numbers<[1], [0], [0], [1], [0, 0, 1, 1], [], []>} : vector<16x128xbf16>, vector<128x128xbf16>, vector<16x128xf32> -> vector<16x128xf32>
      %c0_98 = arith.constant 0 : index
      %c0_99 = arith.constant 0 : index
      %118 = vector.load %arg6[%c0_98, %c0_99] : memref<1x128xf32, #tpu.memory_space<vmem>>, vector<1x128xf32>
      %119 = vector.broadcast %118 : vector<1x128xf32> to vector<16x128xf32>
      %120 = arith.addf %117, %119 : vector<16x128xf32>
      %cst_100 = arith.constant 0.000000e+00 : f32
      %121 = vector.broadcast %cst_100 : f32 to vector<16x128xf32>
      %122 = arith.maximumf %120, %121 : vector<16x128xf32>
      %123 = arith.truncf %122 : vector<16x128xf32> to vector<16x128xbf16>
      %124 = vector.shape_cast %123 : vector<16x128xbf16> to vector<1x16x128xbf16>
      %c9 = arith.constant 9 : index
      %c1_101 = arith.constant 1 : index
      %c0_102 = arith.constant 0 : index
      %125 = vector.load %arg9[%c9, %c1_101, %c0_102] : memref<10x18x128xbf16, #tpu.memory_space<vmem>>, vector<1x16x128xbf16>
      tpu.vector_store %arg9[%c9, %c1_101, %c0_102], %124 {strides = array<i32>} : memref<10x18x128xbf16, #tpu.memory_space<vmem>>, vector<1x16x128xbf16>,
    } else {
    }
    %c0_26 = arith.constant 0 : index
    %c0_27 = arith.constant 0 : index
    %c0_28 = arith.constant 0 : index
    %41 = vector.load %arg9[%c0_26, %c0_27, %c0_28] : memref<10x18x128xbf16, #tpu.memory_space<vmem>>, vector<8x16x128xbf16>
    %42 = vector.shape_cast %41 : vector<8x16x128xbf16> to vector<128x128xbf16>
    %c0_29 = arith.constant 0 : index
    %c0_30 = arith.constant 0 : index
    %c0_31 = arith.constant 0 : index
    %43 = vector.load %arg7[%c0_29, %c0_30, %c0_31] : memref<9x128x128xbf16, #tpu.memory_space<vmem>>, vector<1x128x128xbf16>
    %44 = vector.shape_cast %43 : vector<1x128x128xbf16> to vector<128x128xbf16>
    %cst_32 = arith.constant dense<0.000000e+00> : vector<128x128xf32>
    %45 = tpu.matmul %42, %44, %cst_32 {dimension_numbers = #tpu.dot_dimension_numbers<[1], [0], [0], [1], [0, 0, 1, 1], [], []>} : vector<128x128xbf16>, vector<128x128xbf16>, vector<128x128xf32> -> vector<128x128xf32>
    %c0_33 = arith.constant 0 : index
    %c1_34 = arith.constant 1 : index
    %c0_35 = arith.constant 0 : index
    %46 = vector.load %arg9[%c0_33, %c1_34, %c0_35] : memref<10x18x128xbf16, #tpu.memory_space<vmem>>, vector<8x16x128xbf16>
    %47 = vector.shape_cast %46 : vector<8x16x128xbf16> to vector<128x128xbf16>
    %c1_36 = arith.constant 1 : index
    %c0_37 = arith.constant 0 : index
    %c0_38 = arith.constant 0 : index
    %48 = vector.load %arg7[%c1_36, %c0_37, %c0_38] : memref<9x128x128xbf16, #tpu.memory_space<vmem>>, vector<1x128x128xbf16>
    %49 = vector.shape_cast %48 : vector<1x128x128xbf16> to vector<128x128xbf16>
    %cst_39 = arith.constant dense<0.000000e+00> : vector<128x128xf32>
    %50 = tpu.matmul %47, %49, %cst_39 {dimension_numbers = #tpu.dot_dimension_numbers<[1], [0], [0], [1], [0, 0, 1, 1], [], []>} : vector<128x128xbf16>, vector<128x128xbf16>, vector<128x128xf32> -> vector<128x128xf32>
    %51 = arith.addf %45, %50 : vector<128x128xf32>
    %c0_40 = arith.constant 0 : index
    %c2 = arith.constant 2 : index
    %c0_41 = arith.constant 0 : index
    %52 = vector.load %arg9[%c0_40, %c2, %c0_41] : memref<10x18x128xbf16, #tpu.memory_space<vmem>>, vector<8x16x128xbf16>
    %53 = vector.shape_cast %52 : vector<8x16x128xbf16> to vector<128x128xbf16>
    %c2_42 = arith.constant 2 : index
    %c0_43 = arith.constant 0 : index
    %c0_44 = arith.constant 0 : index
    %54 = vector.load %arg7[%c2_42, %c0_43, %c0_44] : memref<9x128x128xbf16, #tpu.memory_space<vmem>>, vector<1x128x128xbf16>
    %55 = vector.shape_cast %54 : vector<1x128x128xbf16> to vector<128x128xbf16>
    %cst_45 = arith.constant dense<0.000000e+00> : vector<128x128xf32>
    %56 = tpu.matmul %53, %55, %cst_45 {dimension_numbers = #tpu.dot_dimension_numbers<[1], [0], [0], [1], [0, 0, 1, 1], [], []>} : vector<128x128xbf16>, vector<128x128xbf16>, vector<128x128xf32> -> vector<128x128xf32>
    %57 = arith.addf %51, %56 : vector<128x128xf32>
    %c1_46 = arith.constant 1 : index
    %c0_47 = arith.constant 0 : index
    %c0_48 = arith.constant 0 : index
    %58 = vector.load %arg9[%c1_46, %c0_47, %c0_48] : memref<10x18x128xbf16, #tpu.memory_space<vmem>>, vector<8x16x128xbf16>
    %59 = vector.shape_cast %58 : vector<8x16x128xbf16> to vector<128x128xbf16>
    %c3 = arith.constant 3 : index
    %c0_49 = arith.constant 0 : index
    %c0_50 = arith.constant 0 : index
    %60 = vector.load %arg7[%c3, %c0_49, %c0_50] : memref<9x128x128xbf16, #tpu.memory_space<vmem>>, vector<1x128x128xbf16>
    %61 = vector.shape_cast %60 : vector<1x128x128xbf16> to vector<128x128xbf16>
    %cst_51 = arith.constant dense<0.000000e+00> : vector<128x128xf32>
    %62 = tpu.matmul %59, %61, %cst_51 {dimension_numbers = #tpu.dot_dimension_numbers<[1], [0], [0], [1], [0, 0, 1, 1], [], []>} : vector<128x128xbf16>, vector<128x128xbf16>, vector<128x128xf32> -> vector<128x128xf32>
    %63 = arith.addf %57, %62 : vector<128x128xf32>
    %c1_52 = arith.constant 1 : index
    %c1_53 = arith.constant 1 : index
    %c0_54 = arith.constant 0 : index
    %64 = vector.load %arg9[%c1_52, %c1_53, %c0_54] : memref<10x18x128xbf16, #tpu.memory_space<vmem>>, vector<8x16x128xbf16>
    %65 = vector.shape_cast %64 : vector<8x16x128xbf16> to vector<128x128xbf16>
    %c4 = arith.constant 4 : index
    %c0_55 = arith.constant 0 : index
    %c0_56 = arith.constant 0 : index
    %66 = vector.load %arg7[%c4, %c0_55, %c0_56] : memref<9x128x128xbf16, #tpu.memory_space<vmem>>, vector<1x128x128xbf16>
    %67 = vector.shape_cast %66 : vector<1x128x128xbf16> to vector<128x128xbf16>
    %cst_57 = arith.constant dense<0.000000e+00> : vector<128x128xf32>
    %68 = tpu.matmul %65, %67, %cst_57 {dimension_numbers = #tpu.dot_dimension_numbers<[1], [0], [0], [1], [0, 0, 1, 1], [], []>} : vector<128x128xbf16>, vector<128x128xbf16>, vector<128x128xf32> -> vector<128x128xf32>
    %69 = arith.addf %63, %68 : vector<128x128xf32>
    %c1_58 = arith.constant 1 : index
    %c2_59 = arith.constant 2 : index
    %c0_60 = arith.constant 0 : index
    %70 = vector.load %arg9[%c1_58, %c2_59, %c0_60] : memref<10x18x128xbf16, #tpu.memory_space<vmem>>, vector<8x16x128xbf16>
    %71 = vector.shape_cast %70 : vector<8x16x128xbf16> to vector<128x128xbf16>
    %c5 = arith.constant 5 : index
    %c0_61 = arith.constant 0 : index
    %c0_62 = arith.constant 0 : index
    %72 = vector.load %arg7[%c5, %c0_61, %c0_62] : memref<9x128x128xbf16, #tpu.memory_space<vmem>>, vector<1x128x128xbf16>
    %73 = vector.shape_cast %72 : vector<1x128x128xbf16> to vector<128x128xbf16>
    %cst_63 = arith.constant dense<0.000000e+00> : vector<128x128xf32>
    %74 = tpu.matmul %71, %73, %cst_63 {dimension_numbers = #tpu.dot_dimension_numbers<[1], [0], [0], [1], [0, 0, 1, 1], [], []>} : vector<128x128xbf16>, vector<128x128xbf16>, vector<128x128xf32> -> vector<128x128xf32>
    %75 = arith.addf %69, %74 : vector<128x128xf32>
    %c2_64 = arith.constant 2 : index
    %c0_65 = arith.constant 0 : index
    %c0_66 = arith.constant 0 : index
    %76 = vector.load %arg9[%c2_64, %c0_65, %c0_66] : memref<10x18x128xbf16, #tpu.memory_space<vmem>>, vector<8x16x128xbf16>
    %77 = vector.shape_cast %76 : vector<8x16x128xbf16> to vector<128x128xbf16>
    %c6 = arith.constant 6 : index
    %c0_67 = arith.constant 0 : index
    %c0_68 = arith.constant 0 : index
    %78 = vector.load %arg7[%c6, %c0_67, %c0_68] : memref<9x128x128xbf16, #tpu.memory_space<vmem>>, vector<1x128x128xbf16>
    %79 = vector.shape_cast %78 : vector<1x128x128xbf16> to vector<128x128xbf16>
    %cst_69 = arith.constant dense<0.000000e+00> : vector<128x128xf32>
    %80 = tpu.matmul %77, %79, %cst_69 {dimension_numbers = #tpu.dot_dimension_numbers<[1], [0], [0], [1], [0, 0, 1, 1], [], []>} : vector<128x128xbf16>, vector<128x128xbf16>, vector<128x128xf32> -> vector<128x128xf32>
    %81 = arith.addf %75, %80 : vector<128x128xf32>
    %c2_70 = arith.constant 2 : index
    %c1_71 = arith.constant 1 : index
    %c0_72 = arith.constant 0 : index
    %82 = vector.load %arg9[%c2_70, %c1_71, %c0_72] : memref<10x18x128xbf16, #tpu.memory_space<vmem>>, vector<8x16x128xbf16>
    %83 = vector.shape_cast %82 : vector<8x16x128xbf16> to vector<128x128xbf16>
    %c7 = arith.constant 7 : index
    %c0_73 = arith.constant 0 : index
    %c0_74 = arith.constant 0 : index
    %84 = vector.load %arg7[%c7, %c0_73, %c0_74] : memref<9x128x128xbf16, #tpu.memory_space<vmem>>, vector<1x128x128xbf16>
    %85 = vector.shape_cast %84 : vector<1x128x128xbf16> to vector<128x128xbf16>
    %cst_75 = arith.constant dense<0.000000e+00> : vector<128x128xf32>
    %86 = tpu.matmul %83, %85, %cst_75 {dimension_numbers = #tpu.dot_dimension_numbers<[1], [0], [0], [1], [0, 0, 1, 1], [], []>} : vector<128x128xbf16>, vector<128x128xbf16>, vector<128x128xf32> -> vector<128x128xf32>
    %87 = arith.addf %81, %86 : vector<128x128xf32>
    %c2_76 = arith.constant 2 : index
    %c2_77 = arith.constant 2 : index
    %c0_78 = arith.constant 0 : index
    %88 = vector.load %arg9[%c2_76, %c2_77, %c0_78] : memref<10x18x128xbf16, #tpu.memory_space<vmem>>, vector<8x16x128xbf16>
    %89 = vector.shape_cast %88 : vector<8x16x128xbf16> to vector<128x128xbf16>
    %c8 = arith.constant 8 : index
    %c0_79 = arith.constant 0 : index
    %c0_80 = arith.constant 0 : index
    %90 = vector.load %arg7[%c8, %c0_79, %c0_80] : memref<9x128x128xbf16, #tpu.memory_space<vmem>>, vector<1x128x128xbf16>
    %91 = vector.shape_cast %90 : vector<1x128x128xbf16> to vector<128x128xbf16>
    %cst_81 = arith.constant dense<0.000000e+00> : vector<128x128xf32>
    %92 = tpu.matmul %89, %91, %cst_81 {dimension_numbers = #tpu.dot_dimension_numbers<[1], [0], [0], [1], [0, 0, 1, 1], [], []>} : vector<128x128xbf16>, vector<128x128xbf16>, vector<128x128xf32> -> vector<128x128xf32>
    %93 = arith.addf %87, %92 : vector<128x128xf32>
    %94 = arith.extf %4 : vector<8x16x128xbf16> to vector<8x16x128xf32>
    %95 = vector.shape_cast %93 : vector<128x128xf32> to vector<8x16x128xf32>
    %96 = arith.addf %94, %95 : vector<8x16x128xf32>
    %97 = arith.truncf %96 : vector<8x16x128xf32> to vector<8x16x128xbf16>
    %c0_82 = arith.constant 0 : index
    %c0_83 = arith.constant 0 : index
    %c0_84 = arith.constant 0 : index
    %c0_85 = arith.constant 0 : index
    %98 = vector.load %arg8[%c0_82, %c0_83, %c0_84, %c0_85] : memref<1x8x16x128xbf16, #tpu.memory_space<vmem>>, vector<1x8x16x128xbf16>
    %99 = vector.shape_cast %98 : vector<1x8x16x128xbf16> to vector<8x16x128xbf16>
    %100 = vector.shape_cast %97 : vector<8x16x128xbf16> to vector<1x8x16x128xbf16>
    tpu.vector_store %arg8[%c0_82, %c0_83, %c0_84, %c0_85], %100 {strides = array<i32>} : memref<1x8x16x128xbf16, #tpu.memory_space<vmem>>, vector<1x8x16x128xbf16>,
    return
  }
  func.func @transform_0(%arg0: i32, %arg1: i32) -> (i32, i32, i32, i32) {
    %c0_i32 = arith.constant 0 : i32
    %c0_i32_0 = arith.constant 0 : i32
    %c0_i32_1 = arith.constant 0 : i32
    %c0_i32_2 = arith.constant 0 : i32
    return %arg0, %c0_i32, %c0_i32_0, %c0_i32_1 : i32, i32, i32, i32
  }
  func.func @transform_1(%arg0: i32, %arg1: i32) -> (i32, i32) {
    %c0_i32 = arith.constant 0 : i32
    %c0_i32_0 = arith.constant 0 : i32
    %c0_i32_1 = arith.constant 0 : i32
    return %c0_i32, %c0_i32_0 : i32, i32
  }
  func.func @transform_2(%arg0: i32, %arg1: i32) -> (i32, i32) {
    %c0_i32 = arith.constant 0 : i32
    %c0_i32_0 = arith.constant 0 : i32
    %c0_i32_1 = arith.constant 0 : i32
    return %c0_i32, %c0_i32_0 : i32, i32
  }
  func.func @transform_3(%arg0: i32, %arg1: i32) -> (i32, i32) {
    %c0_i32 = arith.constant 0 : i32
    %c0_i32_0 = arith.constant 0 : i32
    %c0_i32_1 = arith.constant 0 : i32
    return %c0_i32, %c0_i32_0 : i32, i32
  }
  func.func @transform_4(%arg0: i32, %arg1: i32) -> (i32, i32) {
    %c0_i32 = arith.constant 0 : i32
    %c0_i32_0 = arith.constant 0 : i32
    %c0_i32_1 = arith.constant 0 : i32
    return %c0_i32, %c0_i32_0 : i32, i32
  }
  func.func @transform_5(%arg0: i32, %arg1: i32) -> (i32, i32, i32) {
    %c0_i32 = arith.constant 0 : i32
    %c0_i32_0 = arith.constant 0 : i32
    %c0_i32_1 = arith.constant 0 : i32
    %c0_i32_2 = arith.constant 0 : i32
    return %c0_i32, %c0_i32_0, %c0_i32_1 : i32, i32, i32
  }
  func.func @transform_6(%arg0: i32, %arg1: i32) -> (i32, i32, i32, i32) {
    %c0_i32 = arith.constant 0 : i32
    %c0_i32_0 = arith.constant 0 : i32
    %c0_i32_1 = arith.constant 0 : i32
    return %arg0, %arg1, %c0_i32, %c0_i32_0 : i32, i32, i32, i32
  }
}

</mosaic_0001>

<llo_original>
// kernel: bottleneck_forward_nchw.1
$region0: #{bottleneck_forward_nchw.1}
  #allocation0 [shape = 'u32[]', space=smem, size = 0x4, offset = 0x4, fixed_abs, tag = 'smem constant byte address 0x4 - core index']
  #allocation1 [shape = 'u32[72,128]{1,0:T(1,128)}', space=vmem, size = 0x9000, scoped, tag = 'internal scratch']
  #allocation2 [shape = 'bf16[10,18,128]{2,1,0:T(8,128)(2,1)}', space=vmem, size = 0xf000, scoped, tag = 'scratch operand']
  %s0 = inlined_call_operand.vmem [shape: bf16[2,16,16,128], index: 0, kind: input, shape index: {}, may-alias: {0,6}]
  %s1 = inlined_call_operand.vmem [shape: f32[1,128], index: 1, kind: input, shape index: {}]
  %s2 = inlined_call_operand.vmem [shape: f32[1,128], index: 2, kind: input, shape index: {}]
  %s3 = inlined_call_operand.vmem [shape: bf16[128,128], index: 3, kind: input, shape index: {}]
  %s4 = inlined_call_operand.vmem [shape: f32[1,128], index: 4, kind: input, shape index: {}]
  %s5 = inlined_call_operand.vmem [shape: bf16[9,128,128], index: 5, kind: input, shape index: {}]
  %s6 = inlined_call_operand.vmem [shape: bf16[2,16,16,128], index: 6, kind: output, shape index: {}, may-alias: {0,6}]
  %s7 = sld [smem:[#allocation0]]
  $region73: #{bottleneck_forward_nchw.1} parent=0
    _
  %s9 = ssub.s32 1, %s7
  %s10 = scalar_select 0, %s9, %s7
  loop: start=0, step=1, limit=6
  $region2: #{bottleneck_forward_nchw.1} parent=0 // loop_pre_header
    _
  $region3: #{bottleneck_forward_nchw.1} parent=0 // loop_header
    %s12 = sphi 0, %s16
    %p13 = scmp.ge.s32.totalorder %s12, 6
    %s19 = sphi 0, %s31
    %s20 = sphi 0, %s27
    %s21 = sphi 0, %s19
    %s22 = sphi 0, %s20
    %s23 = sphi 0, %s21
    %s24 = sphi 0, %s22
    %s34 = sphi 0, %s36
    %s37 = sphi 0, %s34
    %s38 = sphi 0, %s37
    %s54 = sphi 0, %s38
    %s58 = sphi 0, %s58
    %s60 = sphi 0, %s58
    %s61 = sphi 0, %s60
    %s75 = sphi 0, %s61
    %s79 = sphi 0, %s79
    %s81 = sphi 0, %s79
    %s82 = sphi 0, %s81
    %s96 = sphi 0, %s82
    %s100 = sphi 0, %s100
    %s102 = sphi 0, %s100
    %s103 = sphi 0, %s102
    %s117 = sphi 0, %s103
    %s121 = sphi 0, %s121
    %s123 = sphi 0, %s121
    %s124 = sphi 0, %s123
    %s138 = sphi 0, %s124
    %s142 = sphi 0, %s142
    %s144 = sphi 0, %s142
    %s145 = sphi 0, %s144
    %s159 = sphi 0, %s145
    %s167 = sphi 0, %s169
    %s170 = sphi 0, %s167
    %s171 = sphi 0, %s170
    %s187 = sphi 0, %s171
  $region4: #{bottleneck_forward_nchw.1} parent=0 // loop_header_branch
    %15 = sbr.rel (%p13) target = $region8
  $region5: #{bottleneck_forward_nchw.1} parent=0 // loop_body
    %s17 = ssub.s32 %s12, 1
    %s18 = ssub.s32 %s12, 2
    %s25 = sadd.s32 1, %s20
    %p26 = scmp.ge.s32.totalorder %s25, 2
    %s27 = scalar_select %p26, 0, %s25
    %s28 = sadd.s32 1, %s19
    %s29 = scalar_select %p26, %s28, %s19
    %p30 = scmp.ge.s32.totalorder %s29, 2
    %s31 = scalar_select %p30, 0, %s29
    %s32 = ssub.s32 %s19, %s31
    %p33 = scmp.eq.s32.totalorder %s32, 0
    %s35 = sadd.s32 %s34, 1
    %s36 = scalar_select %p33, %s34, %s35
    %p39 = pneg %p33
    %p40 = scmp.eq.s32.totalorder %s12, 3
    %p41 = por %p39, %p40
    %p42 = scmp.ne.s32.totalorder %s34, %s37
    %p43 = scmp.eq.s32.totalorder %s12, 0
    %p44 = por %p42, %p43
    %p45 = scmp.ne.s32.totalorder %s34, %s37
    %p46 = scmp.eq.s32.totalorder %s17, 3
    %p47 = por %p45, %p46
    %p48 = scmp.ne.s32.totalorder %s37, %s38
    %p49 = scmp.eq.s32.totalorder %s17, 0
    %p50 = por %p48, %p49
    %p51 = scmp.ne.s32.totalorder %s37, %s38
    %p52 = scmp.eq.s32.totalorder %s18, 3
    %p53 = por %p51, %p52
    %p55 = scmp.ne.s32.totalorder %s38, %s54
    %p56 = scmp.eq.s32.totalorder %s18, 0
    %p57 = por %p55, %p56
    %s59 = sadd.s32 %s58, 1
    %p62 = scmp.eq.s32.totalorder %s12, 3
    %p63 = scmp.ne.s32.totalorder %s58, %s60
    %p64 = scmp.eq.s32.totalorder %s12, 0
    %p65 = por %p63, %p64
    %p66 = scmp.ne.s32.totalorder %s58, %s60
    %p67 = scmp.eq.s32.totalorder %s17, 3
    %p68 = por %p66, %p67
    %p69 = scmp.ne.s32.totalorder %s60, %s61
    %p70 = scmp.eq.s32.totalorder %s17, 0
    %p71 = por %p69, %p70
    %p72 = scmp.ne.s32.totalorder %s60, %s61
    %p73 = scmp.eq.s32.totalorder %s18, 3
    %p74 = por %p72, %p73
    %p76 = scmp.ne.s32.totalorder %s61, %s75
    %p77 = scmp.eq.s32.totalorder %s18, 0
    %p78 = por %p76, %p77
    %s80 = sadd.s32 %s79, 1
    %p83 = scmp.eq.s32.totalorder %s12, 3
    %p84 = scmp.ne.s32.totalorder %s79, %s81
    %p85 = scmp.eq.s32.totalorder %s12, 0
    %p86 = por %p84, %p85
    %p87 = scmp.ne.s32.totalorder %s79, %s81
    %p88 = scmp.eq.s32.totalorder %s17, 3
    %p89 = por %p87, %p88
    %p90 = scmp.ne.s32.totalorder %s81, %s82
    %p91 = scmp.eq.s32.totalorder %s17, 0
    %p92 = por %p90, %p91
    %p93 = scmp.ne.s32.totalorder %s81, %s82
    %p94 = scmp.eq.s32.totalorder %s18, 3
    %p95 = por %p93, %p94
    %p97 = scmp.ne.s32.totalorder %s82, %s96
    %p98 = scmp.eq.s32.totalorder %s18, 0
    %p99 = por %p97, %p98
    %s101 = sadd.s32 %s100, 1
    %p104 = scmp.eq.s32.totalorder %s12, 3
    %p105 = scmp.ne.s32.totalorder %s100, %s102
    %p106 = scmp.eq.s32.totalorder %s12, 0
    %p107 = por %p105, %p106
    %p108 = scmp.ne.s32.totalorder %s100, %s102
    %p109 = scmp.eq.s32.totalorder %s17, 3
    %p110 = por %p108, %p109
    %p111 = scmp.ne.s32.totalorder %s102, %s103
    %p112 = scmp.eq.s32.totalorder %s17, 0
    %p113 = por %p111, %p112
    %p114 = scmp.ne.s32.totalorder %s102, %s103
    %p115 = scmp.eq.s32.totalorder %s18, 3
    %p116 = por %p114, %p115
    %p118 = scmp.ne.s32.totalorder %s103, %s117
    %p119 = scmp.eq.s32.totalorder %s18, 0
    %p120 = por %p118, %p119
    %s122 = sadd.s32 %s121, 1
    %p125 = scmp.eq.s32.totalorder %s12, 3
    %p126 = scmp.ne.s32.totalorder %s121, %s123
    %p127 = scmp.eq.s32.totalorder %s12, 0
    %p128 = por %p126, %p127
    %p129 = scmp.ne.s32.totalorder %s121, %s123
    %p130 = scmp.eq.s32.totalorder %s17, 3
    %p131 = por %p129, %p130
    %p132 = scmp.ne.s32.totalorder %s123, %s124
    %p133 = scmp.eq.s32.totalorder %s17, 0
    %p134 = por %p132, %p133
    %p135 = scmp.ne.s32.totalorder %s123, %s124
    %p136 = scmp.eq.s32.totalorder %s18, 3
    %p137 = por %p135, %p136
    %p139 = scmp.ne.s32.totalorder %s124, %s138
    %p140 = scmp.eq.s32.totalorder %s18, 0
    %p141 = por %p139, %p140
    %s143 = sadd.s32 %s142, 1
    %p146 = scmp.eq.s32.totalorder %s12, 3
    %p147 = scmp.ne.s32.totalorder %s142, %s144
    %p148 = scmp.eq.s32.totalorder %s12, 0
    %p149 = por %p147, %p148
    %p150 = scmp.ne.s32.totalorder %s142, %s144
    %p151 = scmp.eq.s32.totalorder %s17, 3
    %p152 = por %p150, %p151
    %p153 = scmp.ne.s32.totalorder %s144, %s145
    %p154 = scmp.eq.s32.totalorder %s17, 0
    %p155 = por %p153, %p154
    %p156 = scmp.ne.s32.totalorder %s144, %s145
    %p157 = scmp.eq.s32.totalorder %s18, 3
    %p158 = por %p156, %p157
    %p160 = scmp.ne.s32.totalorder %s145, %s159
    %p161 = scmp.eq.s32.totalorder %s18, 0
    %p162 = por %p160, %p161
    %s163 = ssub.s32 %s19, %s31
    %s164 = ssub.s32 %s20, %s27
    %s165 = sor.u32 %s163, %s164
    %p166 = scmp.eq.s32.totalorder %s165, 0
    %s168 = sadd.s32 %s167, 1
    %s169 = scalar_select %p166, %s167, %s168
    %p172 = pneg %p166
    %p173 = scmp.eq.s32.totalorder %s12, 3
    %p174 = por %p172, %p173
    %p175 = scmp.ne.s32.totalorder %s167, %s170
    %p176 = scmp.eq.s32.totalorder %s12, 0
    %p177 = por %p175, %p176
    %p178 = scmp.ne.s32.totalorder %s167, %s170
    %p179 = scmp.eq.s32.totalorder %s17, 3
    %p180 = por %p178, %p179
    %p181 = scmp.ne.s32.totalorder %s170, %s171
    %p182 = scmp.eq.s32.totalorder %s17, 0
    %p183 = por %p181, %p182
    %p184 = scmp.ne.s32.totalorder %s170, %s171
    %p185 = scmp.eq.s32.totalorder %s18, 3
    %p186 = por %p184, %p185
    %p188 = scmp.ne.s32.totalorder %s171, %s187
    %p189 = scmp.eq.s32.totalorder %s18, 0
    %p190 = por %p188, %p189
    %p191 = scmp.le.s32.totalorder 1, %s12
    %p192 = scmp.lt.s32.totalorder %s12, 5
    %p193 = pnand %p191, %p192
    %p194 = pneg %p193
    // Predicated region
    $region9: #{bottleneck_forward_nchw.1} parent=5 // pred_check
      _
    $region10: #{bottleneck_forward_nchw.1} parent=5 // pred_check_branch
      %196 = sbr.rel (%p193) target = $region12
    $region11: #{bottleneck_forward_nchw.1} parent=5 // pred_region
      %s197 = ssub.s32 %s12, 1
      // Predicated region
      $region13: #{bottleneck_forward_nchw.1} parent=11 // pred_check
        %p198 = pneg %p71
      $region14: #{bottleneck_forward_nchw.1} parent=11 // pred_check_branch
        %200 = sbr.rel (%p198) target = $region16
      $region15: #{bottleneck_forward_nchw.1} parent=11 // pred_region
        _
      $region16: #{bottleneck_forward_nchw.1} parent=11 // pred_fallthru
        _
      // Predicated region
      $region17: #{bottleneck_forward_nchw.1} parent=11 // pred_check
        %p201 = pneg %p92
      $region18: #{bottleneck_forward_nchw.1} parent=11 // pred_check_branch
        %203 = sbr.rel (%p201) target = $region20
      $region19: #{bottleneck_forward_nchw.1} parent=11 // pred_region
        _
      $region20: #{bottleneck_forward_nchw.1} parent=11 // pred_fallthru
        _
      // Predicated region
      $region21: #{bottleneck_forward_nchw.1} parent=11 // pred_check
        %p204 = pneg %p113
      $region22: #{bottleneck_forward_nchw.1} parent=11 // pred_check_branch
        %206 = sbr.rel (%p204) target = $region24
      $region23: #{bottleneck_forward_nchw.1} parent=11 // pred_region
        _
      $region24: #{bottleneck_forward_nchw.1} parent=11 // pred_fallthru
        _
      // Predicated region
      $region25: #{bottleneck_forward_nchw.1} parent=11 // pred_check
        %p207 = pneg %p134
      $region26: #{bottleneck_forward_nchw.1} parent=11 // pred_check_branch
        %209 = sbr.rel (%p207) target = $region28
      $region27: #{bottleneck_forward_nchw.1} parent=11 // pred_region
        _
      $region28: #{bottleneck_forward_nchw.1} parent=11 // pred_fallthru
        _
      // Predicated region
      $region29: #{bottleneck_forward_nchw.1} parent=11 // pred_check
        %p210 = pneg %p155
      $region30: #{bottleneck_forward_nchw.1} parent=11 // pred_check_branch
        %212 = sbr.rel (%p210) target = $region32
      $region31: #{bottleneck_forward_nchw.1} parent=11 // pred_region
        _
      $region32: #{bottleneck_forward_nchw.1} parent=11 // pred_fallthru
        _
    $region12: #{bottleneck_forward_nchw.1} parent=5 // pred_fallthru
      _
    %p213 = scmp.lt.s32.totalorder %s12, 4
    // Predicated region
    $region33: #{bottleneck_forward_nchw.1} parent=5 // pred_check
      %p214 = pneg %p213
    $region34: #{bottleneck_forward_nchw.1} parent=5 // pred_check_branch
      %216 = sbr.rel (%p214) target = $region36
    $region35: #{bottleneck_forward_nchw.1} parent=5 // pred_region
      // Predicated region
      $region37: #{bottleneck_forward_nchw.1} parent=35 // pred_check
        %p217 = pneg %p44
      $region38: #{bottleneck_forward_nchw.1} parent=35 // pred_check_branch
        %219 = sbr.rel (%p217) target = $region40
      $region39: #{bottleneck_forward_nchw.1} parent=35 // pred_region
        %p220 = scmp.lt.s32.totalorder %s19, 1
        %s221 = scalar_select %p220, %s19, 1
        %s222 = smul.addr %s221, 32
        %s223 = smul.addr %s222, 4
        %s224 = scalar_lea.vmem %s0, %s223
      $region40: #{bottleneck_forward_nchw.1} parent=35 // pred_fallthru
        _
    $region36: #{bottleneck_forward_nchw.1} parent=5 // pred_fallthru
      _
    %p225 = scmp.le.s32.totalorder 1, %s12
    %p226 = scmp.lt.s32.totalorder %s12, 5
    %p227 = pnand %p225, %p226
    %p228 = pneg %p227
    // Predicated region
    $region41: #{bottleneck_forward_nchw.1} parent=5 // pred_check
      _
    $region42: #{bottleneck_forward_nchw.1} parent=5 // pred_check_branch
      %230 = sbr.rel (%p227) target = $region44
    $region43: #{bottleneck_forward_nchw.1} parent=5 // pred_region
      %s231 = ssub.s32 %s12, 1
      %p232 = scmp.lt.s32.totalorder %s21, 1
      %s233 = scalar_select %p232, %s21, 1
      %s234 = smul.addr %s233, 32
      %s235 = smul.addr %s234, 4
      %s236 = scalar_lea.vmem %s0, %s235
      %p237 = pneg %p50
      %p238 = pneg %p47
      %p239 = pneg %p71
      %p240 = pneg %p68
      %p241 = pneg %p92
      %p242 = pneg %p89
      %p243 = pneg %p113
      %p244 = pneg %p110
      %p245 = pneg %p134
      %p246 = pneg %p131
      %p247 = pneg %p155
      %p248 = pneg %p152
      %p249 = pneg %p183
      %p250 = pneg %p180
      %s251 = smul.u32 8, %s22
      %p252 = scmp.lt.s32.totalorder %s21, 1
      %s253 = scalar_select %p252, %s21, 1
      %p254 = scmp.lt.s32.totalorder %s251, 15
      %s255 = scalar_select %p254, %s251, 15
      %s256 = smul.addr %s255, 2
      %s257 = smul.addr %s253, 32
      %s258 = sadd.s32 %s256, %s257
      %s259 = smul.addr %s258, 4
      %s260 = scalar_lea.vmem %s6, %s259
      %p261 = scmp.lt.s32.totalorder %s21, 1
      %s262 = scalar_select %p261, %s21, 1
      %s263 = smul.addr %s262, 32
      %s264 = smul.addr %s263, 4
      %s265 = scalar_lea.vmem %s0, %s264
      %s266 = smul.u32 8, %s22
      %p267 = scmp.lt.s32.totalorder %s21, 1
      %s268 = scalar_select %p267, %s21, 1
      %p269 = scmp.lt.s32.totalorder %s266, 15
      %s270 = scalar_select %p269, %s266, 15
      %s271 = smul.addr %s270, 2
      %s272 = smul.addr %s268, 32
      %s273 = sadd.s32 %s271, %s272
      %s274 = smul.addr %s273, 4
      %s275 = scalar_lea.vmem %s6, %s274
      %s276 = smul.u32 8, %s22
      %s278 = smul.u32 %s22, 8
      %s279 = smul.u32 %s278, 2
      %s280 = smul.addr %s279, 4
      %s281 = scalar_lea.vmem %s265, %s280
      %v282 = vld [vmem:[%s281] sm:$0xf]
      %v283 = vld [vmem:[%s281 + $0x4] sm:$0xf]
      %v284 = vld [vmem:[%s281 + $0x8] sm:$0xf]
      %v285 = vld [vmem:[%s281 + $0xc] sm:$0xf]
      %v286 = vld [vmem:[%s281 + $0x10] sm:$0xf]
      %v287 = vld [vmem:[%s281 + $0x14] sm:$0xf]
      %v288 = vld [vmem:[%s281 + $0x18] sm:$0xf]
      %v289 = vld [vmem:[%s281 + $0x1c] sm:$0xf]
      %v290 = vld [vmem:[%s281 + $0x20] sm:$0xf]
      %v291 = vld [vmem:[%s281 + $0x24] sm:$0xf]
      %v292 = vld [vmem:[%s281 + $0x28] sm:$0xf]
      %v293 = vld [vmem:[%s281 + $0x2c] sm:$0xf]
      %v294 = vld [vmem:[%s281 + $0x30] sm:$0xf]
      %v295 = vld [vmem:[%s281 + $0x34] sm:$0xf]
      %v296 = vld [vmem:[%s281 + $0x38] sm:$0xf]
      %v297 = vld [vmem:[%s281 + $0x3c] sm:$0xf]
      %v298 = vunpack.c.l.bf16 %v282
      %v299 = vunpack.c.l.bf16 %v283
      %v300 = vunpack.c.l.bf16 %v284
      %v301 = vunpack.c.l.bf16 %v285
      %v302 = vunpack.c.l.bf16 %v286
      %v303 = vunpack.c.l.bf16 %v287
      %v304 = vunpack.c.l.bf16 %v288
      %v305 = vunpack.c.l.bf16 %v289
      %v306 = vunpack.c.l.bf16 %v290
      %v307 = vunpack.c.l.bf16 %v291
      %v308 = vunpack.c.l.bf16 %v292
      %v309 = vunpack.c.l.bf16 %v293
      %v310 = vunpack.c.l.bf16 %v294
      %v311 = vunpack.c.l.bf16 %v295
      %v312 = vunpack.c.l.bf16 %v296
      %v313 = vunpack.c.l.bf16 %v297
      %v314 = vld [vmem:[%s1] sm:$0x1]
      %v316 = vperm.slane %v314, 0
      %v318 = vmul.f32 %v298, %v316
      %v319 = vmul.f32 %v299, %v316
      %v320 = vmul.f32 %v300, %v316
      %v321 = vmul.f32 %v301, %v316
      %v322 = vmul.f32 %v302, %v316
      %v323 = vmul.f32 %v303, %v316
      %v324 = vmul.f32 %v304, %v316
      %v325 = vmul.f32 %v305, %v316
      %v326 = vmul.f32 %v306, %v316
      %v327 = vmul.f32 %v307, %v316
      %v328 = vmul.f32 %v308, %v316
      %v329 = vmul.f32 %v309, %v316
      %v330 = vmul.f32 %v310, %v316
      %v331 = vmul.f32 %v311, %v316
      %v332 = vmul.f32 %v312, %v316
      %v333 = vmul.f32 %v313, %v316
      %v334 = vld [vmem:[%s2] sm:$0x1]
      %v336 = vperm.slane %v334, 0
      %v338 = vadd.f32 %v318, %v336
      %v339 = vadd.f32 %v319, %v336
      %v340 = vadd.f32 %v320, %v336
      %v341 = vadd.f32 %v321, %v336
      %v342 = vadd.f32 %v322, %v336
      %v343 = vadd.f32 %v323, %v336
      %v344 = vadd.f32 %v324, %v336
      %v345 = vadd.f32 %v325, %v336
      %v346 = vadd.f32 %v326, %v336
      %v347 = vadd.f32 %v327, %v336
      %v348 = vadd.f32 %v328, %v336
      %v349 = vadd.f32 %v329, %v336
      %v350 = vadd.f32 %v330, %v336
      %v351 = vadd.f32 %v331, %v336
      %v352 = vadd.f32 %v332, %v336
      %v353 = vadd.f32 %v333, %v336
      %v354 = vmax.f32 %v338, 0.0
      %v355 = vmax.f32 %v339, 0.0
      %v356 = vmax.f32 %v340, 0.0
      %v357 = vmax.f32 %v341, 0.0
      %v358 = vmax.f32 %v342, 0.0
      %v359 = vmax.f32 %v343, 0.0
      %v360 = vmax.f32 %v344, 0.0
      %v361 = vmax.f32 %v345, 0.0
      %v362 = vmax.f32 %v346, 0.0
      %v363 = vmax.f32 %v347, 0.0
      %v364 = vmax.f32 %v348, 0.0
      %v365 = vmax.f32 %v349, 0.0
      %v366 = vmax.f32 %v350, 0.0
      %v367 = vmax.f32 %v351, 0.0
      %v368 = vmax.f32 %v352, 0.0
      %v369 = vmax.f32 %v353, 0.0
      %v370 = vpack.c.bf16 %v355, %v354
      %v371 = vpack.c.bf16 %v357, %v356
      %v372 = vpack.c.bf16 %v359, %v358
      %v373 = vpack.c.bf16 %v361, %v360
      %v374 = vpack.c.bf16 %v363, %v362
      %v375 = vpack.c.bf16 %v365, %v364
      %v376 = vpack.c.bf16 %v367, %v366
      %v377 = vpack.c.bf16 %v369, %v368
      %v378 = vld [vmem:[%s3] sm:$0xf]
      %v379 = vld [vmem:[%s3 + $0x4] sm:$0xf]
      %v380 = vld [vmem:[%s3 + $0x8] sm:$0xf]
      %v381 = vld [vmem:[%s3 + $0xc] sm:$0xf]
      %v382 = vld [vmem:[%s3 + $0x10] sm:$0xf]
      %v383 = vld [vmem:[%s3 + $0x14] sm:$0xf]
      %v384 = vld [vmem:[%s3 + $0x18] sm:$0xf]
      %v385 = vld [vmem:[%s3 + $0x1c] sm:$0xf]
      %v386 = vld [vmem:[%s3 + $0x20] sm:$0xf]
      %v387 = vld [vmem:[%s3 + $0x24] sm:$0xf]
      %v388 = vld [vmem:[%s3 + $0x28] sm:$0xf]
      %v389 = vld [vmem:[%s3 + $0x2c] sm:$0xf]
      %v390 = vld [vmem:[%s3 + $0x30] sm:$0xf]
      %v391 = vld [vmem:[%s3 + $0x34] sm:$0xf]
      %v392 = vld [vmem:[%s3 + $0x38] sm:$0xf]
      %v393 = vld [vmem:[%s3 + $0x3c] sm:$0xf]
      %v394 = vld [vmem:[%s4] sm:$0x1]
      %v396 = vperm.slane %v394, 0
      %v414 = vunpack.c.l.b16 %v378
      %v415 = vunpack.c.l.b16 %v379
      %v416 = vunpack.c.l.b16 %v380
      %v417 = vunpack.c.l.b16 %v381
      %v418 = vunpack.c.l.b16 %v382
      %v419 = vunpack.c.l.b16 %v383
      %v420 = vunpack.c.l.b16 %v384
      %v421 = vunpack.c.l.b16 %v385
      %v422 = vunpack.c.l.b16 %v386
      %v423 = vunpack.c.l.b16 %v387
      %v424 = vunpack.c.l.b16 %v388
      %v425 = vunpack.c.l.b16 %v389
      %v426 = vunpack.c.l.b16 %v390
      %v427 = vunpack.c.l.b16 %v391
      %v428 = vunpack.c.l.b16 %v392
      %v429 = vunpack.c.l.b16 %v393
      %v430 = vpack.c.b16 %v415, %v414
      %v431 = vpack.c.b16 %v417, %v416
      %v432 = vpack.c.b16 %v419, %v418
      %v433 = vpack.c.b16 %v421, %v420
      %v434 = vpack.c.b16 %v423, %v422
      %v435 = vpack.c.b16 %v425, %v424
      %v436 = vpack.c.b16 %v427, %v426
      %v437 = vpack.c.b16 %v429, %v428
      %446 = vmatpush.bf16.msra.mxu0 %v437
      %447 = vmatpush.bf16.msra.mxu0 %v436
      %448 = vmatpush.bf16.msra.mxu0 %v435
      %449 = vmatpush.bf16.msra.mxu0 %v434
      %450 = vmatpush.bf16.msra.mxu0 %v433
      %451 = vmatpush.bf16.msra.mxu0 %v432
      %452 = vmatpush.bf16.msra.mxu0 %v431
      %453 = vmatpush.bf16.msra.mxu0 %v430
      %454 = vmatmul.bf16.gmra.mxu0 %v370
      %v455 = vpop.f32.mrf.mxu0
      %v456 = vadd.f32 %v396, %v455
      %v457 = vpop.f32.mrf.mxu0
      %v458 = vadd.f32 %v396, %v457
      %459 = vmatmul.bf16.gmra.mxu0 %v371
      %v460 = vpop.f32.mrf.mxu0
      %v461 = vadd.f32 %v396, %v460
      %v462 = vpop.f32.mrf.mxu0
      %v463 = vadd.f32 %v396, %v462
      %464 = vmatmul.bf16.gmra.mxu0 %v372
      %v465 = vpop.f32.mrf.mxu0
      %v466 = vadd.f32 %v396, %v465
      %v467 = vpop.f32.mrf.mxu0
      %v468 = vadd.f32 %v396, %v467
      %469 = vmatmul.bf16.gmra.mxu0 %v373
      %v470 = vpop.f32.mrf.mxu0
      %v471 = vadd.f32 %v396, %v470
      %v472 = vpop.f32.mrf.mxu0
      %v473 = vadd.f32 %v396, %v472
      %474 = vmatmul.bf16.gmra.mxu0 %v374
      %v475 = vpop.f32.mrf.mxu0
      %v476 = vadd.f32 %v396, %v475
      %v477 = vpop.f32.mrf.mxu0
      %v478 = vadd.f32 %v396, %v477
      %479 = vmatmul.bf16.gmra.mxu0 %v375
      %v480 = vpop.f32.mrf.mxu0
      %v481 = vadd.f32 %v396, %v480
      %v482 = vpop.f32.mrf.mxu0
      %v483 = vadd.f32 %v396, %v482
      %484 = vmatmul.bf16.gmra.mxu0 %v376
      %v485 = vpop.f32.mrf.mxu0
      %v486 = vadd.f32 %v396, %v485
      %v487 = vpop.f32.mrf.mxu0
      %v488 = vadd.f32 %v396, %v487
      %489 = vmatmul.bf16.gmra.mxu0 %v377
      %v490 = vpop.f32.mrf.mxu0
      %v491 = vadd.f32 %v396, %v490
      %v492 = vpop.f32.mrf.mxu0
      %v493 = vadd.f32 %v396, %v492
      %494 = vdwg.mxu0
      %v495 = vmax.f32 %v456, 0.0
      %v496 = vmax.f32 %v458, 0.0
      %v497 = vmax.f32 %v461, 0.0
      %v498 = vmax.f32 %v463, 0.0
      %v499 = vmax.f32 %v466, 0.0
      %v500 = vmax.f32 %v468, 0.0
      %v501 = vmax.f32 %v471, 0.0
      %v502 = vmax.f32 %v473, 0.0
      %v503 = vmax.f32 %v476, 0.0
      %v504 = vmax.f32 %v478, 0.0
      %v505 = vmax.f32 %v481, 0.0
      %v506 = vmax.f32 %v483, 0.0
      %v507 = vmax.f32 %v486, 0.0
      %v508 = vmax.f32 %v488, 0.0
      %v509 = vmax.f32 %v491, 0.0
      %v510 = vmax.f32 %v493, 0.0
      %v511 = vpack.c.bf16 %v495, %v495
      %v512 = vpack.c.bf16 %v496, %v496
      %v513 = vpack.c.bf16 %v497, %v497
      %v514 = vpack.c.bf16 %v498, %v498
      %v515 = vpack.c.bf16 %v499, %v499
      %v516 = vpack.c.bf16 %v500, %v500
      %v517 = vpack.c.bf16 %v501, %v501
      %v518 = vpack.c.bf16 %v502, %v502
      %v519 = vpack.c.bf16 %v503, %v503
      %v520 = vpack.c.bf16 %v504, %v504
      %v521 = vpack.c.bf16 %v505, %v505
      %v522 = vpack.c.bf16 %v506, %v506
      %v523 = vpack.c.bf16 %v507, %v507
      %v524 = vpack.c.bf16 %v508, %v508
      %v525 = vpack.c.bf16 %v509, %v509
      %v526 = vpack.c.bf16 %v510, %v510
      %vm527 = vsmask.f32 256
      %vm528 = vsmask.f32 4368
      %vm529 = vmor %vm527, %vm528
      %v531 = vshrl.u32 %v511, 16
      %v533 = vrot.slane %v531, 7
      %v534 = vshll.u32 %v511, 16
      %v536 = vor.u32 %v533, %v534
      %v537 = vrot.slane %v533, 4
      %v539 = vshrl.u32 %v512, 16
      %v541 = vrot.slane %v539, 7
      %v542 = vshll.u32 %v512, 16
      %v544 = vor.u32 %v541, %v542
      %v545 = vsel %vm529, %v537, %v544
      %v546 = vrot.slane %v541, 4
      %v548 = vshrl.u32 %v513, 16
      %v550 = vrot.slane %v548, 7
      %v551 = vshll.u32 %v513, 16
      %v553 = vor.u32 %v550, %v551
      %v554 = vrot.slane %v550, 4
      %v556 = vshrl.u32 %v514, 16
      %v558 = vrot.slane %v556, 7
      %v559 = vshll.u32 %v514, 16
      %v561 = vor.u32 %v558, %v559
      %v562 = vsel %vm529, %v554, %v561
      %v563 = vrot.slane %v558, 4
      %v565 = vshrl.u32 %v515, 16
      %v567 = vrot.slane %v565, 7
      %v568 = vshll.u32 %v515, 16
      %v570 = vor.u32 %v567, %v568
      %v571 = vrot.slane %v567, 4
      %v573 = vshrl.u32 %v516, 16
      %v575 = vrot.slane %v573, 7
      %v576 = vshll.u32 %v516, 16
      %v578 = vor.u32 %v575, %v576
      %v579 = vsel %vm529, %v571, %v578
      %v580 = vrot.slane %v575, 4
      %v582 = vshrl.u32 %v517, 16
      %v584 = vrot.slane %v582, 7
      %v585 = vshll.u32 %v517, 16
      %v587 = vor.u32 %v584, %v585
      %v588 = vrot.slane %v584, 4
      %v590 = vshrl.u32 %v518, 16
      %v592 = vrot.slane %v590, 7
      %v593 = vshll.u32 %v518, 16
      %v595 = vor.u32 %v592, %v593
      %v596 = vsel %vm529, %v588, %v595
      %v597 = vrot.slane %v592, 4
      %v599 = vshrl.u32 %v519, 16
      %v601 = vrot.slane %v599, 7
      %v602 = vshll.u32 %v519, 16
      %v604 = vor.u32 %v601, %v602
      %v605 = vrot.slane %v601, 4
      %v607 = vshrl.u32 %v520, 16
      %v609 = vrot.slane %v607, 7
      %v610 = vshll.u32 %v520, 16
      %v612 = vor.u32 %v609, %v610
      %v613 = vsel %vm529, %v605, %v612
      %v614 = vrot.slane %v609, 4
      %v616 = vshrl.u32 %v521, 16
      %v618 = vrot.slane %v616, 7
      %v619 = vshll.u32 %v521, 16
      %v621 = vor.u32 %v618, %v619
      %v622 = vrot.slane %v618, 4
      %v624 = vshrl.u32 %v522, 16
      %v626 = vrot.slane %v624, 7
      %v627 = vshll.u32 %v522, 16
      %v629 = vor.u32 %v626, %v627
      %v630 = vsel %vm529, %v622, %v629
      %v631 = vrot.slane %v626, 4
      %v633 = vshrl.u32 %v523, 16
      %v635 = vrot.slane %v633, 7
      %v636 = vshll.u32 %v523, 16
      %v638 = vor.u32 %v635, %v636
      %v639 = vrot.slane %v635, 4
      %v641 = vshrl.u32 %v524, 16
      %v643 = vrot.slane %v641, 7
      %v644 = vshll.u32 %v524, 16
      %v646 = vor.u32 %v643, %v644
      %v647 = vsel %vm529, %v639, %v646
      %v648 = vrot.slane %v643, 4
      %v650 = vshrl.u32 %v525, 16
      %v652 = vrot.slane %v650, 7
      %v653 = vshll.u32 %v525, 16
      %v655 = vor.u32 %v652, %v653
      %v656 = vrot.slane %v652, 4
      %v658 = vshrl.u32 %v526, 16
      %v660 = vrot.slane %v658, 7
      %v661 = vshll.u32 %v526, 16
      %v663 = vor.u32 %v660, %v661
      %v664 = vsel %vm529, %v656, %v663
      %v665 = vrot.slane %v660, 4
      %s690 = scalar_lea.vmem [#allocation2], 12
      %vm691 = vcmask 1043456
      %vm692 = vsmask.f32 7938
      %vm693 = vmand %vm691, %vm692
      %v694 = vld [vmem:[%s690] sm:$0xf]
      %v695 = vsel %vm693, %v536, %v694
      %696 = vst [vmem:[%s690] sm:$0xf] %v695
      %697 = vst [vmem:[%s690 + $0x4] sm:$0xf] %v545
      %vm698 = vcmask 1040384
      %vm699 = vmand %vm698, %vm527
      %v700 = vld [vmem:[%s690 + $0x8] sm:$0x1]
      %v701 = vsel %vm699, %v546, %v700
      %702 = vst [vmem:[%s690 + $0x8] sm:$0x1] %v701
      %v703 = vld [vmem:[%s690 + $0xc] sm:$0xf]
      %v704 = vsel %vm693, %v553, %v703
      %705 = vst [vmem:[%s690 + $0xc] sm:$0xf] %v704
      %706 = vst [vmem:[%s690 + $0x10] sm:$0xf] %v562
      %v707 = vld [vmem:[%s690 + $0x14] sm:$0x1]
      %v708 = vsel %vm699, %v563, %v707
      %709 = vst [vmem:[%s690 + $0x14] sm:$0x1] %v708
      %v710 = vld [vmem:[%s690 + $0x18] sm:$0xf]
      %v711 = vsel %vm693, %v570, %v710
      %712 = vst [vmem:[%s690 + $0x18] sm:$0xf] %v711
      %713 = vst [vmem:[%s690 + $0x1c] sm:$0xf] %v579
      %v714 = vld [vmem:[%s690 + $0x20] sm:$0x1]
      %v715 = vsel %vm699, %v580, %v714
      %716 = vst [vmem:[%s690 + $0x20] sm:$0x1] %v715
      %v717 = vld [vmem:[%s690 + $0x24] sm:$0xf]
      %v718 = vsel %vm693, %v587, %v717
      %719 = vst [vmem:[%s690 + $0x24] sm:$0xf] %v718
      %720 = vst [vmem:[%s690 + $0x28] sm:$0xf] %v596
      %v721 = vld [vmem:[%s690 + $0x2c] sm:$0x1]
      %v722 = vsel %vm699, %v597, %v721
      %723 = vst [vmem:[%s690 + $0x2c] sm:$0x1] %v722
      %v724 = vld [vmem:[%s690 + $0x30] sm:$0xf]
      %v725 = vsel %vm693, %v604, %v724
      %726 = vst [vmem:[%s690 + $0x30] sm:$0xf] %v725
      %727 = vst [vmem:[%s690 + $0x34] sm:$0xf] %v613
      %v728 = vld [vmem:[%s690 + $0x38] sm:$0x1]
      %v729 = vsel %vm699, %v614, %v728
      %730 = vst [vmem:[%s690 + $0x38] sm:$0x1] %v729
      %v731 = vld [vmem:[%s690 + $0x3c] sm:$0xf]
      %v732 = vsel %vm693, %v621, %v731
      %733 = vst [vmem:[%s690 + $0x3c] sm:$0xf] %v732
      %734 = vst [vmem:[%s690 + $0x40] sm:$0xf] %v630
      %v735 = vld [vmem:[%s690 + $0x44] sm:$0x1]
      %v736 = vsel %vm699, %v631, %v735
      %737 = vst [vmem:[%s690 + $0x44] sm:$0x1] %v736
      %v738 = vld [vmem:[%s690 + $0x48] sm:$0xf]
      %v739 = vsel %vm693, %v638, %v738
      %740 = vst [vmem:[%s690 + $0x48] sm:$0xf] %v739
      %741 = vst [vmem:[%s690 + $0x4c] sm:$0xf] %v647
      %v742 = vld [vmem:[%s690 + $0x50] sm:$0x1]
      %v743 = vsel %vm699, %v648, %v742
      %744 = vst [vmem:[%s690 + $0x50] sm:$0x1] %v743
      %v745 = vld [vmem:[%s690 + $0x54] sm:$0xf]
      %v746 = vsel %vm693, %v655, %v745
      %747 = vst [vmem:[%s690 + $0x54] sm:$0xf] %v746
      %748 = vst [vmem:[%s690 + $0x58] sm:$0xf] %v664
      %v749 = vld [vmem:[%s690 + $0x5c] sm:$0x1]
      %v750 = vsel %vm699, %v665, %v749
      %751 = vst [vmem:[%s690 + $0x5c] sm:$0x1] %v750
      %v752 = vld [vmem:[#allocation2] sm:$0x1]
      %v753 = vsel %vm699, 0, %v752
      %754 = vst [vmem:[#allocation2] sm:$0x1] %v753
      %v755 = vld [vmem:[#allocation2 + $0xc] sm:$0x1]
      %v756 = vsel %vm699, 0, %v755
      %757 = vst [vmem:[#allocation2 + $0xc] sm:$0x1] %v756
      %v758 = vld [vmem:[#allocation2 + $0x18] sm:$0x1]
      %v759 = vsel %vm699, 0, %v758
      %760 = vst [vmem:[#allocation2 + $0x18] sm:$0x1] %v759
      %v761 = vld [vmem:[#allocation2 + $0x24] sm:$0x1]
      %v762 = vsel %vm699, 0, %v761
      %763 = vst [vmem:[#allocation2 + $0x24] sm:$0x1] %v762
      %v764 = vld [vmem:[#allocation2 + $0x30] sm:$0x1]
      %v765 = vsel %vm699, 0, %v764
      %766 = vst [vmem:[#allocation2 + $0x30] sm:$0x1] %v765
      %v767 = vld [vmem:[#allocation2 + $0x3c] sm:$0x1]
      %v768 = vsel %vm699, 0, %v767
      %769 = vst [vmem:[#allocation2 + $0x3c] sm:$0x1] %v768
      %v770 = vld [vmem:[#allocation2 + $0x48] sm:$0x1]
      %v771 = vsel %vm699, 0, %v770
      %772 = vst [vmem:[#allocation2 + $0x48] sm:$0x1] %v771
      %v773 = vld [vmem:[#allocation2 + $0x54] sm:$0x1]
      %v774 = vsel %vm699, 0, %v773
      %775 = vst [vmem:[#allocation2 + $0x54] sm:$0x1] %v774
      %v776 = vld [vmem:[#allocation2 + $0x60] sm:$0x1]
      %v777 = vsel %vm699, 0, %v776
      %778 = vst [vmem:[#allocation2 + $0x60] sm:$0x1] %v777
      %v779 = vld [vmem:[#allocation2 + $0x6c] sm:$0x1]
      %v780 = vsel %vm699, 0, %v779
      %781 = vst [vmem:[#allocation2 + $0x6c] sm:$0x1] %v780
      %vm782 = vmand %vm698, %vm692
      %v783 = vld [vmem:[#allocation2 + $0x8] sm:$0x1]
      %v784 = vsel %vm782, 0, %v783
      %785 = vst [vmem:[#allocation2 + $0x8] sm:$0x1] %v784
      %v786 = vld [vmem:[#allocation2 + $0x14] sm:$0x1]
      %v787 = vsel %vm782, 0, %v786
      %788 = vst [vmem:[#allocation2 + $0x14] sm:$0x1] %v787
      %v789 = vld [vmem:[#allocation2 + $0x20] sm:$0x1]
      %v790 = vsel %vm782, 0, %v789
      %791 = vst [vmem:[#allocation2 + $0x20] sm:$0x1] %v790
      %v792 = vld [vmem:[#allocation2 + $0x2c] sm:$0x1]
      %v793 = vsel %vm782, 0, %v792
      %794 = vst [vmem:[#allocation2 + $0x2c] sm:$0x1] %v793
      %v795 = vld [vmem:[#allocation2 + $0x38] sm:$0x1]
      %v796 = vsel %vm782, 0, %v795
      %797 = vst [vmem:[#allocation2 + $0x38] sm:$0x1] %v796
      %v798 = vld [vmem:[#allocation2 + $0x44] sm:$0x1]
      %v799 = vsel %vm782, 0, %v798
      %800 = vst [vmem:[#allocation2 + $0x44] sm:$0x1] %v799
      %v801 = vld [vmem:[#allocation2 + $0x50] sm:$0x1]
      %v802 = vsel %vm782, 0, %v801
      %803 = vst [vmem:[#allocation2 + $0x50] sm:$0x1] %v802
      %v804 = vld [vmem:[#allocation2 + $0x5c] sm:$0x1]
      %v805 = vsel %vm782, 0, %v804
      %806 = vst [vmem:[#allocation2 + $0x5c] sm:$0x1] %v805
      %v807 = vld [vmem:[#allocation2 + $0x68] sm:$0x1]
      %v808 = vsel %vm782, 0, %v807
      %809 = vst [vmem:[#allocation2 + $0x68] sm:$0x1] %v808
      %v810 = vld [vmem:[#allocation2 + $0x74] sm:$0x1]
      %v811 = vsel %vm782, 0, %v810
      %812 = vst [vmem:[#allocation2 + $0x74] sm:$0x1] %v811
      %p813 = scmp.eq.s32.totalorder %s22, 0
      // Predicated region
      $region45: #{bottleneck_forward_nchw.1} parent=43 // pred_check
        %p814 = pneg %p813
      $region46: #{bottleneck_forward_nchw.1} parent=43 // pred_check_branch
        %816 = sbr.rel (%p814) target = $region48
      $region47: #{bottleneck_forward_nchw.1} parent=43 // pred_region
        %v817 = vld [vmem:[#allocation2] sm:$0xf]
        %v818 = vsel %vm693, 0, %v817
        %819 = vst [vmem:[#allocation2] sm:$0xf] %v818
        %820 = vst [vmem:[#allocation2 + $0x4] sm:$0xf] 0
        %v821 = vld [vmem:[#allocation2 + $0x8] sm:$0x1]
        %v822 = vsel %vm699, 0, %v821
        %823 = vst [vmem:[#allocation2 + $0x8] sm:$0x1] %v822
      $region48: #{bottleneck_forward_nchw.1} parent=43 // pred_fallthru
        _
      %p824 = scmp.gt.s32.totalorder %s22, 0
      // Predicated region
      $region49: #{bottleneck_forward_nchw.1} parent=43 // pred_check
        %p825 = pneg %p824
      $region50: #{bottleneck_forward_nchw.1} parent=43 // pred_check_branch
        %827 = sbr.rel (%p825) target = $region52
      $region51: #{bottleneck_forward_nchw.1} parent=43 // pred_region
        %s828 = ssub.s32 %s278, 1
        %s829 = smul.u32 %s828, 2
        %s830 = smul.addr %s829, 4
        %s831 = scalar_lea.vmem %s265, %s830
        %v832 = vld [vmem:[%s831] sm:$0xf]
        %v833 = vld [vmem:[%s831 + $0x4] sm:$0xf]
        %v834 = vunpack.c.l.bf16 %v832
        %v835 = vunpack.c.l.bf16 %v833
        %v836 = vld [vmem:[%s1] sm:$0x1]
        %v838 = vperm.slane %v836, 0
        %v840 = vmul.f32 %v834, %v838
        %v841 = vmul.f32 %v835, %v838
        %v842 = vld [vmem:[%s2] sm:$0x1]
        %v844 = vperm.slane %v842, 0
        %v846 = vadd.f32 %v840, %v844
        %v847 = vadd.f32 %v841, %v844
        %v848 = vmax.f32 %v846, 0.0
        %v849 = vmax.f32 %v847, 0.0
        %v850 = vpack.c.bf16 %v849, %v848
        %v851 = vld [vmem:[%s3] sm:$0xf]
        %v852 = vld [vmem:[%s3 + $0x4] sm:$0xf]
        %v853 = vld [vmem:[%s3 + $0x8] sm:$0xf]
        %v854 = vld [vmem:[%s3 + $0xc] sm:$0xf]
        %v855 = vld [vmem:[%s3 + $0x10] sm:$0xf]
        %v856 = vld [vmem:[%s3 + $0x14] sm:$0xf]
        %v857 = vld [vmem:[%s3 + $0x18] sm:$0xf]
        %v858 = vld [vmem:[%s3 + $0x1c] sm:$0xf]
        %v859 = vld [vmem:[%s3 + $0x20] sm:$0xf]
        %v860 = vld [vmem:[%s3 + $0x24] sm:$0xf]
        %v861 = vld [vmem:[%s3 + $0x28] sm:$0xf]
        %v862 = vld [vmem:[%s3 + $0x2c] sm:$0xf]
        %v863 = vld [vmem:[%s3 + $0x30] sm:$0xf]
        %v864 = vld [vmem:[%s3 + $0x34] sm:$0xf]
        %v865 = vld [vmem:[%s3 + $0x38] sm:$0xf]
        %v866 = vld [vmem:[%s3 + $0x3c] sm:$0xf]
        %v867 = vld [vmem:[%s4] sm:$0x1]
        %v869 = vperm.slane %v867, 0
        %v887 = vunpack.c.l.b16 %v851
        %v888 = vunpack.c.l.b16 %v852
        %v889 = vunpack.c.l.b16 %v853
        %v890 = vunpack.c.l.b16 %v854
        %v891 = vunpack.c.l.b16 %v855
        %v892 = vunpack.c.l.b16 %v856
        %v893 = vunpack.c.l.b16 %v857
        %v894 = vunpack.c.l.b16 %v858
        %v895 = vunpack.c.l.b16 %v859
        %v896 = vunpack.c.l.b16 %v860
        %v897 = vunpack.c.l.b16 %v861
        %v898 = vunpack.c.l.b16 %v862
        %v899 = vunpack.c.l.b16 %v863
        %v900 = vunpack.c.l.b16 %v864
        %v901 = vunpack.c.l.b16 %v865
        %v902 = vunpack.c.l.b16 %v866
        %v903 = vpack.c.b16 %v888, %v887
        %v904 = vpack.c.b16 %v890, %v889
        %v905 = vpack.c.b16 %v892, %v891
        %v906 = vpack.c.b16 %v894, %v893
        %v907 = vpack.c.b16 %v896, %v895
        %v908 = vpack.c.b16 %v898, %v897
        %v909 = vpack.c.b16 %v900, %v899
        %v910 = vpack.c.b16 %v902, %v901
        %919 = vmatpush.bf16.msra.mxu0 %v910
        %920 = vmatpush.bf16.msra.mxu0 %v909
        %921 = vmatpush.bf16.msra.mxu0 %v908
        %922 = vmatpush.bf16.msra.mxu0 %v907
        %923 = vmatpush.bf16.msra.mxu0 %v906
        %924 = vmatpush.bf16.msra.mxu0 %v905
        %925 = vmatpush.bf16.msra.mxu0 %v904
        %926 = vmatpush.bf16.msra.mxu0 %v903
        %927 = vmatmul.bf16.gmra.mxu0 %v850
        %v928 = vpop.f32.mrf.mxu0
        %v929 = vadd.f32 %v869, %v928
        %v930 = vpop.f32.mrf.mxu0
        %v931 = vadd.f32 %v869, %v930
        %932 = vdwg.mxu0
        %v933 = vmax.f32 %v929, 0.0
        %v934 = vmax.f32 %v931, 0.0
        %v935 = vpack.c.bf16 %v933, %v933
        %v936 = vpack.c.bf16 %v934, %v934
        %v938 = vshrl.u32 %v935, 16
        %v940 = vrot.slane %v938, 7
        %v941 = vshll.u32 %v935, 16
        %v943 = vor.u32 %v940, %v941
        %v944 = vrot.slane %v940, 4
        %v946 = vshrl.u32 %v936, 16
        %v948 = vrot.slane %v946, 7
        %v949 = vshll.u32 %v936, 16
        %v951 = vor.u32 %v948, %v949
        %v952 = vsel %vm529, %v944, %v951
        %v953 = vrot.slane %v948, 4
        %v957 = vld [vmem:[#allocation2] sm:$0xf]
        %v958 = vsel %vm693, %v943, %v957
        %959 = vst [vmem:[#allocation2] sm:$0xf] %v958
        %960 = vst [vmem:[#allocation2 + $0x4] sm:$0xf] %v952
        %v961 = vld [vmem:[#allocation2 + $0x8] sm:$0x1]
        %v962 = vsel %vm699, %v953, %v961
        %963 = vst [vmem:[#allocation2 + $0x8] sm:$0x1] %v962
      $region52: #{bottleneck_forward_nchw.1} parent=43 // pred_fallthru
        _
      %p964 = scmp.eq.s32.totalorder %s22, 1
      // Predicated region
      $region53: #{bottleneck_forward_nchw.1} parent=43 // pred_check
        %p965 = pneg %p964
      $region54: #{bottleneck_forward_nchw.1} parent=43 // pred_check_branch
        %967 = sbr.rel (%p965) target = $region56
      $region55: #{bottleneck_forward_nchw.1} parent=43 // pred_region
        %s968 = scalar_lea.vmem [#allocation2], 108
        %v969 = vld [vmem:[%s968] sm:$0xf]
        %v970 = vsel %vm693, 0, %v969
        %971 = vst [vmem:[%s968] sm:$0xf] %v970
        %972 = vst [vmem:[%s968 + $0x4] sm:$0xf] 0
        %v973 = vld [vmem:[%s968 + $0x8] sm:$0x1]
        %v974 = vsel %vm699, 0, %v973
        %975 = vst [vmem:[%s968 + $0x8] sm:$0x1] %v974
      $region56: #{bottleneck_forward_nchw.1} parent=43 // pred_fallthru
        _
      %p976 = scmp.lt.s32.totalorder %s22, 1
      // Predicated region
      $region57: #{bottleneck_forward_nchw.1} parent=43 // pred_check
        %p977 = pneg %p976
      $region58: #{bottleneck_forward_nchw.1} parent=43 // pred_check_branch
        %979 = sbr.rel (%p977) target = $region60
      $region59: #{bottleneck_forward_nchw.1} parent=43 // pred_region
        %s980 = sadd.s32 %s278, 8
        %s981 = smul.u32 %s980, 2
        %s982 = smul.addr %s981, 4
        %s983 = scalar_lea.vmem %s265, %s982
        %v984 = vld [vmem:[%s983] sm:$0xf]
        %v985 = vld [vmem:[%s983 + $0x4] sm:$0xf]
        %v986 = vunpack.c.l.bf16 %v984
        %v987 = vunpack.c.l.bf16 %v985
        %v988 = vld [vmem:[%s1] sm:$0x1]
        %v990 = vperm.slane %v988, 0
        %v992 = vmul.f32 %v986, %v990
        %v993 = vmul.f32 %v987, %v990
        %v994 = vld [vmem:[%s2] sm:$0x1]
        %v996 = vperm.slane %v994, 0
        %v998 = vadd.f32 %v992, %v996
        %v999 = vadd.f32 %v993, %v996
        %v1000 = vmax.f32 %v998, 0.0
        %v1001 = vmax.f32 %v999, 0.0
        %v1002 = vpack.c.bf16 %v1001, %v1000
        %v1003 = vld [vmem:[%s3] sm:$0xf]
        %v1004 = vld [vmem:[%s3 + $0x4] sm:$0xf]
        %v1005 = vld [vmem:[%s3 + $0x8] sm:$0xf]
        %v1006 = vld [vmem:[%s3 + $0xc] sm:$0xf]
        %v1007 = vld [vmem:[%s3 + $0x10] sm:$0xf]
        %v1008 = vld [vmem:[%s3 + $0x14] sm:$0xf]
        %v1009 = vld [vmem:[%s3 + $0x18] sm:$0xf]
        %v1010 = vld [vmem:[%s3 + $0x1c] sm:$0xf]
        %v1011 = vld [vmem:[%s3 + $0x20] sm:$0xf]
        %v1012 = vld [vmem:[%s3 + $0x24] sm:$0xf]
        %v1013 = vld [vmem:[%s3 + $0x28] sm:$0xf]
        %v1014 = vld [vmem:[%s3 + $0x2c] sm:$0xf]
        %v1015 = vld [vmem:[%s3 + $0x30] sm:$0xf]
        %v1016 = vld [vmem:[%s3 + $0x34] sm:$0xf]
        %v1017 = vld [vmem:[%s3 + $0x38] sm:$0xf]
        %v1018 = vld [vmem:[%s3 + $0x3c] sm:$0xf]
        %v1019 = vld [vmem:[%s4] sm:$0x1]
        %v1021 = vperm.slane %v1019, 0
        %v1039 = vunpack.c.l.b16 %v1003
        %v1040 = vunpack.c.l.b16 %v1004
        %v1041 = vunpack.c.l.b16 %v1005
        %v1042 = vunpack.c.l.b16 %v1006
        %v1043 = vunpack.c.l.b16 %v1007
        %v1044 = vunpack.c.l.b16 %v1008
        %v1045 = vunpack.c.l.b16 %v1009
        %v1046 = vunpack.c.l.b16 %v1010
        %v1047 = vunpack.c.l.b16 %v1011
        %v1048 = vunpack.c.l.b16 %v1012
        %v1049 = vunpack.c.l.b16 %v1013
        %v1050 = vunpack.c.l.b16 %v1014
        %v1051 = vunpack.c.l.b16 %v1015
        %v1052 = vunpack.c.l.b16 %v1016
        %v1053 = vunpack.c.l.b16 %v1017
        %v1054 = vunpack.c.l.b16 %v1018
        %v1055 = vpack.c.b16 %v1040, %v1039
        %v1056 = vpack.c.b16 %v1042, %v1041
        %v1057 = vpack.c.b16 %v1044, %v1043
        %v1058 = vpack.c.b16 %v1046, %v1045
        %v1059 = vpack.c.b16 %v1048, %v1047
        %v1060 = vpack.c.b16 %v1050, %v1049
        %v1061 = vpack.c.b16 %v1052, %v1051
        %v1062 = vpack.c.b16 %v1054, %v1053
        %1071 = vmatpush.bf16.msra.mxu0 %v1062
        %1072 = vmatpush.bf16.msra.mxu0 %v1061
        %1073 = vmatpush.bf16.msra.mxu0 %v1060
        %1074 = vmatpush.bf16.msra.mxu0 %v1059
        %1075 = vmatpush.bf16.msra.mxu0 %v1058
        %1076 = vmatpush.bf16.msra.mxu0 %v1057
        %1077 = vmatpush.bf16.msra.mxu0 %v1056
        %1078 = vmatpush.bf16.msra.mxu0 %v1055
        %1079 = vmatmul.bf16.gmra.mxu0 %v1002
        %v1080 = vpop.f32.mrf.mxu0
        %v1081 = vadd.f32 %v1021, %v1080
        %v1082 = vpop.f32.mrf.mxu0
        %v1083 = vadd.f32 %v1021, %v1082
        %1084 = vdwg.mxu0
        %v1085 = vmax.f32 %v1081, 0.0
        %v1086 = vmax.f32 %v1083, 0.0
        %v1087 = vpack.c.bf16 %v1085, %v1085
        %v1088 = vpack.c.bf16 %v1086, %v1086
        %v1090 = vshrl.u32 %v1087, 16
        %v1092 = vrot.slane %v1090, 7
        %v1093 = vshll.u32 %v1087, 16
        %v1095 = vor.u32 %v1092, %v1093
        %v1096 = vrot.slane %v1092, 4
        %v1098 = vshrl.u32 %v1088, 16
        %v1100 = vrot.slane %v1098, 7
        %v1101 = vshll.u32 %v1088, 16
        %v1103 = vor.u32 %v1100, %v1101
        %v1104 = vsel %vm529, %v1096, %v1103
        %v1105 = vrot.slane %v1100, 4
        %s1109 = scalar_lea.vmem [#allocation2], 108
        %v1110 = vld [vmem:[%s1109] sm:$0xf]
        %v1111 = vsel %vm693, %v1095, %v1110
        %1112 = vst [vmem:[%s1109] sm:$0xf] %v1111
        %1113 = vst [vmem:[%s1109 + $0x4] sm:$0xf] %v1104
        %v1114 = vld [vmem:[%s1109 + $0x8] sm:$0x1]
        %v1115 = vsel %vm699, %v1105, %v1114
        %1116 = vst [vmem:[%s1109 + $0x8] sm:$0x1] %v1115
      $region60: #{bottleneck_forward_nchw.1} parent=43 // pred_fallthru
        _
      %v1117 = vld [vmem:[#allocation2] sm:$0xf]
      %v1118 = vld [vmem:[#allocation2 + $0x4] sm:$0xf]
      %v1119 = vld [vmem:[#allocation2 + $0xc] sm:$0xf]
      %v1120 = vld [vmem:[#allocation2 + $0x10] sm:$0xf]
      %v1121 = vld [vmem:[#allocation2 + $0x18] sm:$0xf]
      %v1122 = vld [vmem:[#allocation2 + $0x1c] sm:$0xf]
      %v1123 = vld [vmem:[#allocation2 + $0x24] sm:$0xf]
      %v1124 = vld [vmem:[#allocation2 + $0x28] sm:$0xf]
      %v1125 = vld [vmem:[#allocation2 + $0x30] sm:$0xf]
      %v1126 = vld [vmem:[#allocation2 + $0x34] sm:$0xf]
      %v1127 = vld [vmem:[#allocation2 + $0x3c] sm:$0xf]
      %v1128 = vld [vmem:[#allocation2 + $0x40] sm:$0xf]
      %v1129 = vld [vmem:[#allocation2 + $0x48] sm:$0xf]
      %v1130 = vld [vmem:[#allocation2 + $0x4c] sm:$0xf]
      %v1131 = vld [vmem:[#allocation2 + $0x54] sm:$0xf]
      %v1132 = vld [vmem:[#allocation2 + $0x58] sm:$0xf]
      %v1133 = vld [vmem:[%s5] sm:$0xf]
      %v1134 = vld [vmem:[%s5 + $0x4] sm:$0xf]
      %v1135 = vld [vmem:[%s5 + $0x8] sm:$0xf]
      %v1136 = vld [vmem:[%s5 + $0xc] sm:$0xf]
      %v1137 = vld [vmem:[%s5 + $0x10] sm:$0xf]
      %v1138 = vld [vmem:[%s5 + $0x14] sm:$0xf]
      %v1139 = vld [vmem:[%s5 + $0x18] sm:$0xf]
      %v1140 = vld [vmem:[%s5 + $0x1c] sm:$0xf]
      %v1141 = vld [vmem:[%s5 + $0x20] sm:$0xf]
      %v1142 = vld [vmem:[%s5 + $0x24] sm:$0xf]
      %v1143 = vld [vmem:[%s5 + $0x28] sm:$0xf]
      %v1144 = vld [vmem:[%s5 + $0x2c] sm:$0xf]
      %v1145 = vld [vmem:[%s5 + $0x30] sm:$0xf]
      %v1146 = vld [vmem:[%s5 + $0x34] sm:$0xf]
      %v1147 = vld [vmem:[%s5 + $0x38] sm:$0xf]
      %v1148 = vld [vmem:[%s5 + $0x3c] sm:$0xf]
      %v1149 = vld [vmem:[#allocation2 + $0x8] sm:$0x1]
      %v1150 = vld [vmem:[#allocation2 + $0x14] sm:$0x1]
      %v1151 = vld [vmem:[#allocation2 + $0x20] sm:$0x1]
      %v1152 = vld [vmem:[#allocation2 + $0x2c] sm:$0x1]
      %v1153 = vld [vmem:[#allocation2 + $0x38] sm:$0x1]
      %v1154 = vld [vmem:[#allocation2 + $0x44] sm:$0x1]
      %v1155 = vld [vmem:[#allocation2 + $0x50] sm:$0x1]
      %v1156 = vld [vmem:[#allocation2 + $0x5c] sm:$0x1]
      %vm1157 = vsmask.f32 3328
      %vm1158 = vsmask.f32 7440
      %vm1159 = vmor %vm1157, %vm1158
      %v1161 = vshrl.u32 %v1117, 16
      %v1163 = vrot.slane %v1161, 4
      %v1164 = vshll.u32 %v1117, 16
      %v1166 = vrot.slane %v1164, 5
      %v1167 = vor.u32 %v1163, %v1166
      %v1168 = vrot.slane %v1167, 4
      %v1170 = vshll.u32 %v1118, 16
      %v1172 = vrot.slane %v1170, 5
      %v1173 = vsel %vm1159, %v1168, %v1172
      %v1174 = vshrl.u32 %v1118, 16
      %v1176 = vrot.slane %v1174, 4
      %v1177 = vor.u32 %v1176, %v1172
      %v1178 = vrot.slane %v1177, 4
      %v1180 = vshll.u32 %v1149, 16
      %v1182 = vrot.slane %v1180, 5
      %v1183 = vsel %vm1159, %v1178, %v1182
      %v1185 = vshrl.u32 %v1119, 16
      %v1187 = vrot.slane %v1185, 4
      %v1188 = vshll.u32 %v1119, 16
      %v1190 = vrot.slane %v1188, 5
      %v1191 = vor.u32 %v1187, %v1190
      %v1192 = vrot.slane %v1191, 4
      %v1194 = vshll.u32 %v1120, 16
      %v1196 = vrot.slane %v1194, 5
      %v1197 = vsel %vm1159, %v1192, %v1196
      %v1198 = vshrl.u32 %v1120, 16
      %v1200 = vrot.slane %v1198, 4
      %v1201 = vor.u32 %v1200, %v1196
      %v1202 = vrot.slane %v1201, 4
      %v1204 = vshll.u32 %v1150, 16
      %v1206 = vrot.slane %v1204, 5
      %v1207 = vsel %vm1159, %v1202, %v1206
      %v1209 = vshrl.u32 %v1121, 16
      %v1211 = vrot.slane %v1209, 4
      %v1212 = vshll.u32 %v1121, 16
      %v1214 = vrot.slane %v1212, 5
      %v1215 = vor.u32 %v1211, %v1214
      %v1216 = vrot.slane %v1215, 4
      %v1218 = vshll.u32 %v1122, 16
      %v1220 = vrot.slane %v1218, 5
      %v1221 = vsel %vm1159, %v1216, %v1220
      %v1222 = vshrl.u32 %v1122, 16
      %v1224 = vrot.slane %v1222, 4
      %v1225 = vor.u32 %v1224, %v1220
      %v1226 = vrot.slane %v1225, 4
      %v1228 = vshll.u32 %v1151, 16
      %v1230 = vrot.slane %v1228, 5
      %v1231 = vsel %vm1159, %v1226, %v1230
      %v1233 = vshrl.u32 %v1123, 16
      %v1235 = vrot.slane %v1233, 4
      %v1236 = vshll.u32 %v1123, 16
      %v1238 = vrot.slane %v1236, 5
      %v1239 = vor.u32 %v1235, %v1238
      %v1240 = vrot.slane %v1239, 4
      %v1242 = vshll.u32 %v1124, 16
      %v1244 = vrot.slane %v1242, 5
      %v1245 = vsel %vm1159, %v1240, %v1244
      %v1246 = vshrl.u32 %v1124, 16
      %v1248 = vrot.slane %v1246, 4
      %v1249 = vor.u32 %v1248, %v1244
      %v1250 = vrot.slane %v1249, 4
      %v1252 = vshll.u32 %v1152, 16
      %v1254 = vrot.slane %v1252, 5
      %v1255 = vsel %vm1159, %v1250, %v1254
      %v1257 = vshrl.u32 %v1125, 16
      %v1259 = vrot.slane %v1257, 4
      %v1260 = vshll.u32 %v1125, 16
      %v1262 = vrot.slane %v1260, 5
      %v1263 = vor.u32 %v1259, %v1262
      %v1264 = vrot.slane %v1263, 4
      %v1266 = vshll.u32 %v1126, 16
      %v1268 = vrot.slane %v1266, 5
      %v1269 = vsel %vm1159, %v1264, %v1268
      %v1270 = vshrl.u32 %v1126, 16
      %v1272 = vrot.slane %v1270, 4
      %v1273 = vor.u32 %v1272, %v1268
      %v1274 = vrot.slane %v1273, 4
      %v1276 = vshll.u32 %v1153, 16
      %v1278 = vrot.slane %v1276, 5
      %v1279 = vsel %vm1159, %v1274, %v1278
      %v1281 = vshrl.u32 %v1127, 16
      %v1283 = vrot.slane %v1281, 4
      %v1284 = vshll.u32 %v1127, 16
      %v1286 = vrot.slane %v1284, 5
      %v1287 = vor.u32 %v1283, %v1286
      %v1288 = vrot.slane %v1287, 4
      %v1290 = vshll.u32 %v1128, 16
      %v1292 = vrot.slane %v1290, 5
      %v1293 = vsel %vm1159, %v1288, %v1292
      %v1294 = vshrl.u32 %v1128, 16
      %v1296 = vrot.slane %v1294, 4
      %v1297 = vor.u32 %v1296, %v1292
      %v1298 = vrot.slane %v1297, 4
      %v1300 = vshll.u32 %v1154, 16
      %v1302 = vrot.slane %v1300, 5
      %v1303 = vsel %vm1159, %v1298, %v1302
      %v1305 = vshrl.u32 %v1129, 16
      %v1307 = vrot.slane %v1305, 4
      %v1308 = vshll.u32 %v1129, 16
      %v1310 = vrot.slane %v1308, 5
      %v1311 = vor.u32 %v1307, %v1310
      %v1312 = vrot.slane %v1311, 4
      %v1314 = vshll.u32 %v1130, 16
      %v1316 = vrot.slane %v1314, 5
      %v1317 = vsel %vm1159, %v1312, %v1316
      %v1318 = vshrl.u32 %v1130, 16
      %v1320 = vrot.slane %v1318, 4
      %v1321 = vor.u32 %v1320, %v1316
      %v1322 = vrot.slane %v1321, 4
      %v1324 = vshll.u32 %v1155, 16
      %v1326 = vrot.slane %v1324, 5
      %v1327 = vsel %vm1159, %v1322, %v1326
      %v1329 = vshrl.u32 %v1131, 16
      %v1331 = vrot.slane %v1329, 4
      %v1332 = vshll.u32 %v1131, 16
      %v1334 = vrot.slane %v1332, 5
      %v1335 = vor.u32 %v1331, %v1334
      %v1336 = vrot.slane %v1335, 4
      %v1338 = vshll.u32 %v1132, 16
      %v1340 = vrot.slane %v1338, 5
      %v1341 = vsel %vm1159, %v1336, %v1340
      %v1342 = vshrl.u32 %v1132, 16
      %v1344 = vrot.slane %v1342, 4
      %v1345 = vor.u32 %v1344, %v1340
      %v1346 = vrot.slane %v1345, 4
      %v1348 = vshll.u32 %v1156, 16
      %v1350 = vrot.slane %v1348, 5
      %v1351 = vsel %vm1159, %v1346, %v1350
      %s1352 = scalar_lea.vmem %s5, 64
      %v1353 = vld [vmem:[%s1352] sm:$0xf]
      %v1354 = vld [vmem:[%s1352 + $0x4] sm:$0xf]
      %v1355 = vld [vmem:[%s1352 + $0x8] sm:$0xf]
      %v1356 = vld [vmem:[%s1352 + $0xc] sm:$0xf]
      %v1357 = vld [vmem:[%s1352 + $0x10] sm:$0xf]
      %v1358 = vld [vmem:[%s1352 + $0x14] sm:$0xf]
      %v1359 = vld [vmem:[%s1352 + $0x18] sm:$0xf]
      %v1360 = vld [vmem:[%s1352 + $0x1c] sm:$0xf]
      %v1361 = vld [vmem:[%s1352 + $0x20] sm:$0xf]
      %v1362 = vld [vmem:[%s1352 + $0x24] sm:$0xf]
      %v1363 = vld [vmem:[%s1352 + $0x28] sm:$0xf]
      %v1364 = vld [vmem:[%s1352 + $0x2c] sm:$0xf]
      %v1365 = vld [vmem:[%s1352 + $0x30] sm:$0xf]
      %v1366 = vld [vmem:[%s1352 + $0x34] sm:$0xf]
      %v1367 = vld [vmem:[%s1352 + $0x38] sm:$0xf]
      %v1368 = vld [vmem:[%s1352 + $0x3c] sm:$0xf]
      %v1369 = vunpack.c.l.b16 %v1173
      %v1370 = vunpack.c.l.b16 %v1183
      %v1371 = vunpack.c.l.b16 %v1197
      %v1372 = vunpack.c.l.b16 %v1207
      %v1373 = vunpack.c.l.b16 %v1221
      %v1374 = vunpack.c.l.b16 %v1231
      %v1375 = vunpack.c.l.b16 %v1245
      %v1376 = vunpack.c.l.b16 %v1255
      %v1377 = vunpack.c.l.b16 %v1269
      %v1378 = vunpack.c.l.b16 %v1279
      %v1379 = vunpack.c.l.b16 %v1293
      %v1380 = vunpack.c.l.b16 %v1303
      %v1381 = vunpack.c.l.b16 %v1317
      %v1382 = vunpack.c.l.b16 %v1327
      %v1383 = vunpack.c.l.b16 %v1341
      %v1384 = vunpack.c.l.b16 %v1351
      %v1385 = vpack.c.b16 %v1370, %v1369
      %v1386 = vpack.c.b16 %v1372, %v1371
      %v1387 = vpack.c.b16 %v1374, %v1373
      %v1388 = vpack.c.b16 %v1376, %v1375
      %v1389 = vpack.c.b16 %v1378, %v1377
      %v1390 = vpack.c.b16 %v1380, %v1379
      %v1391 = vpack.c.b16 %v1382, %v1381
      %v1392 = vpack.c.b16 %v1384, %v1383
      %v1417 = vunpack.c.l.b16 %v1353
      %v1418 = vunpack.c.l.b16 %v1354
      %v1419 = vunpack.c.l.b16 %v1355
      %v1420 = vunpack.c.l.b16 %v1356
      %v1421 = vunpack.c.l.b16 %v1357
      %v1422 = vunpack.c.l.b16 %v1358
      %v1423 = vunpack.c.l.b16 %v1359
      %v1424 = vunpack.c.l.b16 %v1360
      %v1425 = vunpack.c.l.b16 %v1361
      %v1426 = vunpack.c.l.b16 %v1362
      %v1427 = vunpack.c.l.b16 %v1363
      %v1428 = vunpack.c.l.b16 %v1364
      %v1429 = vunpack.c.l.b16 %v1365
      %v1430 = vunpack.c.l.b16 %v1366
      %v1431 = vunpack.c.l.b16 %v1367
      %v1432 = vunpack.c.l.b16 %v1368
      %v1433 = vpack.c.b16 %v1418, %v1417
      %v1434 = vpack.c.b16 %v1420, %v1419
      %v1435 = vpack.c.b16 %v1422, %v1421
      %v1436 = vpack.c.b16 %v1424, %v1423
      %v1437 = vpack.c.b16 %v1426, %v1425
      %v1438 = vpack.c.b16 %v1428, %v1427
      %v1439 = vpack.c.b16 %v1430, %v1429
      %v1440 = vpack.c.b16 %v1432, %v1431
      %1449 = vmatpush.bf16.msra.mxu0 %v1440
      %1450 = vmatpush.bf16.msra.mxu0 %v1439
      %1451 = vmatpush.bf16.msra.mxu0 %v1438
      %1452 = vmatpush.bf16.msra.mxu0 %v1437
      %1453 = vmatpush.bf16.msra.mxu0 %v1436
      %1454 = vmatpush.bf16.msra.mxu0 %v1435
      %1455 = vmatpush.bf16.msra.mxu0 %v1434
      %1456 = vmatpush.bf16.msra.mxu0 %v1433
      %1457 = vmatmul.bf16.gmra.mxu0 %v1385
      %v1458 = vpop.f32.mrf.mxu0
      %v1459 = vadd.f32 0.0, %v1458
      %v1460 = vpop.f32.mrf.mxu0
      %v1461 = vadd.f32 0.0, %v1460
      %1462 = vmatmul.bf16.gmra.mxu0 %v1386
      %v1463 = vpop.f32.mrf.mxu0
      %v1464 = vadd.f32 0.0, %v1463
      %v1465 = vpop.f32.mrf.mxu0
      %v1466 = vadd.f32 0.0, %v1465
      %1467 = vmatmul.bf16.gmra.mxu0 %v1387
      %v1468 = vpop.f32.mrf.mxu0
      %v1469 = vadd.f32 0.0, %v1468
      %v1470 = vpop.f32.mrf.mxu0
      %v1471 = vadd.f32 0.0, %v1470
      %1472 = vmatmul.bf16.gmra.mxu0 %v1388
      %v1473 = vpop.f32.mrf.mxu0
      %v1474 = vadd.f32 0.0, %v1473
      %v1475 = vpop.f32.mrf.mxu0
      %v1476 = vadd.f32 0.0, %v1475
      %1477 = vmatmul.bf16.gmra.mxu0 %v1389
      %v1478 = vpop.f32.mrf.mxu0
      %v1479 = vadd.f32 0.0, %v1478
      %v1480 = vpop.f32.mrf.mxu0
      %v1481 = vadd.f32 0.0, %v1480
      %1482 = vmatmul.bf16.gmra.mxu0 %v1390
      %v1483 = vpop.f32.mrf.mxu0
      %v1484 = vadd.f32 0.0, %v1483
      %v1485 = vpop.f32.mrf.mxu0
      %v1486 = vadd.f32 0.0, %v1485
      %1487 = vmatmul.bf16.gmra.mxu0 %v1391
      %v1488 = vpop.f32.mrf.mxu0
      %v1489 = vadd.f32 0.0, %v1488
      %v1490 = vpop.f32.mrf.mxu0
      %v1491 = vadd.f32 0.0, %v1490
      %1492 = vmatmul.bf16.gmra.mxu0 %v1392
      %v1493 = vpop.f32.mrf.mxu0
      %v1494 = vadd.f32 0.0, %v1493
      %v1495 = vpop.f32.mrf.mxu0
      %v1496 = vadd.f32 0.0, %v1495
      %1497 = vdwg.mxu0
      %v1514 = vunpack.c.l.b16 %v1117
      %v1515 = vunpack.c.l.b16 %v1118
      %v1516 = vunpack.c.l.b16 %v1119
      %v1517 = vunpack.c.l.b16 %v1120
      %v1518 = vunpack.c.l.b16 %v1121
      %v1519 = vunpack.c.l.b16 %v1122
      %v1520 = vunpack.c.l.b16 %v1123
      %v1521 = vunpack.c.l.b16 %v1124
      %v1522 = vunpack.c.l.b16 %v1125
      %v1523 = vunpack.c.l.b16 %v1126
      %v1524 = vunpack.c.l.b16 %v1127
      %v1525 = vunpack.c.l.b16 %v1128
      %v1526 = vunpack.c.l.b16 %v1129
      %v1527 = vunpack.c.l.b16 %v1130
      %v1528 = vunpack.c.l.b16 %v1131
      %v1529 = vunpack.c.l.b16 %v1132
      %v1530 = vpack.c.b16 %v1515, %v1514
      %v1531 = vpack.c.b16 %v1517, %v1516
      %v1532 = vpack.c.b16 %v1519, %v1518
      %v1533 = vpack.c.b16 %v1521, %v1520
      %v1534 = vpack.c.b16 %v1523, %v1522
      %v1535 = vpack.c.b16 %v1525, %v1524
      %v1536 = vpack.c.b16 %v1527, %v1526
      %v1537 = vpack.c.b16 %v1529, %v1528
      %v1562 = vunpack.c.l.b16 %v1133
      %v1563 = vunpack.c.l.b16 %v1134
      %v1564 = vunpack.c.l.b16 %v1135
      %v1565 = vunpack.c.l.b16 %v1136
      %v1566 = vunpack.c.l.b16 %v1137
      %v1567 = vunpack.c.l.b16 %v1138
      %v1568 = vunpack.c.l.b16 %v1139
      %v1569 = vunpack.c.l.b16 %v1140
      %v1570 = vunpack.c.l.b16 %v1141
      %v1571 = vunpack.c.l.b16 %v1142
      %v1572 = vunpack.c.l.b16 %v1143
      %v1573 = vunpack.c.l.b16 %v1144
      %v1574 = vunpack.c.l.b16 %v1145
      %v1575 = vunpack.c.l.b16 %v1146
      %v1576 = vunpack.c.l.b16 %v1147
      %v1577 = vunpack.c.l.b16 %v1148
      %v1578 = vpack.c.b16 %v1563, %v1562
      %v1579 = vpack.c.b16 %v1565, %v1564
      %v1580 = vpack.c.b16 %v1567, %v1566
      %v1581 = vpack.c.b16 %v1569, %v1568
      %v1582 = vpack.c.b16 %v1571, %v1570
      %v1583 = vpack.c.b16 %v1573, %v1572
      %v1584 = vpack.c.b16 %v1575, %v1574
      %v1585 = vpack.c.b16 %v1577, %v1576
      %1594 = vmatpush.bf16.msra.mxu0 %v1585
      %1595 = vmatpush.bf16.msra.mxu0 %v1584
      %1596 = vmatpush.bf16.msra.mxu0 %v1583
      %1597 = vmatpush.bf16.msra.mxu0 %v1582
      %1598 = vmatpush.bf16.msra.mxu0 %v1581
      %1599 = vmatpush.bf16.msra.mxu0 %v1580
      %1600 = vmatpush.bf16.msra.mxu0 %v1579
      %1601 = vmatpush.bf16.msra.mxu0 %v1578
      %1602 = vmatmul.bf16.gmra.mxu0 %v1530
      %v1603 = vpop.f32.mrf.mxu0
      %v1604 = vadd.f32 %v1459, %v1603
      %v1605 = vpop.f32.mrf.mxu0
      %v1606 = vadd.f32 %v1461, %v1605
      %1607 = vmatmul.bf16.gmra.mxu0 %v1531
      %v1608 = vpop.f32.mrf.mxu0
      %v1609 = vadd.f32 %v1464, %v1608
      %v1610 = vpop.f32.mrf.mxu0
      %v1611 = vadd.f32 %v1466, %v1610
      %1612 = vmatmul.bf16.gmra.mxu0 %v1532
      %v1613 = vpop.f32.mrf.mxu0
      %v1614 = vadd.f32 %v1469, %v1613
      %v1615 = vpop.f32.mrf.mxu0
      %v1616 = vadd.f32 %v1471, %v1615
      %1617 = vmatmul.bf16.gmra.mxu0 %v1533
      %v1618 = vpop.f32.mrf.mxu0
      %v1619 = vadd.f32 %v1474, %v1618
      %v1620 = vpop.f32.mrf.mxu0
      %v1621 = vadd.f32 %v1476, %v1620
      %1622 = vmatmul.bf16.gmra.mxu0 %v1534
      %v1623 = vpop.f32.mrf.mxu0
      %v1624 = vadd.f32 %v1479, %v1623
      %v1625 = vpop.f32.mrf.mxu0
      %v1626 = vadd.f32 %v1481, %v1625
      %1627 = vmatmul.bf16.gmra.mxu0 %v1535
      %v1628 = vpop.f32.mrf.mxu0
      %v1629 = vadd.f32 %v1484, %v1628
      %v1630 = vpop.f32.mrf.mxu0
      %v1631 = vadd.f32 %v1486, %v1630
      %1632 = vmatmul.bf16.gmra.mxu0 %v1536
      %v1633 = vpop.f32.mrf.mxu0
      %v1634 = vadd.f32 %v1489, %v1633
      %v1635 = vpop.f32.mrf.mxu0
      %v1636 = vadd.f32 %v1491, %v1635
      %1637 = vmatmul.bf16.gmra.mxu0 %v1537
      %v1638 = vpop.f32.mrf.mxu0
      %v1639 = vadd.f32 %v1494, %v1638
      %v1640 = vpop.f32.mrf.mxu0
      %v1641 = vadd.f32 %v1496, %v1640
      %1642 = vdwg.mxu0
      %v1643 = vld [vmem:[#allocation2] sm:$0xe]
      %v1644 = vld [vmem:[#allocation2 + $0xc] sm:$0xe]
      %v1645 = vld [vmem:[#allocation2 + $0x18] sm:$0xe]
      %v1646 = vld [vmem:[#allocation2 + $0x24] sm:$0xe]
      %v1647 = vld [vmem:[#allocation2 + $0x30] sm:$0xe]
      %v1648 = vld [vmem:[#allocation2 + $0x3c] sm:$0xe]
      %v1649 = vld [vmem:[#allocation2 + $0x48] sm:$0xe]
      %v1650 = vld [vmem:[#allocation2 + $0x54] sm:$0xe]
      %vm1667 = vcmask 1042432
      %vm1668 = vcmask 1046532
      %vm1669 = vmor %vm1667, %vm1668
      %v1670 = vrot.slane %v1643, 5
      %v1671 = vrot.slane %v1670, 4
      %v1672 = vrot.slane %v1118, 5
      %v1673 = vsel %vm1669, %v1671, %v1672
      %v1674 = vrot.slane %v1672, 4
      %v1675 = vrot.slane %v1149, 5
      %v1676 = vsel %vm1669, %v1674, %v1675
      %v1677 = vrot.slane %v1644, 5
      %v1678 = vrot.slane %v1677, 4
      %v1679 = vrot.slane %v1120, 5
      %v1680 = vsel %vm1669, %v1678, %v1679
      %v1681 = vrot.slane %v1679, 4
      %v1682 = vrot.slane %v1150, 5
      %v1683 = vsel %vm1669, %v1681, %v1682
      %v1684 = vrot.slane %v1645, 5
      %v1685 = vrot.slane %v1684, 4
      %v1686 = vrot.slane %v1122, 5
      %v1687 = vsel %vm1669, %v1685, %v1686
      %v1688 = vrot.slane %v1686, 4
      %v1689 = vrot.slane %v1151, 5
      %v1690 = vsel %vm1669, %v1688, %v1689
      %v1691 = vrot.slane %v1646, 5
      %v1692 = vrot.slane %v1691, 4
      %v1693 = vrot.slane %v1124, 5
      %v1694 = vsel %vm1669, %v1692, %v1693
      %v1695 = vrot.slane %v1693, 4
      %v1696 = vrot.slane %v1152, 5
      %v1697 = vsel %vm1669, %v1695, %v1696
      %v1698 = vrot.slane %v1647, 5
      %v1699 = vrot.slane %v1698, 4
      %v1700 = vrot.slane %v1126, 5
      %v1701 = vsel %vm1669, %v1699, %v1700
      %v1702 = vrot.slane %v1700, 4
      %v1703 = vrot.slane %v1153, 5
      %v1704 = vsel %vm1669, %v1702, %v1703
      %v1705 = vrot.slane %v1648, 5
      %v1706 = vrot.slane %v1705, 4
      %v1707 = vrot.slane %v1128, 5
      %v1708 = vsel %vm1669, %v1706, %v1707
      %v1709 = vrot.slane %v1707, 4
      %v1710 = vrot.slane %v1154, 5
      %v1711 = vsel %vm1669, %v1709, %v1710
      %v1712 = vrot.slane %v1649, 5
      %v1713 = vrot.slane %v1712, 4
      %v1714 = vrot.slane %v1130, 5
      %v1715 = vsel %vm1669, %v1713, %v1714
      %v1716 = vrot.slane %v1714, 4
      %v1717 = vrot.slane %v1155, 5
      %v1718 = vsel %vm1669, %v1716, %v1717
      %v1719 = vrot.slane %v1650, 5
      %v1720 = vrot.slane %v1719, 4
      %v1721 = vrot.slane %v1132, 5
      %v1722 = vsel %vm1669, %v1720, %v1721
      %v1723 = vrot.slane %v1721, 4
      %v1724 = vrot.slane %v1156, 5
      %v1725 = vsel %vm1669, %v1723, %v1724
      %s1726 = scalar_lea.vmem %s5, 128
      %v1727 = vld [vmem:[%s1726] sm:$0xf]
      %v1728 = vld [vmem:[%s1726 + $0x4] sm:$0xf]
      %v1729 = vld [vmem:[%s1726 + $0x8] sm:$0xf]
      %v1730 = vld [vmem:[%s1726 + $0xc] sm:$0xf]
      %v1731 = vld [vmem:[%s1726 + $0x10] sm:$0xf]
      %v1732 = vld [vmem:[%s1726 + $0x14] sm:$0xf]
      %v1733 = vld [vmem:[%s1726 + $0x18] sm:$0xf]
      %v1734 = vld [vmem:[%s1726 + $0x1c] sm:$0xf]
      %v1735 = vld [vmem:[%s1726 + $0x20] sm:$0xf]
      %v1736 = vld [vmem:[%s1726 + $0x24] sm:$0xf]
      %v1737 = vld [vmem:[%s1726 + $0x28] sm:$0xf]
      %v1738 = vld [vmem:[%s1726 + $0x2c] sm:$0xf]
      %v1739 = vld [vmem:[%s1726 + $0x30] sm:$0xf]
      %v1740 = vld [vmem:[%s1726 + $0x34] sm:$0xf]
      %v1741 = vld [vmem:[%s1726 + $0x38] sm:$0xf]
      %v1742 = vld [vmem:[%s1726 + $0x3c] sm:$0xf]
      %v1743 = vunpack.c.l.b16 %v1673
      %v1744 = vunpack.c.l.b16 %v1676
      %v1745 = vunpack.c.l.b16 %v1680
      %v1746 = vunpack.c.l.b16 %v1683
      %v1747 = vunpack.c.l.b16 %v1687
      %v1748 = vunpack.c.l.b16 %v1690
      %v1749 = vunpack.c.l.b16 %v1694
      %v1750 = vunpack.c.l.b16 %v1697
      %v1751 = vunpack.c.l.b16 %v1701
      %v1752 = vunpack.c.l.b16 %v1704
      %v1753 = vunpack.c.l.b16 %v1708
      %v1754 = vunpack.c.l.b16 %v1711
      %v1755 = vunpack.c.l.b16 %v1715
      %v1756 = vunpack.c.l.b16 %v1718
      %v1757 = vunpack.c.l.b16 %v1722
      %v1758 = vunpack.c.l.b16 %v1725
      %v1759 = vpack.c.b16 %v1744, %v1743
      %v1760 = vpack.c.b16 %v1746, %v1745
      %v1761 = vpack.c.b16 %v1748, %v1747
      %v1762 = vpack.c.b16 %v1750, %v1749
      %v1763 = vpack.c.b16 %v1752, %v1751
      %v1764 = vpack.c.b16 %v1754, %v1753
      %v1765 = vpack.c.b16 %v1756, %v1755
      %v1766 = vpack.c.b16 %v1758, %v1757
      %v1791 = vunpack.c.l.b16 %v1727
      %v1792 = vunpack.c.l.b16 %v1728
      %v1793 = vunpack.c.l.b16 %v1729
      %v1794 = vunpack.c.l.b16 %v1730
      %v1795 = vunpack.c.l.b16 %v1731
      %v1796 = vunpack.c.l.b16 %v1732
      %v1797 = vunpack.c.l.b16 %v1733
      %v1798 = vunpack.c.l.b16 %v1734
      %v1799 = vunpack.c.l.b16 %v1735
      %v1800 = vunpack.c.l.b16 %v1736
      %v1801 = vunpack.c.l.b16 %v1737
      %v1802 = vunpack.c.l.b16 %v1738
      %v1803 = vunpack.c.l.b16 %v1739
      %v1804 = vunpack.c.l.b16 %v1740
      %v1805 = vunpack.c.l.b16 %v1741
      %v1806 = vunpack.c.l.b16 %v1742
      %v1807 = vpack.c.b16 %v1792, %v1791
      %v1808 = vpack.c.b16 %v1794, %v1793
      %v1809 = vpack.c.b16 %v1796, %v1795
      %v1810 = vpack.c.b16 %v1798, %v1797
      %v1811 = vpack.c.b16 %v1800, %v1799
      %v1812 = vpack.c.b16 %v1802, %v1801
      %v1813 = vpack.c.b16 %v1804, %v1803
      %v1814 = vpack.c.b16 %v1806, %v1805
      %1823 = vmatpush.bf16.msra.mxu0 %v1814
      %1824 = vmatpush.bf16.msra.mxu0 %v1813
      %1825 = vmatpush.bf16.msra.mxu0 %v1812
      %1826 = vmatpush.bf16.msra.mxu0 %v1811
      %1827 = vmatpush.bf16.msra.mxu0 %v1810
      %1828 = vmatpush.bf16.msra.mxu0 %v1809
      %1829 = vmatpush.bf16.msra.mxu0 %v1808
      %1830 = vmatpush.bf16.msra.mxu0 %v1807
      %1831 = vmatmul.bf16.gmra.mxu0 %v1759
      %v1832 = vpop.f32.mrf.mxu0
      %v1833 = vadd.f32 0.0, %v1832
      %v1834 = vpop.f32.mrf.mxu0
      %v1835 = vadd.f32 0.0, %v1834
      %1836 = vmatmul.bf16.gmra.mxu0 %v1760
      %v1837 = vpop.f32.mrf.mxu0
      %v1838 = vadd.f32 0.0, %v1837
      %v1839 = vpop.f32.mrf.mxu0
      %v1840 = vadd.f32 0.0, %v1839
      %1841 = vmatmul.bf16.gmra.mxu0 %v1761
      %v1842 = vpop.f32.mrf.mxu0
      %v1843 = vadd.f32 0.0, %v1842
      %v1844 = vpop.f32.mrf.mxu0
      %v1845 = vadd.f32 0.0, %v1844
      %1846 = vmatmul.bf16.gmra.mxu0 %v1762
      %v1847 = vpop.f32.mrf.mxu0
      %v1848 = vadd.f32 0.0, %v1847
      %v1849 = vpop.f32.mrf.mxu0
      %v1850 = vadd.f32 0.0, %v1849
      %1851 = vmatmul.bf16.gmra.mxu0 %v1763
      %v1852 = vpop.f32.mrf.mxu0
      %v1853 = vadd.f32 0.0, %v1852
      %v1854 = vpop.f32.mrf.mxu0
      %v1855 = vadd.f32 0.0, %v1854
      %1856 = vmatmul.bf16.gmra.mxu0 %v1764
      %v1857 = vpop.f32.mrf.mxu0
      %v1858 = vadd.f32 0.0, %v1857
      %v1859 = vpop.f32.mrf.mxu0
      %v1860 = vadd.f32 0.0, %v1859
      %1861 = vmatmul.bf16.gmra.mxu0 %v1765
      %v1862 = vpop.f32.mrf.mxu0
      %v1863 = vadd.f32 0.0, %v1862
      %v1864 = vpop.f32.mrf.mxu0
      %v1865 = vadd.f32 0.0, %v1864
      %1866 = vmatmul.bf16.gmra.mxu0 %v1766
      %v1867 = vpop.f32.mrf.mxu0
      %v1868 = vadd.f32 0.0, %v1867
      %v1869 = vpop.f32.mrf.mxu0
      %v1870 = vadd.f32 0.0, %v1869
      %1871 = vdwg.mxu0
      %v1872 = vadd.f32 %v1604, %v1833
      %v1873 = vadd.f32 %v1606, %v1835
      %v1874 = vadd.f32 %v1609, %v1838
      %v1875 = vadd.f32 %v1611, %v1840
      %v1876 = vadd.f32 %v1614, %v1843
      %v1877 = vadd.f32 %v1616, %v1845
      %v1878 = vadd.f32 %v1619, %v1848
      %v1879 = vadd.f32 %v1621, %v1850
      %v1880 = vadd.f32 %v1624, %v1853
      %v1881 = vadd.f32 %v1626, %v1855
      %v1882 = vadd.f32 %v1629, %v1858
      %v1883 = vadd.f32 %v1631, %v1860
      %v1884 = vadd.f32 %v1634, %v1863
      %v1885 = vadd.f32 %v1636, %v1865
      %v1886 = vadd.f32 %v1639, %v1868
      %v1887 = vadd.f32 %v1641, %v1870
      %v1888 = vld [vmem:[%s690] sm:$0xf]
      %v1889 = vld [vmem:[%s690 + $0x4] sm:$0xf]
      %v1890 = vld [vmem:[%s690 + $0xc] sm:$0xf]
      %v1891 = vld [vmem:[%s690 + $0x10] sm:$0xf]
      %v1892 = vld [vmem:[%s690 + $0x18] sm:$0xf]
      %v1893 = vld [vmem:[%s690 + $0x1c] sm:$0xf]
      %v1894 = vld [vmem:[%s690 + $0x24] sm:$0xf]
      %v1895 = vld [vmem:[%s690 + $0x28] sm:$0xf]
      %v1896 = vld [vmem:[%s690 + $0x30] sm:$0xf]
      %v1897 = vld [vmem:[%s690 + $0x34] sm:$0xf]
      %v1898 = vld [vmem:[%s690 + $0x3c] sm:$0xf]
      %v1899 = vld [vmem:[%s690 + $0x40] sm:$0xf]
      %v1900 = vld [vmem:[%s690 + $0x48] sm:$0xf]
      %v1901 = vld [vmem:[%s690 + $0x4c] sm:$0xf]
      %v1902 = vld [vmem:[%s690 + $0x54] sm:$0xf]
      %v1903 = vld [vmem:[%s690 + $0x58] sm:$0xf]
      %s1904 = scalar_lea.vmem %s5, 192
      %v1905 = vld [vmem:[%s1904] sm:$0xf]
      %v1906 = vld [vmem:[%s1904 + $0x4] sm:$0xf]
      %v1907 = vld [vmem:[%s1904 + $0x8] sm:$0xf]
      %v1908 = vld [vmem:[%s1904 + $0xc] sm:$0xf]
      %v1909 = vld [vmem:[%s1904 + $0x10] sm:$0xf]
      %v1910 = vld [vmem:[%s1904 + $0x14] sm:$0xf]
      %v1911 = vld [vmem:[%s1904 + $0x18] sm:$0xf]
      %v1912 = vld [vmem:[%s1904 + $0x1c] sm:$0xf]
      %v1913 = vld [vmem:[%s1904 + $0x20] sm:$0xf]
      %v1914 = vld [vmem:[%s1904 + $0x24] sm:$0xf]
      %v1915 = vld [vmem:[%s1904 + $0x28] sm:$0xf]
      %v1916 = vld [vmem:[%s1904 + $0x2c] sm:$0xf]
      %v1917 = vld [vmem:[%s1904 + $0x30] sm:$0xf]
      %v1918 = vld [vmem:[%s1904 + $0x34] sm:$0xf]
      %v1919 = vld [vmem:[%s1904 + $0x38] sm:$0xf]
      %v1920 = vld [vmem:[%s1904 + $0x3c] sm:$0xf]
      %v1937 = vunpack.c.l.b16 %v1888
      %v1938 = vunpack.c.l.b16 %v1889
      %v1939 = vunpack.c.l.b16 %v1890
      %v1940 = vunpack.c.l.b16 %v1891
      %v1941 = vunpack.c.l.b16 %v1892
      %v1942 = vunpack.c.l.b16 %v1893
      %v1943 = vunpack.c.l.b16 %v1894
      %v1944 = vunpack.c.l.b16 %v1895
      %v1945 = vunpack.c.l.b16 %v1896
      %v1946 = vunpack.c.l.b16 %v1897
      %v1947 = vunpack.c.l.b16 %v1898
      %v1948 = vunpack.c.l.b16 %v1899
      %v1949 = vunpack.c.l.b16 %v1900
      %v1950 = vunpack.c.l.b16 %v1901
      %v1951 = vunpack.c.l.b16 %v1902
      %v1952 = vunpack.c.l.b16 %v1903
      %v1953 = vpack.c.b16 %v1938, %v1937
      %v1954 = vpack.c.b16 %v1940, %v1939
      %v1955 = vpack.c.b16 %v1942, %v1941
      %v1956 = vpack.c.b16 %v1944, %v1943
      %v1957 = vpack.c.b16 %v1946, %v1945
      %v1958 = vpack.c.b16 %v1948, %v1947
      %v1959 = vpack.c.b16 %v1950, %v1949
      %v1960 = vpack.c.b16 %v1952, %v1951
      %v1985 = vunpack.c.l.b16 %v1905
      %v1986 = vunpack.c.l.b16 %v1906
      %v1987 = vunpack.c.l.b16 %v1907
      %v1988 = vunpack.c.l.b16 %v1908
      %v1989 = vunpack.c.l.b16 %v1909
      %v1990 = vunpack.c.l.b16 %v1910
      %v1991 = vunpack.c.l.b16 %v1911
      %v1992 = vunpack.c.l.b16 %v1912
      %v1993 = vunpack.c.l.b16 %v1913
      %v1994 = vunpack.c.l.b16 %v1914
      %v1995 = vunpack.c.l.b16 %v1915
      %v1996 = vunpack.c.l.b16 %v1916
      %v1997 = vunpack.c.l.b16 %v1917
      %v1998 = vunpack.c.l.b16 %v1918
      %v1999 = vunpack.c.l.b16 %v1919
      %v2000 = vunpack.c.l.b16 %v1920
      %v2001 = vpack.c.b16 %v1986, %v1985
      %v2002 = vpack.c.b16 %v1988, %v1987
      %v2003 = vpack.c.b16 %v1990, %v1989
      %v2004 = vpack.c.b16 %v1992, %v1991
      %v2005 = vpack.c.b16 %v1994, %v1993
      %v2006 = vpack.c.b16 %v1996, %v1995
      %v2007 = vpack.c.b16 %v1998, %v1997
      %v2008 = vpack.c.b16 %v2000, %v1999
      %2017 = vmatpush.bf16.msra.mxu0 %v2008
      %2018 = vmatpush.bf16.msra.mxu0 %v2007
      %2019 = vmatpush.bf16.msra.mxu0 %v2006
      %2020 = vmatpush.bf16.msra.mxu0 %v2005
      %2021 = vmatpush.bf16.msra.mxu0 %v2004
      %2022 = vmatpush.bf16.msra.mxu0 %v2003
      %2023 = vmatpush.bf16.msra.mxu0 %v2002
      %2024 = vmatpush.bf16.msra.mxu0 %v2001
      %2025 = vmatmul.bf16.gmra.mxu0 %v1953
      %v2026 = vpop.f32.mrf.mxu0
      %v2027 = vadd.f32 0.0, %v2026
      %v2028 = vpop.f32.mrf.mxu0
      %v2029 = vadd.f32 0.0, %v2028
      %2030 = vmatmul.bf16.gmra.mxu0 %v1954
      %v2031 = vpop.f32.mrf.mxu0
      %v2032 = vadd.f32 0.0, %v2031
      %v2033 = vpop.f32.mrf.mxu0
      %v2034 = vadd.f32 0.0, %v2033
      %2035 = vmatmul.bf16.gmra.mxu0 %v1955
      %v2036 = vpop.f32.mrf.mxu0
      %v2037 = vadd.f32 0.0, %v2036
      %v2038 = vpop.f32.mrf.mxu0
      %v2039 = vadd.f32 0.0, %v2038
      %2040 = vmatmul.bf16.gmra.mxu0 %v1956
      %v2041 = vpop.f32.mrf.mxu0
      %v2042 = vadd.f32 0.0, %v2041
      %v2043 = vpop.f32.mrf.mxu0
      %v2044 = vadd.f32 0.0, %v2043
      %2045 = vmatmul.bf16.gmra.mxu0 %v1957
      %v2046 = vpop.f32.mrf.mxu0
      %v2047 = vadd.f32 0.0, %v2046
      %v2048 = vpop.f32.mrf.mxu0
      %v2049 = vadd.f32 0.0, %v2048
      %2050 = vmatmul.bf16.gmra.mxu0 %v1958
      %v2051 = vpop.f32.mrf.mxu0
      %v2052 = vadd.f32 0.0, %v2051
      %v2053 = vpop.f32.mrf.mxu0
      %v2054 = vadd.f32 0.0, %v2053
      %2055 = vmatmul.bf16.gmra.mxu0 %v1959
      %v2056 = vpop.f32.mrf.mxu0
      %v2057 = vadd.f32 0.0, %v2056
      %v2058 = vpop.f32.mrf.mxu0
      %v2059 = vadd.f32 0.0, %v2058
      %2060 = vmatmul.bf16.gmra.mxu0 %v1960
      %v2061 = vpop.f32.mrf.mxu0
      %v2062 = vadd.f32 0.0, %v2061
      %v2063 = vpop.f32.mrf.mxu0
      %v2064 = vadd.f32 0.0, %v2063
      %2065 = vdwg.mxu0
      %v2066 = vadd.f32 %v1872, %v2027
      %v2067 = vadd.f32 %v1873, %v2029
      %v2068 = vadd.f32 %v1874, %v2032
      %v2069 = vadd.f32 %v1875, %v2034
      %v2070 = vadd.f32 %v1876, %v2037
      %v2071 = vadd.f32 %v1877, %v2039
      %v2072 = vadd.f32 %v1878, %v2042
      %v2073 = vadd.f32 %v1879, %v2044
      %v2074 = vadd.f32 %v1880, %v2047
      %v2075 = vadd.f32 %v1881, %v2049
      %v2076 = vadd.f32 %v1882, %v2052
      %v2077 = vadd.f32 %v1883, %v2054
      %v2078 = vadd.f32 %v1884, %v2057
      %v2079 = vadd.f32 %v1885, %v2059
      %v2080 = vadd.f32 %v1886, %v2062
      %v2081 = vadd.f32 %v1887, %v2064
      %v2082 = vld [vmem:[%s690] sm:$0xf]
      %v2083 = vld [vmem:[%s690 + $0x4] sm:$0xf]
      %v2084 = vld [vmem:[%s690 + $0x8] sm:$0x1]
      %v2085 = vld [vmem:[%s690 + $0xc] sm:$0xf]
      %v2086 = vld [vmem:[%s690 + $0x10] sm:$0xf]
      %v2087 = vld [vmem:[%s690 + $0x14] sm:$0x1]
      %v2088 = vld [vmem:[%s690 + $0x18] sm:$0xf]
      %v2089 = vld [vmem:[%s690 + $0x1c] sm:$0xf]
      %v2090 = vld [vmem:[%s690 + $0x20] sm:$0x1]
      %v2091 = vld [vmem:[%s690 + $0x24] sm:$0xf]
      %v2092 = vld [vmem:[%s690 + $0x28] sm:$0xf]
      %v2093 = vld [vmem:[%s690 + $0x2c] sm:$0x1]
      %v2094 = vld [vmem:[%s690 + $0x30] sm:$0xf]
      %v2095 = vld [vmem:[%s690 + $0x34] sm:$0xf]
      %v2096 = vld [vmem:[%s690 + $0x38] sm:$0x1]
      %v2097 = vld [vmem:[%s690 + $0x3c] sm:$0xf]
      %v2098 = vld [vmem:[%s690 + $0x40] sm:$0xf]
      %v2099 = vld [vmem:[%s690 + $0x44] sm:$0x1]
      %v2100 = vld [vmem:[%s690 + $0x48] sm:$0xf]
      %v2101 = vld [vmem:[%s690 + $0x4c] sm:$0xf]
      %v2102 = vld [vmem:[%s690 + $0x50] sm:$0x1]
      %v2103 = vld [vmem:[%s690 + $0x54] sm:$0xf]
      %v2104 = vld [vmem:[%s690 + $0x58] sm:$0xf]
      %v2105 = vld [vmem:[%s690 + $0x5c] sm:$0x1]
      %v2107 = vshrl.u32 %v2082, 16
      %v2109 = vrot.slane %v2107, 4
      %v2110 = vshll.u32 %v2082, 16
      %v2112 = vrot.slane %v2110, 5
      %v2113 = vor.u32 %v2109, %v2112
      %v2114 = vrot.slane %v2113, 4
      %v2116 = vshll.u32 %v2083, 16
      %v2118 = vrot.slane %v2116, 5
      %v2119 = vsel %vm1159, %v2114, %v2118
      %v2120 = vshrl.u32 %v2083, 16
      %v2122 = vrot.slane %v2120, 4
      %v2123 = vor.u32 %v2122, %v2118
      %v2124 = vrot.slane %v2123, 4
      %v2126 = vshll.u32 %v2084, 16
      %v2128 = vrot.slane %v2126, 5
      %v2129 = vsel %vm1159, %v2124, %v2128
      %v2131 = vshrl.u32 %v2085, 16
      %v2133 = vrot.slane %v2131, 4
      %v2134 = vshll.u32 %v2085, 16
      %v2136 = vrot.slane %v2134, 5
      %v2137 = vor.u32 %v2133, %v2136
      %v2138 = vrot.slane %v2137, 4
      %v2140 = vshll.u32 %v2086, 16
      %v2142 = vrot.slane %v2140, 5
      %v2143 = vsel %vm1159, %v2138, %v2142
      %v2144 = vshrl.u32 %v2086, 16
      %v2146 = vrot.slane %v2144, 4
      %v2147 = vor.u32 %v2146, %v2142
      %v2148 = vrot.slane %v2147, 4
      %v2150 = vshll.u32 %v2087, 16
      %v2152 = vrot.slane %v2150, 5
      %v2153 = vsel %vm1159, %v2148, %v2152
      %v2155 = vshrl.u32 %v2088, 16
      %v2157 = vrot.slane %v2155, 4
      %v2158 = vshll.u32 %v2088, 16
      %v2160 = vrot.slane %v2158, 5
      %v2161 = vor.u32 %v2157, %v2160
      %v2162 = vrot.slane %v2161, 4
      %v2164 = vshll.u32 %v2089, 16
      %v2166 = vrot.slane %v2164, 5
      %v2167 = vsel %vm1159, %v2162, %v2166
      %v2168 = vshrl.u32 %v2089, 16
      %v2170 = vrot.slane %v2168, 4
      %v2171 = vor.u32 %v2170, %v2166
      %v2172 = vrot.slane %v2171, 4
      %v2174 = vshll.u32 %v2090, 16
      %v2176 = vrot.slane %v2174, 5
      %v2177 = vsel %vm1159, %v2172, %v2176
      %v2179 = vshrl.u32 %v2091, 16
      %v2181 = vrot.slane %v2179, 4
      %v2182 = vshll.u32 %v2091, 16
      %v2184 = vrot.slane %v2182, 5
      %v2185 = vor.u32 %v2181, %v2184
      %v2186 = vrot.slane %v2185, 4
      %v2188 = vshll.u32 %v2092, 16
      %v2190 = vrot.slane %v2188, 5
      %v2191 = vsel %vm1159, %v2186, %v2190
      %v2192 = vshrl.u32 %v2092, 16
      %v2194 = vrot.slane %v2192, 4
      %v2195 = vor.u32 %v2194, %v2190
      %v2196 = vrot.slane %v2195, 4
      %v2198 = vshll.u32 %v2093, 16
      %v2200 = vrot.slane %v2198, 5
      %v2201 = vsel %vm1159, %v2196, %v2200
      %v2203 = vshrl.u32 %v2094, 16
      %v2205 = vrot.slane %v2203, 4
      %v2206 = vshll.u32 %v2094, 16
      %v2208 = vrot.slane %v2206, 5
      %v2209 = vor.u32 %v2205, %v2208
      %v2210 = vrot.slane %v2209, 4
      %v2212 = vshll.u32 %v2095, 16
      %v2214 = vrot.slane %v2212, 5
      %v2215 = vsel %vm1159, %v2210, %v2214
      %v2216 = vshrl.u32 %v2095, 16
      %v2218 = vrot.slane %v2216, 4
      %v2219 = vor.u32 %v2218, %v2214
      %v2220 = vrot.slane %v2219, 4
      %v2222 = vshll.u32 %v2096, 16
      %v2224 = vrot.slane %v2222, 5
      %v2225 = vsel %vm1159, %v2220, %v2224
      %v2227 = vshrl.u32 %v2097, 16
      %v2229 = vrot.slane %v2227, 4
      %v2230 = vshll.u32 %v2097, 16
      %v2232 = vrot.slane %v2230, 5
      %v2233 = vor.u32 %v2229, %v2232
      %v2234 = vrot.slane %v2233, 4
      %v2236 = vshll.u32 %v2098, 16
      %v2238 = vrot.slane %v2236, 5
      %v2239 = vsel %vm1159, %v2234, %v2238
      %v2240 = vshrl.u32 %v2098, 16
      %v2242 = vrot.slane %v2240, 4
      %v2243 = vor.u32 %v2242, %v2238
      %v2244 = vrot.slane %v2243, 4
      %v2246 = vshll.u32 %v2099, 16
      %v2248 = vrot.slane %v2246, 5
      %v2249 = vsel %vm1159, %v2244, %v2248
      %v2251 = vshrl.u32 %v2100, 16
      %v2253 = vrot.slane %v2251, 4
      %v2254 = vshll.u32 %v2100, 16
      %v2256 = vrot.slane %v2254, 5
      %v2257 = vor.u32 %v2253, %v2256
      %v2258 = vrot.slane %v2257, 4
      %v2260 = vshll.u32 %v2101, 16
      %v2262 = vrot.slane %v2260, 5
      %v2263 = vsel %vm1159, %v2258, %v2262
      %v2264 = vshrl.u32 %v2101, 16
      %v2266 = vrot.slane %v2264, 4
      %v2267 = vor.u32 %v2266, %v2262
      %v2268 = vrot.slane %v2267, 4
      %v2270 = vshll.u32 %v2102, 16
      %v2272 = vrot.slane %v2270, 5
      %v2273 = vsel %vm1159, %v2268, %v2272
      %v2275 = vshrl.u32 %v2103, 16
      %v2277 = vrot.slane %v2275, 4
      %v2278 = vshll.u32 %v2103, 16
      %v2280 = vrot.slane %v2278, 5
      %v2281 = vor.u32 %v2277, %v2280
      %v2282 = vrot.slane %v2281, 4
      %v2284 = vshll.u32 %v2104, 16
      %v2286 = vrot.slane %v2284, 5
      %v2287 = vsel %vm1159, %v2282, %v2286
      %v2288 = vshrl.u32 %v2104, 16
      %v2290 = vrot.slane %v2288, 4
      %v2291 = vor.u32 %v2290, %v2286
      %v2292 = vrot.slane %v2291, 4
      %v2294 = vshll.u32 %v2105, 16
      %v2296 = vrot.slane %v2294, 5
      %v2297 = vsel %vm1159, %v2292, %v2296
      %s2298 = scalar_lea.vmem %s5, 256
      %v2299 = vld [vmem:[%s2298] sm:$0xf]
      %v2300 = vld [vmem:[%s2298 + $0x4] sm:$0xf]
      %v2301 = vld [vmem:[%s2298 + $0x8] sm:$0xf]
      %v2302 = vld [vmem:[%s2298 + $0xc] sm:$0xf]
      %v2303 = vld [vmem:[%s2298 + $0x10] sm:$0xf]
      %v2304 = vld [vmem:[%s2298 + $0x14] sm:$0xf]
      %v2305 = vld [vmem:[%s2298 + $0x18] sm:$0xf]
      %v2306 = vld [vmem:[%s2298 + $0x1c] sm:$0xf]
      %v2307 = vld [vmem:[%s2298 + $0x20] sm:$0xf]
      %v2308 = vld [vmem:[%s2298 + $0x24] sm:$0xf]
      %v2309 = vld [vmem:[%s2298 + $0x28] sm:$0xf]
      %v2310 = vld [vmem:[%s2298 + $0x2c] sm:$0xf]
      %v2311 = vld [vmem:[%s2298 + $0x30] sm:$0xf]
      %v2312 = vld [vmem:[%s2298 + $0x34] sm:$0xf]
      %v2313 = vld [vmem:[%s2298 + $0x38] sm:$0xf]
      %v2314 = vld [vmem:[%s2298 + $0x3c] sm:$0xf]
      %v2315 = vunpack.c.l.b16 %v2119
      %v2316 = vunpack.c.l.b16 %v2129
      %v2317 = vunpack.c.l.b16 %v2143
      %v2318 = vunpack.c.l.b16 %v2153
      %v2319 = vunpack.c.l.b16 %v2167
      %v2320 = vunpack.c.l.b16 %v2177
      %v2321 = vunpack.c.l.b16 %v2191
      %v2322 = vunpack.c.l.b16 %v2201
      %v2323 = vunpack.c.l.b16 %v2215
      %v2324 = vunpack.c.l.b16 %v2225
      %v2325 = vunpack.c.l.b16 %v2239
      %v2326 = vunpack.c.l.b16 %v2249
      %v2327 = vunpack.c.l.b16 %v2263
      %v2328 = vunpack.c.l.b16 %v2273
      %v2329 = vunpack.c.l.b16 %v2287
      %v2330 = vunpack.c.l.b16 %v2297
      %v2331 = vpack.c.b16 %v2316, %v2315
      %v2332 = vpack.c.b16 %v2318, %v2317
      %v2333 = vpack.c.b16 %v2320, %v2319
      %v2334 = vpack.c.b16 %v2322, %v2321
      %v2335 = vpack.c.b16 %v2324, %v2323
      %v2336 = vpack.c.b16 %v2326, %v2325
      %v2337 = vpack.c.b16 %v2328, %v2327
      %v2338 = vpack.c.b16 %v2330, %v2329
      %v2363 = vunpack.c.l.b16 %v2299
      %v2364 = vunpack.c.l.b16 %v2300
      %v2365 = vunpack.c.l.b16 %v2301
      %v2366 = vunpack.c.l.b16 %v2302
      %v2367 = vunpack.c.l.b16 %v2303
      %v2368 = vunpack.c.l.b16 %v2304
      %v2369 = vunpack.c.l.b16 %v2305
      %v2370 = vunpack.c.l.b16 %v2306
      %v2371 = vunpack.c.l.b16 %v2307
      %v2372 = vunpack.c.l.b16 %v2308
      %v2373 = vunpack.c.l.b16 %v2309
      %v2374 = vunpack.c.l.b16 %v2310
      %v2375 = vunpack.c.l.b16 %v2311
      %v2376 = vunpack.c.l.b16 %v2312
      %v2377 = vunpack.c.l.b16 %v2313
      %v2378 = vunpack.c.l.b16 %v2314
      %v2379 = vpack.c.b16 %v2364, %v2363
      %v2380 = vpack.c.b16 %v2366, %v2365
      %v2381 = vpack.c.b16 %v2368, %v2367
      %v2382 = vpack.c.b16 %v2370, %v2369
      %v2383 = vpack.c.b16 %v2372, %v2371
      %v2384 = vpack.c.b16 %v2374, %v2373
      %v2385 = vpack.c.b16 %v2376, %v2375
      %v2386 = vpack.c.b16 %v2378, %v2377
      %2395 = vmatpush.bf16.msra.mxu0 %v2386
      %2396 = vmatpush.bf16.msra.mxu0 %v2385
      %2397 = vmatpush.bf16.msra.mxu0 %v2384
      %2398 = vmatpush.bf16.msra.mxu0 %v2383
      %2399 = vmatpush.bf16.msra.mxu0 %v2382
      %2400 = vmatpush.bf16.msra.mxu0 %v2381
      %2401 = vmatpush.bf16.msra.mxu0 %v2380
      %2402 = vmatpush.bf16.msra.mxu0 %v2379
      %2403 = vmatmul.bf16.gmra.mxu0 %v2331
      %v2404 = vpop.f32.mrf.mxu0
      %v2405 = vadd.f32 0.0, %v2404
      %v2406 = vpop.f32.mrf.mxu0
      %v2407 = vadd.f32 0.0, %v2406
      %2408 = vmatmul.bf16.gmra.mxu0 %v2332
      %v2409 = vpop.f32.mrf.mxu0
      %v2410 = vadd.f32 0.0, %v2409
      %v2411 = vpop.f32.mrf.mxu0
      %v2412 = vadd.f32 0.0, %v2411
      %2413 = vmatmul.bf16.gmra.mxu0 %v2333
      %v2414 = vpop.f32.mrf.mxu0
      %v2415 = vadd.f32 0.0, %v2414
      %v2416 = vpop.f32.mrf.mxu0
      %v2417 = vadd.f32 0.0, %v2416
      %2418 = vmatmul.bf16.gmra.mxu0 %v2334
      %v2419 = vpop.f32.mrf.mxu0
      %v2420 = vadd.f32 0.0, %v2419
      %v2421 = vpop.f32.mrf.mxu0
      %v2422 = vadd.f32 0.0, %v2421
      %2423 = vmatmul.bf16.gmra.mxu0 %v2335
      %v2424 = vpop.f32.mrf.mxu0
      %v2425 = vadd.f32 0.0, %v2424
      %v2426 = vpop.f32.mrf.mxu0
      %v2427 = vadd.f32 0.0, %v2426
      %2428 = vmatmul.bf16.gmra.mxu0 %v2336
      %v2429 = vpop.f32.mrf.mxu0
      %v2430 = vadd.f32 0.0, %v2429
      %v2431 = vpop.f32.mrf.mxu0
      %v2432 = vadd.f32 0.0, %v2431
      %2433 = vmatmul.bf16.gmra.mxu0 %v2337
      %v2434 = vpop.f32.mrf.mxu0
      %v2435 = vadd.f32 0.0, %v2434
      %v2436 = vpop.f32.mrf.mxu0
      %v2437 = vadd.f32 0.0, %v2436
      %2438 = vmatmul.bf16.gmra.mxu0 %v2338
      %v2439 = vpop.f32.mrf.mxu0
      %v2440 = vadd.f32 0.0, %v2439
      %v2441 = vpop.f32.mrf.mxu0
      %v2442 = vadd.f32 0.0, %v2441
      %2443 = vdwg.mxu0
      %v2444 = vadd.f32 %v2066, %v2405
      %v2445 = vadd.f32 %v2067, %v2407
      %v2446 = vadd.f32 %v2068, %v2410
      %v2447 = vadd.f32 %v2069, %v2412
      %v2448 = vadd.f32 %v2070, %v2415
      %v2449 = vadd.f32 %v2071, %v2417
      %v2450 = vadd.f32 %v2072, %v2420
      %v2451 = vadd.f32 %v2073, %v2422
      %v2452 = vadd.f32 %v2074, %v2425
      %v2453 = vadd.f32 %v2075, %v2427
      %v2454 = vadd.f32 %v2076, %v2430
      %v2455 = vadd.f32 %v2077, %v2432
      %v2456 = vadd.f32 %v2078, %v2435
      %v2457 = vadd.f32 %v2079, %v2437
      %v2458 = vadd.f32 %v2080, %v2440
      %v2459 = vadd.f32 %v2081, %v2442
      %v2460 = vld [vmem:[%s690] sm:$0xe]
      %v2461 = vld [vmem:[%s690 + $0xc] sm:$0xe]
      %v2462 = vld [vmem:[%s690 + $0x18] sm:$0xe]
      %v2463 = vld [vmem:[%s690 + $0x24] sm:$0xe]
      %v2464 = vld [vmem:[%s690 + $0x30] sm:$0xe]
      %v2465 = vld [vmem:[%s690 + $0x3c] sm:$0xe]
      %v2466 = vld [vmem:[%s690 + $0x48] sm:$0xe]
      %v2467 = vld [vmem:[%s690 + $0x54] sm:$0xe]
      %v2492 = vrot.slane %v2460, 5
      %v2493 = vrot.slane %v2492, 4
      %v2494 = vrot.slane %v2083, 5
      %v2495 = vsel %vm1669, %v2493, %v2494
      %v2496 = vrot.slane %v2494, 4
      %v2497 = vrot.slane %v2084, 5
      %v2498 = vsel %vm1669, %v2496, %v2497
      %v2499 = vrot.slane %v2461, 5
      %v2500 = vrot.slane %v2499, 4
      %v2501 = vrot.slane %v2086, 5
      %v2502 = vsel %vm1669, %v2500, %v2501
      %v2503 = vrot.slane %v2501, 4
      %v2504 = vrot.slane %v2087, 5
      %v2505 = vsel %vm1669, %v2503, %v2504
      %v2506 = vrot.slane %v2462, 5
      %v2507 = vrot.slane %v2506, 4
      %v2508 = vrot.slane %v2089, 5
      %v2509 = vsel %vm1669, %v2507, %v2508
      %v2510 = vrot.slane %v2508, 4
      %v2511 = vrot.slane %v2090, 5
      %v2512 = vsel %vm1669, %v2510, %v2511
      %v2513 = vrot.slane %v2463, 5
      %v2514 = vrot.slane %v2513, 4
      %v2515 = vrot.slane %v2092, 5
      %v2516 = vsel %vm1669, %v2514, %v2515
      %v2517 = vrot.slane %v2515, 4
      %v2518 = vrot.slane %v2093, 5
      %v2519 = vsel %vm1669, %v2517, %v2518
      %v2520 = vrot.slane %v2464, 5
      %v2521 = vrot.slane %v2520, 4
      %v2522 = vrot.slane %v2095, 5
      %v2523 = vsel %vm1669, %v2521, %v2522
      %v2524 = vrot.slane %v2522, 4
      %v2525 = vrot.slane %v2096, 5
      %v2526 = vsel %vm1669, %v2524, %v2525
      %v2527 = vrot.slane %v2465, 5
      %v2528 = vrot.slane %v2527, 4
      %v2529 = vrot.slane %v2098, 5
      %v2530 = vsel %vm1669, %v2528, %v2529
      %v2531 = vrot.slane %v2529, 4
      %v2532 = vrot.slane %v2099, 5
      %v2533 = vsel %vm1669, %v2531, %v2532
      %v2534 = vrot.slane %v2466, 5
      %v2535 = vrot.slane %v2534, 4
      %v2536 = vrot.slane %v2101, 5
      %v2537 = vsel %vm1669, %v2535, %v2536
      %v2538 = vrot.slane %v2536, 4
      %v2539 = vrot.slane %v2102, 5
      %v2540 = vsel %vm1669, %v2538, %v2539
      %v2541 = vrot.slane %v2467, 5
      %v2542 = vrot.slane %v2541, 4
      %v2543 = vrot.slane %v2104, 5
      %v2544 = vsel %vm1669, %v2542, %v2543
      %v2545 = vrot.slane %v2543, 4
      %v2546 = vrot.slane %v2105, 5
      %v2547 = vsel %vm1669, %v2545, %v2546
      %s2548 = scalar_lea.vmem %s5, 320
      %v2549 = vld [vmem:[%s2548] sm:$0xf]
      %v2550 = vld [vmem:[%s2548 + $0x4] sm:$0xf]
      %v2551 = vld [vmem:[%s2548 + $0x8] sm:$0xf]
      %v2552 = vld [vmem:[%s2548 + $0xc] sm:$0xf]
      %v2553 = vld [vmem:[%s2548 + $0x10] sm:$0xf]
      %v2554 = vld [vmem:[%s2548 + $0x14] sm:$0xf]
      %v2555 = vld [vmem:[%s2548 + $0x18] sm:$0xf]
      %v2556 = vld [vmem:[%s2548 + $0x1c] sm:$0xf]
      %v2557 = vld [vmem:[%s2548 + $0x20] sm:$0xf]
      %v2558 = vld [vmem:[%s2548 + $0x24] sm:$0xf]
      %v2559 = vld [vmem:[%s2548 + $0x28] sm:$0xf]
      %v2560 = vld [vmem:[%s2548 + $0x2c] sm:$0xf]
      %v2561 = vld [vmem:[%s2548 + $0x30] sm:$0xf]
      %v2562 = vld [vmem:[%s2548 + $0x34] sm:$0xf]
      %v2563 = vld [vmem:[%s2548 + $0x38] sm:$0xf]
      %v2564 = vld [vmem:[%s2548 + $0x3c] sm:$0xf]
      %v2565 = vunpack.c.l.b16 %v2495
      %v2566 = vunpack.c.l.b16 %v2498
      %v2567 = vunpack.c.l.b16 %v2502
      %v2568 = vunpack.c.l.b16 %v2505
      %v2569 = vunpack.c.l.b16 %v2509
      %v2570 = vunpack.c.l.b16 %v2512
      %v2571 = vunpack.c.l.b16 %v2516
      %v2572 = vunpack.c.l.b16 %v2519
      %v2573 = vunpack.c.l.b16 %v2523
      %v2574 = vunpack.c.l.b16 %v2526
      %v2575 = vunpack.c.l.b16 %v2530
      %v2576 = vunpack.c.l.b16 %v2533
      %v2577 = vunpack.c.l.b16 %v2537
      %v2578 = vunpack.c.l.b16 %v2540
      %v2579 = vunpack.c.l.b16 %v2544
      %v2580 = vunpack.c.l.b16 %v2547
      %v2581 = vpack.c.b16 %v2566, %v2565
      %v2582 = vpack.c.b16 %v2568, %v2567
      %v2583 = vpack.c.b16 %v2570, %v2569
      %v2584 = vpack.c.b16 %v2572, %v2571
      %v2585 = vpack.c.b16 %v2574, %v2573
      %v2586 = vpack.c.b16 %v2576, %v2575
      %v2587 = vpack.c.b16 %v2578, %v2577
      %v2588 = vpack.c.b16 %v2580, %v2579
      %v2613 = vunpack.c.l.b16 %v2549
      %v2614 = vunpack.c.l.b16 %v2550
      %v2615 = vunpack.c.l.b16 %v2551
      %v2616 = vunpack.c.l.b16 %v2552
      %v2617 = vunpack.c.l.b16 %v2553
      %v2618 = vunpack.c.l.b16 %v2554
      %v2619 = vunpack.c.l.b16 %v2555
      %v2620 = vunpack.c.l.b16 %v2556
      %v2621 = vunpack.c.l.b16 %v2557
      %v2622 = vunpack.c.l.b16 %v2558
      %v2623 = vunpack.c.l.b16 %v2559
      %v2624 = vunpack.c.l.b16 %v2560
      %v2625 = vunpack.c.l.b16 %v2561
      %v2626 = vunpack.c.l.b16 %v2562
      %v2627 = vunpack.c.l.b16 %v2563
      %v2628 = vunpack.c.l.b16 %v2564
      %v2629 = vpack.c.b16 %v2614, %v2613
      %v2630 = vpack.c.b16 %v2616, %v2615
      %v2631 = vpack.c.b16 %v2618, %v2617
      %v2632 = vpack.c.b16 %v2620, %v2619
      %v2633 = vpack.c.b16 %v2622, %v2621
      %v2634 = vpack.c.b16 %v2624, %v2623
      %v2635 = vpack.c.b16 %v2626, %v2625
      %v2636 = vpack.c.b16 %v2628, %v2627
      %2645 = vmatpush.bf16.msra.mxu0 %v2636
      %2646 = vmatpush.bf16.msra.mxu0 %v2635
      %2647 = vmatpush.bf16.msra.mxu0 %v2634
      %2648 = vmatpush.bf16.msra.mxu0 %v2633
      %2649 = vmatpush.bf16.msra.mxu0 %v2632
      %2650 = vmatpush.bf16.msra.mxu0 %v2631
      %2651 = vmatpush.bf16.msra.mxu0 %v2630
      %2652 = vmatpush.bf16.msra.mxu0 %v2629
      %2653 = vmatmul.bf16.gmra.mxu0 %v2581
      %v2654 = vpop.f32.mrf.mxu0
      %v2655 = vadd.f32 0.0, %v2654
      %v2656 = vpop.f32.mrf.mxu0
      %v2657 = vadd.f32 0.0, %v2656
      %2658 = vmatmul.bf16.gmra.mxu0 %v2582
      %v2659 = vpop.f32.mrf.mxu0
      %v2660 = vadd.f32 0.0, %v2659
      %v2661 = vpop.f32.mrf.mxu0
      %v2662 = vadd.f32 0.0, %v2661
      %2663 = vmatmul.bf16.gmra.mxu0 %v2583
      %v2664 = vpop.f32.mrf.mxu0
      %v2665 = vadd.f32 0.0, %v2664
      %v2666 = vpop.f32.mrf.mxu0
      %v2667 = vadd.f32 0.0, %v2666
      %2668 = vmatmul.bf16.gmra.mxu0 %v2584
      %v2669 = vpop.f32.mrf.mxu0
      %v2670 = vadd.f32 0.0, %v2669
      %v2671 = vpop.f32.mrf.mxu0
      %v2672 = vadd.f32 0.0, %v2671
      %2673 = vmatmul.bf16.gmra.mxu0 %v2585
      %v2674 = vpop.f32.mrf.mxu0
      %v2675 = vadd.f32 0.0, %v2674
      %v2676 = vpop.f32.mrf.mxu0
      %v2677 = vadd.f32 0.0, %v2676
      %2678 = vmatmul.bf16.gmra.mxu0 %v2586
      %v2679 = vpop.f32.mrf.mxu0
      %v2680 = vadd.f32 0.0, %v2679
      %v2681 = vpop.f32.mrf.mxu0
      %v2682 = vadd.f32 0.0, %v2681
      %2683 = vmatmul.bf16.gmra.mxu0 %v2587
      %v2684 = vpop.f32.mrf.mxu0
      %v2685 = vadd.f32 0.0, %v2684
      %v2686 = vpop.f32.mrf.mxu0
      %v2687 = vadd.f32 0.0, %v2686
      %2688 = vmatmul.bf16.gmra.mxu0 %v2588
      %v2689 = vpop.f32.mrf.mxu0
      %v2690 = vadd.f32 0.0, %v2689
      %v2691 = vpop.f32.mrf.mxu0
      %v2692 = vadd.f32 0.0, %v2691
      %2693 = vdwg.mxu0
      %v2694 = vadd.f32 %v2444, %v2655
      %v2695 = vadd.f32 %v2445, %v2657
      %v2696 = vadd.f32 %v2446, %v2660
      %v2697 = vadd.f32 %v2447, %v2662
      %v2698 = vadd.f32 %v2448, %v2665
      %v2699 = vadd.f32 %v2449, %v2667
      %v2700 = vadd.f32 %v2450, %v2670
      %v2701 = vadd.f32 %v2451, %v2672
      %v2702 = vadd.f32 %v2452, %v2675
      %v2703 = vadd.f32 %v2453, %v2677
      %v2704 = vadd.f32 %v2454, %v2680
      %v2705 = vadd.f32 %v2455, %v2682
      %v2706 = vadd.f32 %v2456, %v2685
      %v2707 = vadd.f32 %v2457, %v2687
      %v2708 = vadd.f32 %v2458, %v2690
      %v2709 = vadd.f32 %v2459, %v2692
      %s2710 = scalar_lea.vmem [#allocation2], 24
      %v2711 = vld [vmem:[%s2710] sm:$0xf]
      %v2712 = vld [vmem:[%s2710 + $0x4] sm:$0xf]
      %v2713 = vld [vmem:[%s2710 + $0xc] sm:$0xf]
      %v2714 = vld [vmem:[%s2710 + $0x10] sm:$0xf]
      %v2715 = vld [vmem:[%s2710 + $0x18] sm:$0xf]
      %v2716 = vld [vmem:[%s2710 + $0x1c] sm:$0xf]
      %v2717 = vld [vmem:[%s2710 + $0x24] sm:$0xf]
      %v2718 = vld [vmem:[%s2710 + $0x28] sm:$0xf]
      %v2719 = vld [vmem:[%s2710 + $0x30] sm:$0xf]
      %v2720 = vld [vmem:[%s2710 + $0x34] sm:$0xf]
      %v2721 = vld [vmem:[%s2710 + $0x3c] sm:$0xf]
      %v2722 = vld [vmem:[%s2710 + $0x40] sm:$0xf]
      %v2723 = vld [vmem:[%s2710 + $0x48] sm:$0xf]
      %v2724 = vld [vmem:[%s2710 + $0x4c] sm:$0xf]
      %v2725 = vld [vmem:[%s2710 + $0x54] sm:$0xf]
      %v2726 = vld [vmem:[%s2710 + $0x58] sm:$0xf]
      %s2727 = scalar_lea.vmem %s5, 384
      %v2728 = vld [vmem:[%s2727] sm:$0xf]
      %v2729 = vld [vmem:[%s2727 + $0x4] sm:$0xf]
      %v2730 = vld [vmem:[%s2727 + $0x8] sm:$0xf]
      %v2731 = vld [vmem:[%s2727 + $0xc] sm:$0xf]
      %v2732 = vld [vmem:[%s2727 + $0x10] sm:$0xf]
      %v2733 = vld [vmem:[%s2727 + $0x14] sm:$0xf]
      %v2734 = vld [vmem:[%s2727 + $0x18] sm:$0xf]
      %v2735 = vld [vmem:[%s2727 + $0x1c] sm:$0xf]
      %v2736 = vld [vmem:[%s2727 + $0x20] sm:$0xf]
      %v2737 = vld [vmem:[%s2727 + $0x24] sm:$0xf]
      %v2738 = vld [vmem:[%s2727 + $0x28] sm:$0xf]
      %v2739 = vld [vmem:[%s2727 + $0x2c] sm:$0xf]
      %v2740 = vld [vmem:[%s2727 + $0x30] sm:$0xf]
      %v2741 = vld [vmem:[%s2727 + $0x34] sm:$0xf]
      %v2742 = vld [vmem:[%s2727 + $0x38] sm:$0xf]
      %v2743 = vld [vmem:[%s2727 + $0x3c] sm:$0xf]
      %v2760 = vunpack.c.l.b16 %v2711
      %v2761 = vunpack.c.l.b16 %v2712
      %v2762 = vunpack.c.l.b16 %v2713
      %v2763 = vunpack.c.l.b16 %v2714
      %v2764 = vunpack.c.l.b16 %v2715
      %v2765 = vunpack.c.l.b16 %v2716
      %v2766 = vunpack.c.l.b16 %v2717
      %v2767 = vunpack.c.l.b16 %v2718
      %v2768 = vunpack.c.l.b16 %v2719
      %v2769 = vunpack.c.l.b16 %v2720
      %v2770 = vunpack.c.l.b16 %v2721
      %v2771 = vunpack.c.l.b16 %v2722
      %v2772 = vunpack.c.l.b16 %v2723
      %v2773 = vunpack.c.l.b16 %v2724
      %v2774 = vunpack.c.l.b16 %v2725
      %v2775 = vunpack.c.l.b16 %v2726
      %v2776 = vpack.c.b16 %v2761, %v2760
      %v2777 = vpack.c.b16 %v2763, %v2762
      %v2778 = vpack.c.b16 %v2765, %v2764
      %v2779 = vpack.c.b16 %v2767, %v2766
      %v2780 = vpack.c.b16 %v2769, %v2768
      %v2781 = vpack.c.b16 %v2771, %v2770
      %v2782 = vpack.c.b16 %v2773, %v2772
      %v2783 = vpack.c.b16 %v2775, %v2774
      %v2808 = vunpack.c.l.b16 %v2728
      %v2809 = vunpack.c.l.b16 %v2729
      %v2810 = vunpack.c.l.b16 %v2730
      %v2811 = vunpack.c.l.b16 %v2731
      %v2812 = vunpack.c.l.b16 %v2732
      %v2813 = vunpack.c.l.b16 %v2733
      %v2814 = vunpack.c.l.b16 %v2734
      %v2815 = vunpack.c.l.b16 %v2735
      %v2816 = vunpack.c.l.b16 %v2736
      %v2817 = vunpack.c.l.b16 %v2737
      %v2818 = vunpack.c.l.b16 %v2738
      %v2819 = vunpack.c.l.b16 %v2739
      %v2820 = vunpack.c.l.b16 %v2740
      %v2821 = vunpack.c.l.b16 %v2741
      %v2822 = vunpack.c.l.b16 %v2742
      %v2823 = vunpack.c.l.b16 %v2743
      %v2824 = vpack.c.b16 %v2809, %v2808
      %v2825 = vpack.c.b16 %v2811, %v2810
      %v2826 = vpack.c.b16 %v2813, %v2812
      %v2827 = vpack.c.b16 %v2815, %v2814
      %v2828 = vpack.c.b16 %v2817, %v2816
      %v2829 = vpack.c.b16 %v2819, %v2818
      %v2830 = vpack.c.b16 %v2821, %v2820
      %v2831 = vpack.c.b16 %v2823, %v2822
      %2840 = vmatpush.bf16.msra.mxu0 %v2831
      %2841 = vmatpush.bf16.msra.mxu0 %v2830
      %2842 = vmatpush.bf16.msra.mxu0 %v2829
      %2843 = vmatpush.bf16.msra.mxu0 %v2828
      %2844 = vmatpush.bf16.msra.mxu0 %v2827
      %2845 = vmatpush.bf16.msra.mxu0 %v2826
      %2846 = vmatpush.bf16.msra.mxu0 %v2825
      %2847 = vmatpush.bf16.msra.mxu0 %v2824
      %2848 = vmatmul.bf16.gmra.mxu0 %v2776
      %v2849 = vpop.f32.mrf.mxu0
      %v2850 = vadd.f32 0.0, %v2849
      %v2851 = vpop.f32.mrf.mxu0
      %v2852 = vadd.f32 0.0, %v2851
      %2853 = vmatmul.bf16.gmra.mxu0 %v2777
      %v2854 = vpop.f32.mrf.mxu0
      %v2855 = vadd.f32 0.0, %v2854
      %v2856 = vpop.f32.mrf.mxu0
      %v2857 = vadd.f32 0.0, %v2856
      %2858 = vmatmul.bf16.gmra.mxu0 %v2778
      %v2859 = vpop.f32.mrf.mxu0
      %v2860 = vadd.f32 0.0, %v2859
      %v2861 = vpop.f32.mrf.mxu0
      %v2862 = vadd.f32 0.0, %v2861
      %2863 = vmatmul.bf16.gmra.mxu0 %v2779
      %v2864 = vpop.f32.mrf.mxu0
      %v2865 = vadd.f32 0.0, %v2864
      %v2866 = vpop.f32.mrf.mxu0
      %v2867 = vadd.f32 0.0, %v2866
      %2868 = vmatmul.bf16.gmra.mxu0 %v2780
      %v2869 = vpop.f32.mrf.mxu0
      %v2870 = vadd.f32 0.0, %v2869
      %v2871 = vpop.f32.mrf.mxu0
      %v2872 = vadd.f32 0.0, %v2871
      %2873 = vmatmul.bf16.gmra.mxu0 %v2781
      %v2874 = vpop.f32.mrf.mxu0
      %v2875 = vadd.f32 0.0, %v2874
      %v2876 = vpop.f32.mrf.mxu0
      %v2877 = vadd.f32 0.0, %v2876
      %2878 = vmatmul.bf16.gmra.mxu0 %v2782
      %v2879 = vpop.f32.mrf.mxu0
      %v2880 = vadd.f32 0.0, %v2879
      %v2881 = vpop.f32.mrf.mxu0
      %v2882 = vadd.f32 0.0, %v2881
      %2883 = vmatmul.bf16.gmra.mxu0 %v2783
      %v2884 = vpop.f32.mrf.mxu0
      %v2885 = vadd.f32 0.0, %v2884
      %v2886 = vpop.f32.mrf.mxu0
      %v2887 = vadd.f32 0.0, %v2886
      %2888 = vdwg.mxu0
      %v2889 = vadd.f32 %v2694, %v2850
      %v2890 = vadd.f32 %v2695, %v2852
      %v2891 = vadd.f32 %v2696, %v2855
      %v2892 = vadd.f32 %v2697, %v2857
      %v2893 = vadd.f32 %v2698, %v2860
      %v2894 = vadd.f32 %v2699, %v2862
      %v2895 = vadd.f32 %v2700, %v2865
      %v2896 = vadd.f32 %v2701, %v2867
      %v2897 = vadd.f32 %v2702, %v2870
      %v2898 = vadd.f32 %v2703, %v2872
      %v2899 = vadd.f32 %v2704, %v2875
      %v2900 = vadd.f32 %v2705, %v2877
      %v2901 = vadd.f32 %v2706, %v2880
      %v2902 = vadd.f32 %v2707, %v2882
      %v2903 = vadd.f32 %v2708, %v2885
      %v2904 = vadd.f32 %v2709, %v2887
      %v2905 = vld [vmem:[%s2710] sm:$0xf]
      %v2906 = vld [vmem:[%s2710 + $0x4] sm:$0xf]
      %v2907 = vld [vmem:[%s2710 + $0x8] sm:$0x1]
      %v2908 = vld [vmem:[%s2710 + $0xc] sm:$0xf]
      %v2909 = vld [vmem:[%s2710 + $0x10] sm:$0xf]
      %v2910 = vld [vmem:[%s2710 + $0x14] sm:$0x1]
      %v2911 = vld [vmem:[%s2710 + $0x18] sm:$0xf]
      %v2912 = vld [vmem:[%s2710 + $0x1c] sm:$0xf]
      %v2913 = vld [vmem:[%s2710 + $0x20] sm:$0x1]
      %v2914 = vld [vmem:[%s2710 + $0x24] sm:$0xf]
      %v2915 = vld [vmem:[%s2710 + $0x28] sm:$0xf]
      %v2916 = vld [vmem:[%s2710 + $0x2c] sm:$0x1]
      %v2917 = vld [vmem:[%s2710 + $0x30] sm:$0xf]
      %v2918 = vld [vmem:[%s2710 + $0x34] sm:$0xf]
      %v2919 = vld [vmem:[%s2710 + $0x38] sm:$0x1]
      %v2920 = vld [vmem:[%s2710 + $0x3c] sm:$0xf]
      %v2921 = vld [vmem:[%s2710 + $0x40] sm:$0xf]
      %v2922 = vld [vmem:[%s2710 + $0x44] sm:$0x1]
      %v2923 = vld [vmem:[%s2710 + $0x48] sm:$0xf]
      %v2924 = vld [vmem:[%s2710 + $0x4c] sm:$0xf]
      %v2925 = vld [vmem:[%s2710 + $0x50] sm:$0x1]
      %v2926 = vld [vmem:[%s2710 + $0x54] sm:$0xf]
      %v2927 = vld [vmem:[%s2710 + $0x58] sm:$0xf]
      %v2928 = vld [vmem:[%s2710 + $0x5c] sm:$0x1]
      %v2930 = vshrl.u32 %v2905, 16
      %v2932 = vrot.slane %v2930, 4
      %v2933 = vshll.u32 %v2905, 16
      %v2935 = vrot.slane %v2933, 5
      %v2936 = vor.u32 %v2932, %v2935
      %v2937 = vrot.slane %v2936, 4
      %v2939 = vshll.u32 %v2906, 16
      %v2941 = vrot.slane %v2939, 5
      %v2942 = vsel %vm1159, %v2937, %v2941
      %v2943 = vshrl.u32 %v2906, 16
      %v2945 = vrot.slane %v2943, 4
      %v2946 = vor.u32 %v2945, %v2941
      %v2947 = vrot.slane %v2946, 4
      %v2949 = vshll.u32 %v2907, 16
      %v2951 = vrot.slane %v2949, 5
      %v2952 = vsel %vm1159, %v2947, %v2951
      %v2954 = vshrl.u32 %v2908, 16
      %v2956 = vrot.slane %v2954, 4
      %v2957 = vshll.u32 %v2908, 16
      %v2959 = vrot.slane %v2957, 5
      %v2960 = vor.u32 %v2956, %v2959
      %v2961 = vrot.slane %v2960, 4
      %v2963 = vshll.u32 %v2909, 16
      %v2965 = vrot.slane %v2963, 5
      %v2966 = vsel %vm1159, %v2961, %v2965
      %v2967 = vshrl.u32 %v2909, 16
      %v2969 = vrot.slane %v2967, 4
      %v2970 = vor.u32 %v2969, %v2965
      %v2971 = vrot.slane %v2970, 4
      %v2973 = vshll.u32 %v2910, 16
      %v2975 = vrot.slane %v2973, 5
      %v2976 = vsel %vm1159, %v2971, %v2975
      %v2978 = vshrl.u32 %v2911, 16
      %v2980 = vrot.slane %v2978, 4
      %v2981 = vshll.u32 %v2911, 16
      %v2983 = vrot.slane %v2981, 5
      %v2984 = vor.u32 %v2980, %v2983
      %v2985 = vrot.slane %v2984, 4
      %v2987 = vshll.u32 %v2912, 16
      %v2989 = vrot.slane %v2987, 5
      %v2990 = vsel %vm1159, %v2985, %v2989
      %v2991 = vshrl.u32 %v2912, 16
      %v2993 = vrot.slane %v2991, 4
      %v2994 = vor.u32 %v2993, %v2989
      %v2995 = vrot.slane %v2994, 4
      %v2997 = vshll.u32 %v2913, 16
      %v2999 = vrot.slane %v2997, 5
      %v3000 = vsel %vm1159, %v2995, %v2999
      %v3002 = vshrl.u32 %v2914, 16
      %v3004 = vrot.slane %v3002, 4
      %v3005 = vshll.u32 %v2914, 16
      %v3007 = vrot.slane %v3005, 5
      %v3008 = vor.u32 %v3004, %v3007
      %v3009 = vrot.slane %v3008, 4
      %v3011 = vshll.u32 %v2915, 16
      %v3013 = vrot.slane %v3011, 5
      %v3014 = vsel %vm1159, %v3009, %v3013
      %v3015 = vshrl.u32 %v2915, 16
      %v3017 = vrot.slane %v3015, 4
      %v3018 = vor.u32 %v3017, %v3013
      %v3019 = vrot.slane %v3018, 4
      %v3021 = vshll.u32 %v2916, 16
      %v3023 = vrot.slane %v3021, 5
      %v3024 = vsel %vm1159, %v3019, %v3023
      %v3026 = vshrl.u32 %v2917, 16
      %v3028 = vrot.slane %v3026, 4
      %v3029 = vshll.u32 %v2917, 16
      %v3031 = vrot.slane %v3029, 5
      %v3032 = vor.u32 %v3028, %v3031
      %v3033 = vrot.slane %v3032, 4
      %v3035 = vshll.u32 %v2918, 16
      %v3037 = vrot.slane %v3035, 5
      %v3038 = vsel %vm1159, %v3033, %v3037
      %v3039 = vshrl.u32 %v2918, 16
      %v3041 = vrot.slane %v3039, 4
      %v3042 = vor.u32 %v3041, %v3037
      %v3043 = vrot.slane %v3042, 4
      %v3045 = vshll.u32 %v2919, 16
      %v3047 = vrot.slane %v3045, 5
      %v3048 = vsel %vm1159, %v3043, %v3047
      %v3050 = vshrl.u32 %v2920, 16
      %v3052 = vrot.slane %v3050, 4
      %v3053 = vshll.u32 %v2920, 16
      %v3055 = vrot.slane %v3053, 5
      %v3056 = vor.u32 %v3052, %v3055
      %v3057 = vrot.slane %v3056, 4
      %v3059 = vshll.u32 %v2921, 16
      %v3061 = vrot.slane %v3059, 5
      %v3062 = vsel %vm1159, %v3057, %v3061
      %v3063 = vshrl.u32 %v2921, 16
      %v3065 = vrot.slane %v3063, 4
      %v3066 = vor.u32 %v3065, %v3061
      %v3067 = vrot.slane %v3066, 4
      %v3069 = vshll.u32 %v2922, 16
      %v3071 = vrot.slane %v3069, 5
      %v3072 = vsel %vm1159, %v3067, %v3071
      %v3074 = vshrl.u32 %v2923, 16
      %v3076 = vrot.slane %v3074, 4
      %v3077 = vshll.u32 %v2923, 16
      %v3079 = vrot.slane %v3077, 5
      %v3080 = vor.u32 %v3076, %v3079
      %v3081 = vrot.slane %v3080, 4
      %v3083 = vshll.u32 %v2924, 16
      %v3085 = vrot.slane %v3083, 5
      %v3086 = vsel %vm1159, %v3081, %v3085
      %v3087 = vshrl.u32 %v2924, 16
      %v3089 = vrot.slane %v3087, 4
      %v3090 = vor.u32 %v3089, %v3085
      %v3091 = vrot.slane %v3090, 4
      %v3093 = vshll.u32 %v2925, 16
      %v3095 = vrot.slane %v3093, 5
      %v3096 = vsel %vm1159, %v3091, %v3095
      %v3098 = vshrl.u32 %v2926, 16
      %v3100 = vrot.slane %v3098, 4
      %v3101 = vshll.u32 %v2926, 16
      %v3103 = vrot.slane %v3101, 5
      %v3104 = vor.u32 %v3100, %v3103
      %v3105 = vrot.slane %v3104, 4
      %v3107 = vshll.u32 %v2927, 16
      %v3109 = vrot.slane %v3107, 5
      %v3110 = vsel %vm1159, %v3105, %v3109
      %v3111 = vshrl.u32 %v2927, 16
      %v3113 = vrot.slane %v3111, 4
      %v3114 = vor.u32 %v3113, %v3109
      %v3115 = vrot.slane %v3114, 4
      %v3117 = vshll.u32 %v2928, 16
      %v3119 = vrot.slane %v3117, 5
      %v3120 = vsel %vm1159, %v3115, %v3119
      %s3121 = scalar_lea.vmem %s5, 448
      %v3122 = vld [vmem:[%s3121] sm:$0xf]
      %v3123 = vld [vmem:[%s3121 + $0x4] sm:$0xf]
      %v3124 = vld [vmem:[%s3121 + $0x8] sm:$0xf]
      %v3125 = vld [vmem:[%s3121 + $0xc] sm:$0xf]
      %v3126 = vld [vmem:[%s3121 + $0x10] sm:$0xf]
      %v3127 = vld [vmem:[%s3121 + $0x14] sm:$0xf]
      %v3128 = vld [vmem:[%s3121 + $0x18] sm:$0xf]
      %v3129 = vld [vmem:[%s3121 + $0x1c] sm:$0xf]
      %v3130 = vld [vmem:[%s3121 + $0x20] sm:$0xf]
      %v3131 = vld [vmem:[%s3121 + $0x24] sm:$0xf]
      %v3132 = vld [vmem:[%s3121 + $0x28] sm:$0xf]
      %v3133 = vld [vmem:[%s3121 + $0x2c] sm:$0xf]
      %v3134 = vld [vmem:[%s3121 + $0x30] sm:$0xf]
      %v3135 = vld [vmem:[%s3121 + $0x34] sm:$0xf]
      %v3136 = vld [vmem:[%s3121 + $0x38] sm:$0xf]
      %v3137 = vld [vmem:[%s3121 + $0x3c] sm:$0xf]
      %v3138 = vunpack.c.l.b16 %v2942
      %v3139 = vunpack.c.l.b16 %v2952
      %v3140 = vunpack.c.l.b16 %v2966
      %v3141 = vunpack.c.l.b16 %v2976
      %v3142 = vunpack.c.l.b16 %v2990
      %v3143 = vunpack.c.l.b16 %v3000
      %v3144 = vunpack.c.l.b16 %v3014
      %v3145 = vunpack.c.l.b16 %v3024
      %v3146 = vunpack.c.l.b16 %v3038
      %v3147 = vunpack.c.l.b16 %v3048
      %v3148 = vunpack.c.l.b16 %v3062
      %v3149 = vunpack.c.l.b16 %v3072
      %v3150 = vunpack.c.l.b16 %v3086
      %v3151 = vunpack.c.l.b16 %v3096
      %v3152 = vunpack.c.l.b16 %v3110
      %v3153 = vunpack.c.l.b16 %v3120
      %v3154 = vpack.c.b16 %v3139, %v3138
      %v3155 = vpack.c.b16 %v3141, %v3140
      %v3156 = vpack.c.b16 %v3143, %v3142
      %v3157 = vpack.c.b16 %v3145, %v3144
      %v3158 = vpack.c.b16 %v3147, %v3146
      %v3159 = vpack.c.b16 %v3149, %v3148
      %v3160 = vpack.c.b16 %v3151, %v3150
      %v3161 = vpack.c.b16 %v3153, %v3152
      %v3186 = vunpack.c.l.b16 %v3122
      %v3187 = vunpack.c.l.b16 %v3123
      %v3188 = vunpack.c.l.b16 %v3124
      %v3189 = vunpack.c.l.b16 %v3125
      %v3190 = vunpack.c.l.b16 %v3126
      %v3191 = vunpack.c.l.b16 %v3127
      %v3192 = vunpack.c.l.b16 %v3128
      %v3193 = vunpack.c.l.b16 %v3129
      %v3194 = vunpack.c.l.b16 %v3130
      %v3195 = vunpack.c.l.b16 %v3131
      %v3196 = vunpack.c.l.b16 %v3132
      %v3197 = vunpack.c.l.b16 %v3133
      %v3198 = vunpack.c.l.b16 %v3134
      %v3199 = vunpack.c.l.b16 %v3135
      %v3200 = vunpack.c.l.b16 %v3136
      %v3201 = vunpack.c.l.b16 %v3137
      %v3202 = vpack.c.b16 %v3187, %v3186
      %v3203 = vpack.c.b16 %v3189, %v3188
      %v3204 = vpack.c.b16 %v3191, %v3190
      %v3205 = vpack.c.b16 %v3193, %v3192
      %v3206 = vpack.c.b16 %v3195, %v3194
      %v3207 = vpack.c.b16 %v3197, %v3196
      %v3208 = vpack.c.b16 %v3199, %v3198
      %v3209 = vpack.c.b16 %v3201, %v3200
      %3218 = vmatpush.bf16.msra.mxu0 %v3209
      %3219 = vmatpush.bf16.msra.mxu0 %v3208
      %3220 = vmatpush.bf16.msra.mxu0 %v3207
      %3221 = vmatpush.bf16.msra.mxu0 %v3206
      %3222 = vmatpush.bf16.msra.mxu0 %v3205
      %3223 = vmatpush.bf16.msra.mxu0 %v3204
      %3224 = vmatpush.bf16.msra.mxu0 %v3203
      %3225 = vmatpush.bf16.msra.mxu0 %v3202
      %3226 = vmatmul.bf16.gmra.mxu0 %v3154
      %v3227 = vpop.f32.mrf.mxu0
      %v3228 = vadd.f32 0.0, %v3227
      %v3229 = vpop.f32.mrf.mxu0
      %v3230 = vadd.f32 0.0, %v3229
      %3231 = vmatmul.bf16.gmra.mxu0 %v3155
      %v3232 = vpop.f32.mrf.mxu0
      %v3233 = vadd.f32 0.0, %v3232
      %v3234 = vpop.f32.mrf.mxu0
      %v3235 = vadd.f32 0.0, %v3234
      %3236 = vmatmul.bf16.gmra.mxu0 %v3156
      %v3237 = vpop.f32.mrf.mxu0
      %v3238 = vadd.f32 0.0, %v3237
      %v3239 = vpop.f32.mrf.mxu0
      %v3240 = vadd.f32 0.0, %v3239
      %3241 = vmatmul.bf16.gmra.mxu0 %v3157
      %v3242 = vpop.f32.mrf.mxu0
      %v3243 = vadd.f32 0.0, %v3242
      %v3244 = vpop.f32.mrf.mxu0
      %v3245 = vadd.f32 0.0, %v3244
      %3246 = vmatmul.bf16.gmra.mxu0 %v3158
      %v3247 = vpop.f32.mrf.mxu0
      %v3248 = vadd.f32 0.0, %v3247
      %v3249 = vpop.f32.mrf.mxu0
      %v3250 = vadd.f32 0.0, %v3249
      %3251 = vmatmul.bf16.gmra.mxu0 %v3159
      %v3252 = vpop.f32.mrf.mxu0
      %v3253 = vadd.f32 0.0, %v3252
      %v3254 = vpop.f32.mrf.mxu0
      %v3255 = vadd.f32 0.0, %v3254
      %3256 = vmatmul.bf16.gmra.mxu0 %v3160
      %v3257 = vpop.f32.mrf.mxu0
      %v3258 = vadd.f32 0.0, %v3257
      %v3259 = vpop.f32.mrf.mxu0
      %v3260 = vadd.f32 0.0, %v3259
      %3261 = vmatmul.bf16.gmra.mxu0 %v3161
      %v3262 = vpop.f32.mrf.mxu0
      %v3263 = vadd.f32 0.0, %v3262
      %v3264 = vpop.f32.mrf.mxu0
      %v3265 = vadd.f32 0.0, %v3264
      %3266 = vdwg.mxu0
      %v3267 = vadd.f32 %v2889, %v3228
      %v3268 = vadd.f32 %v2890, %v3230
      %v3269 = vadd.f32 %v2891, %v3233
      %v3270 = vadd.f32 %v2892, %v3235
      %v3271 = vadd.f32 %v2893, %v3238
      %v3272 = vadd.f32 %v2894, %v3240
      %v3273 = vadd.f32 %v2895, %v3243
      %v3274 = vadd.f32 %v2896, %v3245
      %v3275 = vadd.f32 %v2897, %v3248
      %v3276 = vadd.f32 %v2898, %v3250
      %v3277 = vadd.f32 %v2899, %v3253
      %v3278 = vadd.f32 %v2900, %v3255
      %v3279 = vadd.f32 %v2901, %v3258
      %v3280 = vadd.f32 %v2902, %v3260
      %v3281 = vadd.f32 %v2903, %v3263
      %v3282 = vadd.f32 %v2904, %v3265
      %v3283 = vld [vmem:[%s2710] sm:$0xe]
      %v3284 = vld [vmem:[%s2710 + $0xc] sm:$0xe]
      %v3285 = vld [vmem:[%s2710 + $0x18] sm:$0xe]
      %v3286 = vld [vmem:[%s2710 + $0x24] sm:$0xe]
      %v3287 = vld [vmem:[%s2710 + $0x30] sm:$0xe]
      %v3288 = vld [vmem:[%s2710 + $0x3c] sm:$0xe]
      %v3289 = vld [vmem:[%s2710 + $0x48] sm:$0xe]
      %v3290 = vld [vmem:[%s2710 + $0x54] sm:$0xe]
      %v3315 = vrot.slane %v3283, 5
      %v3316 = vrot.slane %v3315, 4
      %v3317 = vrot.slane %v2906, 5
      %v3318 = vsel %vm1669, %v3316, %v3317
      %v3319 = vrot.slane %v3317, 4
      %v3320 = vrot.slane %v2907, 5
      %v3321 = vsel %vm1669, %v3319, %v3320
      %v3322 = vrot.slane %v3284, 5
      %v3323 = vrot.slane %v3322, 4
      %v3324 = vrot.slane %v2909, 5
      %v3325 = vsel %vm1669, %v3323, %v3324
      %v3326 = vrot.slane %v3324, 4
      %v3327 = vrot.slane %v2910, 5
      %v3328 = vsel %vm1669, %v3326, %v3327
      %v3329 = vrot.slane %v3285, 5
      %v3330 = vrot.slane %v3329, 4
      %v3331 = vrot.slane %v2912, 5
      %v3332 = vsel %vm1669, %v3330, %v3331
      %v3333 = vrot.slane %v3331, 4
      %v3334 = vrot.slane %v2913, 5
      %v3335 = vsel %vm1669, %v3333, %v3334
      %v3336 = vrot.slane %v3286, 5
      %v3337 = vrot.slane %v3336, 4
      %v3338 = vrot.slane %v2915, 5
      %v3339 = vsel %vm1669, %v3337, %v3338
      %v3340 = vrot.slane %v3338, 4
      %v3341 = vrot.slane %v2916, 5
      %v3342 = vsel %vm1669, %v3340, %v3341
      %v3343 = vrot.slane %v3287, 5
      %v3344 = vrot.slane %v3343, 4
      %v3345 = vrot.slane %v2918, 5
      %v3346 = vsel %vm1669, %v3344, %v3345
      %v3347 = vrot.slane %v3345, 4
      %v3348 = vrot.slane %v2919, 5
      %v3349 = vsel %vm1669, %v3347, %v3348
      %v3350 = vrot.slane %v3288, 5
      %v3351 = vrot.slane %v3350, 4
      %v3352 = vrot.slane %v2921, 5
      %v3353 = vsel %vm1669, %v3351, %v3352
      %v3354 = vrot.slane %v3352, 4
      %v3355 = vrot.slane %v2922, 5
      %v3356 = vsel %vm1669, %v3354, %v3355
      %v3357 = vrot.slane %v3289, 5
      %v3358 = vrot.slane %v3357, 4
      %v3359 = vrot.slane %v2924, 5
      %v3360 = vsel %vm1669, %v3358, %v3359
      %v3361 = vrot.slane %v3359, 4
      %v3362 = vrot.slane %v2925, 5
      %v3363 = vsel %vm1669, %v3361, %v3362
      %v3364 = vrot.slane %v3290, 5
      %v3365 = vrot.slane %v3364, 4
      %v3366 = vrot.slane %v2927, 5
      %v3367 = vsel %vm1669, %v3365, %v3366
      %v3368 = vrot.slane %v3366, 4
      %v3369 = vrot.slane %v2928, 5
      %v3370 = vsel %vm1669, %v3368, %v3369
      %s3371 = scalar_lea.vmem %s5, 512
      %v3372 = vld [vmem:[%s3371] sm:$0xf]
      %v3373 = vld [vmem:[%s3371 + $0x4] sm:$0xf]
      %v3374 = vld [vmem:[%s3371 + $0x8] sm:$0xf]
      %v3375 = vld [vmem:[%s3371 + $0xc] sm:$0xf]
      %v3376 = vld [vmem:[%s3371 + $0x10] sm:$0xf]
      %v3377 = vld [vmem:[%s3371 + $0x14] sm:$0xf]
      %v3378 = vld [vmem:[%s3371 + $0x18] sm:$0xf]
      %v3379 = vld [vmem:[%s3371 + $0x1c] sm:$0xf]
      %v3380 = vld [vmem:[%s3371 + $0x20] sm:$0xf]
      %v3381 = vld [vmem:[%s3371 + $0x24] sm:$0xf]
      %v3382 = vld [vmem:[%s3371 + $0x28] sm:$0xf]
      %v3383 = vld [vmem:[%s3371 + $0x2c] sm:$0xf]
      %v3384 = vld [vmem:[%s3371 + $0x30] sm:$0xf]
      %v3385 = vld [vmem:[%s3371 + $0x34] sm:$0xf]
      %v3386 = vld [vmem:[%s3371 + $0x38] sm:$0xf]
      %v3387 = vld [vmem:[%s3371 + $0x3c] sm:$0xf]
      %v3388 = vunpack.c.l.b16 %v3318
      %v3389 = vunpack.c.l.b16 %v3321
      %v3390 = vunpack.c.l.b16 %v3325
      %v3391 = vunpack.c.l.b16 %v3328
      %v3392 = vunpack.c.l.b16 %v3332
      %v3393 = vunpack.c.l.b16 %v3335
      %v3394 = vunpack.c.l.b16 %v3339
      %v3395 = vunpack.c.l.b16 %v3342
      %v3396 = vunpack.c.l.b16 %v3346
      %v3397 = vunpack.c.l.b16 %v3349
      %v3398 = vunpack.c.l.b16 %v3353
      %v3399 = vunpack.c.l.b16 %v3356
      %v3400 = vunpack.c.l.b16 %v3360
      %v3401 = vunpack.c.l.b16 %v3363
      %v3402 = vunpack.c.l.b16 %v3367
      %v3403 = vunpack.c.l.b16 %v3370
      %v3404 = vpack.c.b16 %v3389, %v3388
      %v3405 = vpack.c.b16 %v3391, %v3390
      %v3406 = vpack.c.b16 %v3393, %v3392
      %v3407 = vpack.c.b16 %v3395, %v3394
      %v3408 = vpack.c.b16 %v3397, %v3396
      %v3409 = vpack.c.b16 %v3399, %v3398
      %v3410 = vpack.c.b16 %v3401, %v3400
      %v3411 = vpack.c.b16 %v3403, %v3402
      %v3436 = vunpack.c.l.b16 %v3372
      %v3437 = vunpack.c.l.b16 %v3373
      %v3438 = vunpack.c.l.b16 %v3374
      %v3439 = vunpack.c.l.b16 %v3375
      %v3440 = vunpack.c.l.b16 %v3376
      %v3441 = vunpack.c.l.b16 %v3377
      %v3442 = vunpack.c.l.b16 %v3378
      %v3443 = vunpack.c.l.b16 %v3379
      %v3444 = vunpack.c.l.b16 %v3380
      %v3445 = vunpack.c.l.b16 %v3381
      %v3446 = vunpack.c.l.b16 %v3382
      %v3447 = vunpack.c.l.b16 %v3383
      %v3448 = vunpack.c.l.b16 %v3384
      %v3449 = vunpack.c.l.b16 %v3385
      %v3450 = vunpack.c.l.b16 %v3386
      %v3451 = vunpack.c.l.b16 %v3387
      %v3452 = vpack.c.b16 %v3437, %v3436
      %v3453 = vpack.c.b16 %v3439, %v3438
      %v3454 = vpack.c.b16 %v3441, %v3440
      %v3455 = vpack.c.b16 %v3443, %v3442
      %v3456 = vpack.c.b16 %v3445, %v3444
      %v3457 = vpack.c.b16 %v3447, %v3446
      %v3458 = vpack.c.b16 %v3449, %v3448
      %v3459 = vpack.c.b16 %v3451, %v3450
      %3468 = vmatpush.bf16.msra.mxu0 %v3459
      %3469 = vmatpush.bf16.msra.mxu0 %v3458
      %3470 = vmatpush.bf16.msra.mxu0 %v3457
      %3471 = vmatpush.bf16.msra.mxu0 %v3456
      %3472 = vmatpush.bf16.msra.mxu0 %v3455
      %3473 = vmatpush.bf16.msra.mxu0 %v3454
      %3474 = vmatpush.bf16.msra.mxu0 %v3453
      %3475 = vmatpush.bf16.msra.mxu0 %v3452
      %3476 = vmatmul.bf16.gmra.mxu0 %v3404
      %v3477 = vpop.f32.mrf.mxu0
      %v3478 = vadd.f32 0.0, %v3477
      %v3479 = vpop.f32.mrf.mxu0
      %v3480 = vadd.f32 0.0, %v3479
      %3481 = vmatmul.bf16.gmra.mxu0 %v3405
      %v3482 = vpop.f32.mrf.mxu0
      %v3483 = vadd.f32 0.0, %v3482
      %v3484 = vpop.f32.mrf.mxu0
      %v3485 = vadd.f32 0.0, %v3484
      %3486 = vmatmul.bf16.gmra.mxu0 %v3406
      %v3487 = vpop.f32.mrf.mxu0
      %v3488 = vadd.f32 0.0, %v3487
      %v3489 = vpop.f32.mrf.mxu0
      %v3490 = vadd.f32 0.0, %v3489
      %3491 = vmatmul.bf16.gmra.mxu0 %v3407
      %v3492 = vpop.f32.mrf.mxu0
      %v3493 = vadd.f32 0.0, %v3492
      %v3494 = vpop.f32.mrf.mxu0
      %v3495 = vadd.f32 0.0, %v3494
      %3496 = vmatmul.bf16.gmra.mxu0 %v3408
      %v3497 = vpop.f32.mrf.mxu0
      %v3498 = vadd.f32 0.0, %v3497
      %v3499 = vpop.f32.mrf.mxu0
      %v3500 = vadd.f32 0.0, %v3499
      %3501 = vmatmul.bf16.gmra.mxu0 %v3409
      %v3502 = vpop.f32.mrf.mxu0
      %v3503 = vadd.f32 0.0, %v3502
      %v3504 = vpop.f32.mrf.mxu0
      %v3505 = vadd.f32 0.0, %v3504
      %3506 = vmatmul.bf16.gmra.mxu0 %v3410
      %v3507 = vpop.f32.mrf.mxu0
      %v3508 = vadd.f32 0.0, %v3507
      %v3509 = vpop.f32.mrf.mxu0
      %v3510 = vadd.f32 0.0, %v3509
      %3511 = vmatmul.bf16.gmra.mxu0 %v3411
      %v3512 = vpop.f32.mrf.mxu0
      %v3513 = vadd.f32 0.0, %v3512
      %v3514 = vpop.f32.mrf.mxu0
      %v3515 = vadd.f32 0.0, %v3514
      %3516 = vdwg.mxu0
      %v3517 = vadd.f32 %v3267, %v3478
      %v3518 = vadd.f32 %v3268, %v3480
      %v3519 = vadd.f32 %v3269, %v3483
      %v3520 = vadd.f32 %v3270, %v3485
      %v3521 = vadd.f32 %v3271, %v3488
      %v3522 = vadd.f32 %v3272, %v3490
      %v3523 = vadd.f32 %v3273, %v3493
      %v3524 = vadd.f32 %v3274, %v3495
      %v3525 = vadd.f32 %v3275, %v3498
      %v3526 = vadd.f32 %v3276, %v3500
      %v3527 = vadd.f32 %v3277, %v3503
      %v3528 = vadd.f32 %v3278, %v3505
      %v3529 = vadd.f32 %v3279, %v3508
      %v3530 = vadd.f32 %v3280, %v3510
      %v3531 = vadd.f32 %v3281, %v3513
      %v3532 = vadd.f32 %v3282, %v3515
      %v3533 = vadd.f32 %v298, %v3517
      %v3534 = vadd.f32 %v299, %v3518
      %v3535 = vadd.f32 %v300, %v3519
      %v3536 = vadd.f32 %v301, %v3520
      %v3537 = vadd.f32 %v302, %v3521
      %v3538 = vadd.f32 %v303, %v3522
      %v3539 = vadd.f32 %v304, %v3523
      %v3540 = vadd.f32 %v305, %v3524
      %v3541 = vadd.f32 %v306, %v3525
      %v3542 = vadd.f32 %v307, %v3526
      %v3543 = vadd.f32 %v308, %v3527
      %v3544 = vadd.f32 %v309, %v3528
      %v3545 = vadd.f32 %v310, %v3529
      %v3546 = vadd.f32 %v311, %v3530
      %v3547 = vadd.f32 %v312, %v3531
      %v3548 = vadd.f32 %v313, %v3532
      %v3549 = vpack.c.bf16 %v3533, %v3533
      %v3550 = vpack.c.bf16 %v3534, %v3534
      %v3551 = vpack.c.bf16 %v3535, %v3535
      %v3552 = vpack.c.bf16 %v3536, %v3536
      %v3553 = vpack.c.bf16 %v3537, %v3537
      %v3554 = vpack.c.bf16 %v3538, %v3538
      %v3555 = vpack.c.bf16 %v3539, %v3539
      %v3556 = vpack.c.bf16 %v3540, %v3540
      %v3557 = vpack.c.bf16 %v3541, %v3541
      %v3558 = vpack.c.bf16 %v3542, %v3542
      %v3559 = vpack.c.bf16 %v3543, %v3543
      %v3560 = vpack.c.bf16 %v3544, %v3544
      %v3561 = vpack.c.bf16 %v3545, %v3545
      %v3562 = vpack.c.bf16 %v3546, %v3546
      %v3563 = vpack.c.bf16 %v3547, %v3547
      %v3564 = vpack.c.bf16 %v3548, %v3548
      %3565 = vst [vmem:[%s275] sm:$0xf] %v3549
      %3566 = vst [vmem:[%s275 + $0x4] sm:$0xf] %v3550
      %3567 = vst [vmem:[%s275 + $0x8] sm:$0xf] %v3551
      %3568 = vst [vmem:[%s275 + $0xc] sm:$0xf] %v3552
      %3569 = vst [vmem:[%s275 + $0x10] sm:$0xf] %v3553
      %3570 = vst [vmem:[%s275 + $0x14] sm:$0xf] %v3554
      %3571 = vst [vmem:[%s275 + $0x18] sm:$0xf] %v3555
      %3572 = vst [vmem:[%s275 + $0x1c] sm:$0xf] %v3556
      %3573 = vst [vmem:[%s275 + $0x20] sm:$0xf] %v3557
      %3574 = vst [vmem:[%s275 + $0x24] sm:$0xf] %v3558
      %3575 = vst [vmem:[%s275 + $0x28] sm:$0xf] %v3559
      %3576 = vst [vmem:[%s275 + $0x2c] sm:$0xf] %v3560
      %3577 = vst [vmem:[%s275 + $0x30] sm:$0xf] %v3561
      %3578 = vst [vmem:[%s275 + $0x34] sm:$0xf] %v3562
      %3579 = vst [vmem:[%s275 + $0x38] sm:$0xf] %v3563
      %3580 = vst [vmem:[%s275 + $0x3c] sm:$0xf] %v3564
      %s3581 = smul.u32 8, %s22
      %p3582 = scmp.lt.s32.totalorder %s21, 1
      %s3583 = scalar_select %p3582, %s21, 1
      %p3584 = scmp.lt.s32.totalorder %s3581, 15
      %s3585 = scalar_select %p3584, %s3581, 15
      %s3586 = smul.addr %s3585, 2
      %s3587 = smul.addr %s3583, 32
      %s3588 = sadd.s32 %s3586, %s3587
      %s3589 = smul.addr %s3588, 4
      %s3590 = scalar_lea.vmem %s6, %s3589
      // Predicated region
      $region61: #{bottleneck_forward_nchw.1} parent=43 // pred_check
        %p3591 = pneg %p180
      $region62: #{bottleneck_forward_nchw.1} parent=43 // pred_check_branch
        %3593 = sbr.rel (%p3591) target = $region64
      $region63: #{bottleneck_forward_nchw.1} parent=43 // pred_region
        %s3594 = smul.u32 8, %s22
      $region64: #{bottleneck_forward_nchw.1} parent=43 // pred_fallthru
        _
    $region44: #{bottleneck_forward_nchw.1} parent=5 // pred_fallthru
      _
    %p3595 = scmp.le.s32.totalorder 2, %s12
    // Predicated region
    $region65: #{bottleneck_forward_nchw.1} parent=5 // pred_check
      %p3596 = pneg %p3595
    $region66: #{bottleneck_forward_nchw.1} parent=5 // pred_check_branch
      %3598 = sbr.rel (%p3596) target = $region68
    $region67: #{bottleneck_forward_nchw.1} parent=5 // pred_region
      %s3599 = ssub.s32 %s12, 2
      // Predicated region
      $region69: #{bottleneck_forward_nchw.1} parent=67 // pred_check
        %p3600 = pneg %p186
      $region70: #{bottleneck_forward_nchw.1} parent=67 // pred_check_branch
        %3602 = sbr.rel (%p3600) target = $region72
      $region71: #{bottleneck_forward_nchw.1} parent=67 // pred_region
        %s3603 = smul.u32 8, %s24
        %p3604 = scmp.lt.s32.totalorder %s23, 1
        %s3605 = scalar_select %p3604, %s23, 1
        %p3606 = scmp.lt.s32.totalorder %s3603, 15
        %s3607 = scalar_select %p3606, %s3603, 15
        %s3608 = smul.addr %s3607, 2
        %s3609 = smul.addr %s3605, 32
        %s3610 = sadd.s32 %s3608, %s3609
        %s3611 = smul.addr %s3610, 4
        %s3612 = scalar_lea.vmem %s6, %s3611
      $region72: #{bottleneck_forward_nchw.1} parent=67 // pred_fallthru
        _
    $region68: #{bottleneck_forward_nchw.1} parent=5 // pred_fallthru
      _
  $region6: #{bottleneck_forward_nchw.1} parent=0 // loop_footer
    %s16 = sadd.s32 1, %s12
  $region7: #{bottleneck_forward_nchw.1} parent=0 // loop_footer_branch
    %11 = sbr.rel target = $region3
  $region8: #{bottleneck_forward_nchw.1} parent=0 // loop_exit
    _

</llo_original>
